<compile_context>
chip_gen: v5e
topology: v5e:2x2
jax: 0.10.0
libtpu: 0.0.40
codegen_flags: <defaults>
</compile_context>

<pallas_src>
import math
import functools

import jax
import jax.numpy as jnp
from jax.experimental import pallas as pl
from jax.experimental.pallas import tpu as pltpu


def _self_attention_kernel(x_ref, wf_ref, bf_ref, wm_ref, bm_ref,
                           bsel_ref, bselt_ref, gid_row_ref, gid_col_ref,
                           o_ref, attn_ref,
                           *, num_heads, head_dim, attn_chunk):
    """One grid step processes a (M, C) slab covering BT_TILE (b,t) slices."""
    eps_sq = 1e-24                      # (F.normalize default eps)**2
    H, D = num_heads, head_dim
    C = H * D
    M = x_ref.shape[0]

    # ---- fused q|k|v projection: one bf16 MXU pass with N = 3C, f32 accumulate.
    qkv = jnp.dot(x_ref[...], wf_ref[...],
                  preferred_element_type=jnp.float32) + bf_ref[...]       # (M, 3C) f32

    # ---- per-head L2 normalization via head-group 0/1 matmuls (kept f32 for
    # accuracy; tiny N/K=3H work, low priority at C=64 — see review item on
    # replacing with pltpu.roll reductions if it ever hits the critical path):
    #   ss[:, g]       = sum of squares over head-group g
    #   inv_full[:, c] = rsqrt(max(ss, eps^2))[:, c // D] * scale
    # (the 1/sqrt(D) softmax scale is pre-folded into the q columns of bselt).
    ss = jnp.dot(qkv * qkv, bsel_ref[...], preferred_element_type=jnp.float32)   # (M, 3H)
    inv = jax.lax.rsqrt(jnp.maximum(ss, eps_sq))                                  # (M, 3H)
    inv_full = jnp.dot(inv, bselt_ref[...], preferred_element_type=jnp.float32)   # (M, 3C)
    qkvn = (qkv * inv_full).astype(jnp.bfloat16)                                  # (M, 3C) bf16

    # Block-diagonal (within-slice) mask for one attention chunk, rebuilt from
    # two tiny slice-id vectors. Chunk-invariant because chunks are aligned to
    # slice (L-row) boundaries.
    mask = (gid_row_ref[...] == gid_col_ref[...]).astype(jnp.float32)     # (chunk, chunk)

    n_chunks = M // attn_chunk
    for ci in range(n_chunks):
        r0 = ci * attn_chunk
        blk = qkvn[r0:r0 + attn_chunk, :]                                  # (chunk, 3C) bf16
        for h in range(H):
            qh = blk[:, h * D:(h + 1) * D]                                 # (chunk, D)
            kh = blk[:, C + h * D:C + (h + 1) * D]                         # (chunk, D)
            vh = blk[:, 2 * C + h * D:2 * C + (h + 1) * D]                 # (chunk, D)

            # One (chunk, chunk) score matmul covers all slices in the chunk;
            # cross-slice scores are zeroed after exp. Invariant: q, k are unit
            # vectors and 1/sqrt(D) is folded into q, so |s| <= 1/sqrt(D) and
            # exp without max-subtraction cannot overflow. (Do not change the
            # normalization / scale folding without restoring max-subtraction.)
            s = jax.lax.dot_general(qh, kh, (((1,), (1,)), ((), ())),
                                    preferred_element_type=jnp.float32)    # (chunk, chunk)
            p = jnp.exp(s) * mask
            denom = jnp.sum(p, axis=-1, keepdims=True)                     # >= ~0.7*L
            o_h = jnp.dot(p.astype(jnp.bfloat16), vh,
                          preferred_element_type=jnp.float32)              # (chunk, D)
            # Direct static-slice write into the (M, C) scratch slab: bounds
            # the live ranges of s/p and avoids concatenating 8-lane fragments.
            attn_ref[r0:r0 + attn_chunk, h * D:(h + 1) * D] = (
                o_h * pl.reciprocal(denom, approx=True))

    # ---- output projection `m` (bf16 MXU, f32 accumulate + bias).
    y = jnp.dot(attn_ref[...].astype(jnp.bfloat16), wm_ref[...],
                preferred_element_type=jnp.float32) + bm_ref[...]
    o_ref[...] = y.astype(o_ref.dtype)


def _min_grid_steps_for_device():
    """v7x has 2 TensorCores/chip -> keep >=2 grid steps; v5e/v6e have 1 TC."""
    try:
        kind = jax.devices()[0].device_kind.lower()
    except Exception:
        return 1
    return 2 if "v7" in kind else 1


def _pick_bt_tile(bt, l, max_rows=256, min_grid_steps=1):
    """Largest divisor of bt giving a sublane-aligned slab within max_rows."""
    cands = [d for d in range(1, bt + 1)
             if bt % d == 0 and (d * l) % 8 == 0 and d * l <= max_rows
             and bt // d >= min_grid_steps]
    if not cands:
        cands = [d for d in range(1, bt + 1)
                 if bt % d == 0 and (d * l) % 8 == 0 and d * l <= max_rows]
    return max(cands) if cands else bt


def _pick_attn_chunk(bt_tile, l, target_rows=128):
    """Attention-core chunk: multiple of L, dividing the slab, near 128 rows."""
    cands = [d for d in range(1, bt_tile + 1)
             if bt_tile % d == 0 and d * l <= max(target_rows, l)]
    return max(cands) * l


def self_attention_pallas(x, params, num_heads, bt_tile=None, attn_chunk_rows=128):
    b, t, l, c = x.shape
    head_dim = c // num_heads
    bt = b * t
    min_steps = _min_grid_steps_for_device()
    if bt_tile is None:
        bt_tile = _pick_bt_tile(bt, l, max_rows=256, min_grid_steps=min_steps)
    assert bt % bt_tile == 0
    m = bt_tile * l
    grid_steps = bt // bt_tile
    attn_chunk = _pick_attn_chunk(bt_tile, l, target_rows=attn_chunk_rows)

    # bf16 MXU operands prepared in the wrapper (halves weight / input DMA);
    # biases stay f32 and are added to the f32 dot outputs.
    x2 = x.reshape(bt * l, c).astype(jnp.bfloat16)                  # free reshape + cast
    wf = jnp.concatenate([params["wq"], params["wkv"]], axis=1).astype(jnp.bfloat16)  # (C, 3C)
    bf = jnp.concatenate([params["bq"], params["bkv"]], axis=1).astype(jnp.float32)   # (1, 3C)
    wm = params["wm"].astype(jnp.bfloat16)                          # (C, C)
    bm = params["bm"].astype(jnp.float32)                           # (1, C)

    # Head-group selection matrices (columns of qkv are 3H contiguous D-groups).
    gid = jnp.arange(3 * c) // head_dim                             # (3C,)
    gids = jnp.arange(3 * num_heads)                                # (3H,)
    bsel = (gid[:, None] == gids[None, :]).astype(jnp.float32)      # (3C, 3H)
    scale_cols = jnp.where(jnp.arange(3 * c) < c,
                           1.0 / math.sqrt(head_dim), 1.0).astype(jnp.float32)
    bselt = (gids[:, None] == gid[None, :]).astype(jnp.float32) * scale_cols[None, :]  # (3H, 3C)

    # Tiny per-chunk slice-id vectors replacing the old (M, M) f32 HBM mask.
    rows = (jnp.arange(attn_chunk) // l).astype(jnp.float32)
    gid_row = rows[:, None]                                         # (chunk, 1)
    gid_col = rows[None, :]                                         # (1, chunk)

    kernel = functools.partial(_self_attention_kernel,
                               num_heads=num_heads, head_dim=head_dim,
                               attn_chunk=attn_chunk)

    # Cost estimate (helps XLA schedule around this small custom call).
    n_rows = bt * l
    flops = int(2 * n_rows * c * (3 * c)                              # fused qkv proj
                + 2 * 2 * n_rows * (3 * c) * (3 * num_heads)          # norm select matmuls
                + 2 * 2 * num_heads * n_rows * attn_chunk * head_dim  # scores + PV
                + 2 * n_rows * c * c)                                 # output proj
    transcendentals = int(num_heads * n_rows * attn_chunk             # exp
                          + n_rows * 3 * num_heads                    # rsqrt
                          + num_heads * n_rows)                       # reciprocal
    bytes_accessed = int(n_rows * c * 2 + n_rows * c * 4              # x (bf16) + out (f32)
                         + (c * 3 * c + c * c) * 2                    # weights (bf16)
                         + 4 * c * 4                                  # biases
                         + 2 * (3 * c) * (3 * num_heads) * 4          # bsel / bselt
                         + 2 * attn_chunk * 4)                        # gid vectors

    # Explicit VMEM budget (double-buffered operands + scratch + headroom).
    est = (2 * m * c * 2 + 2 * m * c * 4
           + 2 * c * 3 * c * 2 + 2 * c * c * 2
           + 2 * 4 * c * 4
           + 2 * 2 * (3 * c) * (3 * num_heads) * 4
           + 2 * 2 * attn_chunk * 4
           + m * c * 4                       # attn scratch
           + 4 * m * 3 * c * 4               # qkv / qkvn intermediates
           + 4 * attn_chunk * attn_chunk * 4)  # s / p / mask temporaries
    vmem_limit = int(min(32 * 1024 * 1024, max(16 * 1024 * 1024, 4 * est)))

    # Constant index_maps => weights / selection matrices stay VMEM-resident.
    out = pl.pallas_call(
        kernel,
        out_shape=jax.ShapeDtypeStruct((bt * l, c), x.dtype),
        grid_spec=pltpu.PrefetchScalarGridSpec(
            num_scalar_prefetch=0,
            grid=(grid_steps,),
            in_specs=[
                pl.BlockSpec((m, c), lambda i: (i, 0)),                   # x slab (bf16)
                pl.BlockSpec((c, 3 * c), lambda i: (0, 0)),               # fused Wq|Wkv (bf16)
                pl.BlockSpec((1, 3 * c), lambda i: (0, 0)),               # fused bias (f32)
                pl.BlockSpec((c, c), lambda i: (0, 0)),                   # Wm (bf16)
                pl.BlockSpec((1, c), lambda i: (0, 0)),                   # bm (f32)
                pl.BlockSpec((3 * c, 3 * num_heads), lambda i: (0, 0)),   # bsel
                pl.BlockSpec((3 * num_heads, 3 * c), lambda i: (0, 0)),   # bselt (+scale)
                pl.BlockSpec((attn_chunk, 1), lambda i: (0, 0)),          # slice ids (rows)
                pl.BlockSpec((1, attn_chunk), lambda i: (0, 0)),          # slice ids (cols)
            ],
            out_specs=pl.BlockSpec((m, c), lambda i: (i, 0)),
            scratch_shapes=[pltpu.VMEM((m, c), jnp.float32)],             # per-head attn slab
        ),
        compiler_params=pltpu.CompilerParams(
            dimension_semantics=(("parallel",) if grid_steps > 1 else ("arbitrary",)),
            vmem_limit_bytes=vmem_limit),
        cost_estimate=pl.CostEstimate(flops=flops,
                                      transcendentals=transcendentals,
                                      bytes_accessed=bytes_accessed),
    )(x2, wf, bf, wm, bm, bsel, bselt, gid_row, gid_col)

    # NOTE: output last dim C=64 (<128 lanes) -> masked stores; the module has
    # no in-forward consumer to fuse (the `shortcut` in the PyTorch code is
    # unused), so the narrow store is accepted here.
    return out.reshape(b, t, l, c)


def self_attention_ref(x, params, num_heads):
    """Pure-JAX reference mirroring the PyTorch forward (eval mode)."""
    b, t, l, c = x.shape
    hd = c // num_heads
    q = x @ params["wq"] + params["bq"]
    kv = x @ params["wkv"] + params["bkv"]
    q = q.reshape(b, t, l, num_heads, hd).transpose(0, 1, 3, 2, 4)
    kv = kv.reshape(b, t, l, 2 * num_heads, hd).transpose(0, 1, 3, 2, 4)
    k, v = kv[:, :, :num_heads], kv[:, :, num_heads:]

    def norm(a):
        n = jnp.sqrt(jnp.sum(a * a, axis=-1, keepdims=True))
        return a / jnp.maximum(n, 1e-12)

    q, k, v = norm(q), norm(k), norm(v)
    s = jnp.einsum('bthqd,bthkd->bthqk', q, k) / math.sqrt(hd)
    p = jax.nn.softmax(s, axis=-1)
    o = jnp.einsum('bthqk,bthkd->bthqd', p, v)
    o = o.transpose(0, 1, 3, 2, 4).reshape(b, t, l, c)
    return o @ params["wm"] + params["bm"]


def make_params(key, c):
    ks = jax.random.split(key, 6)
    s = 1.0 / math.sqrt(c)
    return {
        "wq": jax.random.uniform(ks[0], (c, c), jnp.float32, -s, s),
        "bq": jax.random.uniform(ks[1], (1, c), jnp.float32, -s, s),
        "wkv": jax.random.uniform(ks[2], (c, 2 * c), jnp.float32, -s, s),
        "bkv": jax.random.uniform(ks[3], (1, 2 * c), jnp.float32, -s, s),
        "wm": jax.random.uniform(ks[4], (c, c), jnp.float32, -s, s),
        "bm": jax.random.uniform(ks[5], (1, c), jnp.float32, -s, s),
    }


if __name__ == "__main__":
    B, T, L, C = 2, 4, 16, 64
    NUM_HEADS = 8

    key = jax.random.PRNGKey(0)
    kx, kp = jax.random.split(key)
    x = jax.random.normal(kx, (B, T, L, C), jnp.float32)
    params = make_params(kp, C)

    out = self_attention_pallas(x, params, NUM_HEADS)
    out = jax.block_until_ready(out)

    ref = self_attention_ref(x, params, NUM_HEADS)
    assert out.shape == (B, T, L, C)
    assert jnp.allclose(out, ref, atol=2e-2, rtol=2e-2), \
        float(jnp.max(jnp.abs(out - ref)))

    print("KERNEL_OK")
</pallas_src>

<mosaic_0001>
module attributes {stable_mosaic.version = 11 : i64} {
  func.func @_self_attention_kernel(%arg0: i32, %arg1: memref<128x64xbf16, #tpu.memory_space<vmem>>, %arg2: memref<64x192xbf16, #tpu.memory_space<vmem>>, %arg3: memref<1x192xf32, #tpu.memory_space<vmem>>, %arg4: memref<64x64xbf16, #tpu.memory_space<vmem>>, %arg5: memref<1x64xf32, #tpu.memory_space<vmem>>, %arg6: memref<192x24xf32, #tpu.memory_space<vmem>>, %arg7: memref<24x192xf32, #tpu.memory_space<vmem>>, %arg8: memref<128x1xf32, #tpu.memory_space<vmem>>, %arg9: memref<1x128xf32, #tpu.memory_space<vmem>>, %arg10: memref<128x64xf32, #tpu.memory_space<vmem>>, %arg11: memref<128x64xf32, #tpu.memory_space<vmem>>) attributes {dimension_semantics = [#tpu.dimension_semantics<arbitrary>], iteration_bounds = array<i64: 1>, scalar_prefetch = 0 : i64, scratch_operands = 1 : i64, tpu.core_type = #tpu.core_type<tc>, window_params = [{transform_indices = @transform_0, window_bounds = array<i64: 128, 64>}, {pipeline_mode = #tpu.pipeline_mode<synchronous>, transform_indices = @transform_1, window_bounds = array<i64: 64, 192>}, {pipeline_mode = #tpu.pipeline_mode<synchronous>, transform_indices = @transform_2, window_bounds = array<i64: 1, 192>}, {pipeline_mode = #tpu.pipeline_mode<synchronous>, transform_indices = @transform_3, window_bounds = array<i64: 64, 64>}, {pipeline_mode = #tpu.pipeline_mode<synchronous>, transform_indices = @transform_4, window_bounds = array<i64: 1, 64>}, {pipeline_mode = #tpu.pipeline_mode<synchronous>, transform_indices = @transform_5, window_bounds = array<i64: 192, 24>}, {pipeline_mode = #tpu.pipeline_mode<synchronous>, transform_indices = @transform_6, window_bounds = array<i64: 24, 192>}, {pipeline_mode = #tpu.pipeline_mode<synchronous>, transform_indices = @transform_7, window_bounds = array<i64: 128, 1>}, {pipeline_mode = #tpu.pipeline_mode<synchronous>, transform_indices = @transform_8, window_bounds = array<i64: 1, 128>}, {transform_indices = @transform_9, window_bounds = array<i64: 128, 64>}]} {
    %c0 = arith.constant 0 : index
    %c0_0 = arith.constant 0 : index
    %0 = vector.load %arg1[%c0, %c0_0] : memref<128x64xbf16, #tpu.memory_space<vmem>>, vector<128x64xbf16>
    %c0_1 = arith.constant 0 : index
    %c0_2 = arith.constant 0 : index
    %1 = vector.load %arg2[%c0_1, %c0_2] : memref<64x192xbf16, #tpu.memory_space<vmem>>, vector<64x192xbf16>
    %cst = arith.constant dense<0.000000e+00> : vector<128x192xf32>
    %2 = tpu.matmul %0, %1, %cst {dimension_numbers = #tpu.dot_dimension_numbers<[1], [0], [0], [1], [0, 0, 1, 1], [], []>} : vector<128x64xbf16>, vector<64x192xbf16>, vector<128x192xf32> -> vector<128x192xf32>
    %c0_3 = arith.constant 0 : index
    %c0_4 = arith.constant 0 : index
    %3 = vector.load %arg3[%c0_3, %c0_4] : memref<1x192xf32, #tpu.memory_space<vmem>>, vector<1x192xf32>
    %4 = vector.broadcast %3 : vector<1x192xf32> to vector<128x192xf32>
    %5 = arith.addf %2, %4 : vector<128x192xf32>
    %6 = arith.mulf %5, %5 : vector<128x192xf32>
    %c0_5 = arith.constant 0 : index
    %c0_6 = arith.constant 0 : index
    %7 = vector.load %arg6[%c0_5, %c0_6] : memref<192x24xf32, #tpu.memory_space<vmem>>, vector<192x24xf32>
    %cst_7 = arith.constant dense<0.000000e+00> : vector<128x24xf32>
    %8 = tpu.matmul %6, %7, %cst_7 {dimension_numbers = #tpu.dot_dimension_numbers<[1], [0], [0], [1], [0, 0, 1, 1], [], []>} : vector<128x192xf32>, vector<192x24xf32>, vector<128x24xf32> -> vector<128x24xf32>
    %cst_8 = arith.constant 1.000000e-24 : f32
    %9 = vector.broadcast %cst_8 : f32 to vector<128x24xf32>
    %10 = arith.maximumf %8, %9 : vector<128x24xf32>
    %11 = math.rsqrt %10 : vector<128x24xf32>
    %c0_9 = arith.constant 0 : index
    %c0_10 = arith.constant 0 : index
    %12 = vector.load %arg7[%c0_9, %c0_10] : memref<24x192xf32, #tpu.memory_space<vmem>>, vector<24x192xf32>
    %cst_11 = arith.constant dense<0.000000e+00> : vector<128x192xf32>
    %13 = tpu.matmul %11, %12, %cst_11 {dimension_numbers = #tpu.dot_dimension_numbers<[1], [0], [0], [1], [0, 0, 1, 1], [], []>} : vector<128x24xf32>, vector<24x192xf32>, vector<128x192xf32> -> vector<128x192xf32>
    %14 = arith.mulf %5, %13 : vector<128x192xf32>
    %15 = arith.truncf %14 : vector<128x192xf32> to vector<128x192xbf16>
    %c0_12 = arith.constant 0 : index
    %c0_13 = arith.constant 0 : index
    %16 = vector.load %arg8[%c0_12, %c0_13] : memref<128x1xf32, #tpu.memory_space<vmem>>, vector<128x1xf32>
    %c0_14 = arith.constant 0 : index
    %c0_15 = arith.constant 0 : index
    %17 = vector.load %arg9[%c0_14, %c0_15] : memref<1x128xf32, #tpu.memory_space<vmem>>, vector<1x128xf32>
    %18 = vector.broadcast %16 : vector<128x1xf32> to vector<128x128xf32>
    %19 = vector.broadcast %17 : vector<1x128xf32> to vector<128x128xf32>
    %20 = arith.cmpf oeq, %18, %19 : vector<128x128xf32>
    %21 = arith.extui %20 : vector<128x128xi1> to vector<128x128xi32>
    %22 = arith.sitofp %21 : vector<128x128xi32> to vector<128x128xf32>
    %23 = vector.extract_strided_slice %15 {offsets = [0, 0], sizes = [128, 8], strides = [1, 1]} : vector<128x192xbf16> to vector<128x8xbf16>
    %24 = vector.extract_strided_slice %15 {offsets = [0, 64], sizes = [128, 8], strides = [1, 1]} : vector<128x192xbf16> to vector<128x8xbf16>
    %25 = vector.extract_strided_slice %15 {offsets = [0, 128], sizes = [128, 8], strides = [1, 1]} : vector<128x192xbf16> to vector<128x8xbf16>
    %cst_16 = arith.constant dense<0.000000e+00> : vector<128x128xf32>
    %26 = tpu.matmul %23, %24, %cst_16 {dimension_numbers = #tpu.dot_dimension_numbers<[1], [1], [0], [0], [0, 0, 1, 0], [], []>} : vector<128x8xbf16>, vector<128x8xbf16>, vector<128x128xf32> -> vector<128x128xf32>
    %27 = math.exp %26 : vector<128x128xf32>
    %28 = arith.mulf %27, %22 : vector<128x128xf32>
    %cst_17 = arith.constant dense<0.000000e+00> : vector<128xf32>
    %29 = vector.multi_reduction <add>, %28, %cst_17 [1] : vector<128x128xf32> to vector<128xf32>
    %30 = vector.shape_cast %29 : vector<128xf32> to vector<128x1xf32>
    %31 = arith.truncf %28 : vector<128x128xf32> to vector<128x128xbf16>
    %cst_18 = arith.constant dense<0.000000e+00> : vector<128x8xf32>
    %32 = tpu.matmul %31, %25, %cst_18 {dimension_numbers = #tpu.dot_dimension_numbers<[1], [0], [0], [1], [0, 0, 1, 1], [], []>} : vector<128x128xbf16>, vector<128x8xbf16>, vector<128x8xf32> -> vector<128x8xf32>
    %33 = tpu.reciprocal %30 {approx = true} : vector<128x1xf32> -> vector<128x1xf32>
    %34 = vector.broadcast %33 : vector<128x1xf32> to vector<128x8xf32>
    %35 = arith.mulf %32, %34 : vector<128x8xf32>
    %c0_19 = arith.constant 0 : index
    %c0_20 = arith.constant 0 : index
    %36 = vector.load %arg11[%c0_19, %c0_20] : memref<128x64xf32, #tpu.memory_space<vmem>>, vector<128x8xf32>
    tpu.vector_store %arg11[%c0_19, %c0_20], %35 {strides = array<i32>} : memref<128x64xf32, #tpu.memory_space<vmem>>, vector<128x8xf32>,
    %37 = vector.extract_strided_slice %15 {offsets = [0, 8], sizes = [128, 8], strides = [1, 1]} : vector<128x192xbf16> to vector<128x8xbf16>
    %38 = vector.extract_strided_slice %15 {offsets = [0, 72], sizes = [128, 8], strides = [1, 1]} : vector<128x192xbf16> to vector<128x8xbf16>
    %39 = vector.extract_strided_slice %15 {offsets = [0, 136], sizes = [128, 8], strides = [1, 1]} : vector<128x192xbf16> to vector<128x8xbf16>
    %cst_21 = arith.constant dense<0.000000e+00> : vector<128x128xf32>
    %40 = tpu.matmul %37, %38, %cst_21 {dimension_numbers = #tpu.dot_dimension_numbers<[1], [1], [0], [0], [0, 0, 1, 0], [], []>} : vector<128x8xbf16>, vector<128x8xbf16>, vector<128x128xf32> -> vector<128x128xf32>
    %41 = math.exp %40 : vector<128x128xf32>
    %42 = arith.mulf %41, %22 : vector<128x128xf32>
    %cst_22 = arith.constant dense<0.000000e+00> : vector<128xf32>
    %43 = vector.multi_reduction <add>, %42, %cst_22 [1] : vector<128x128xf32> to vector<128xf32>
    %44 = vector.shape_cast %43 : vector<128xf32> to vector<128x1xf32>
    %45 = arith.truncf %42 : vector<128x128xf32> to vector<128x128xbf16>
    %cst_23 = arith.constant dense<0.000000e+00> : vector<128x8xf32>
    %46 = tpu.matmul %45, %39, %cst_23 {dimension_numbers = #tpu.dot_dimension_numbers<[1], [0], [0], [1], [0, 0, 1, 1], [], []>} : vector<128x128xbf16>, vector<128x8xbf16>, vector<128x8xf32> -> vector<128x8xf32>
    %47 = tpu.reciprocal %44 {approx = true} : vector<128x1xf32> -> vector<128x1xf32>
    %48 = vector.broadcast %47 : vector<128x1xf32> to vector<128x8xf32>
    %49 = arith.mulf %46, %48 : vector<128x8xf32>
    %c0_24 = arith.constant 0 : index
    %c8 = arith.constant 8 : index
    %50 = vector.load %arg11[%c0_24, %c8] : memref<128x64xf32, #tpu.memory_space<vmem>>, vector<128x8xf32>
    tpu.vector_store %arg11[%c0_24, %c8], %49 {strides = array<i32>} : memref<128x64xf32, #tpu.memory_space<vmem>>, vector<128x8xf32>,
    %51 = vector.extract_strided_slice %15 {offsets = [0, 16], sizes = [128, 8], strides = [1, 1]} : vector<128x192xbf16> to vector<128x8xbf16>
    %52 = vector.extract_strided_slice %15 {offsets = [0, 80], sizes = [128, 8], strides = [1, 1]} : vector<128x192xbf16> to vector<128x8xbf16>
    %53 = vector.extract_strided_slice %15 {offsets = [0, 144], sizes = [128, 8], strides = [1, 1]} : vector<128x192xbf16> to vector<128x8xbf16>
    %cst_25 = arith.constant dense<0.000000e+00> : vector<128x128xf32>
    %54 = tpu.matmul %51, %52, %cst_25 {dimension_numbers = #tpu.dot_dimension_numbers<[1], [1], [0], [0], [0, 0, 1, 0], [], []>} : vector<128x8xbf16>, vector<128x8xbf16>, vector<128x128xf32> -> vector<128x128xf32>
    %55 = math.exp %54 : vector<128x128xf32>
    %56 = arith.mulf %55, %22 : vector<128x128xf32>
    %cst_26 = arith.constant dense<0.000000e+00> : vector<128xf32>
    %57 = vector.multi_reduction <add>, %56, %cst_26 [1] : vector<128x128xf32> to vector<128xf32>
    %58 = vector.shape_cast %57 : vector<128xf32> to vector<128x1xf32>
    %59 = arith.truncf %56 : vector<128x128xf32> to vector<128x128xbf16>
    %cst_27 = arith.constant dense<0.000000e+00> : vector<128x8xf32>
    %60 = tpu.matmul %59, %53, %cst_27 {dimension_numbers = #tpu.dot_dimension_numbers<[1], [0], [0], [1], [0, 0, 1, 1], [], []>} : vector<128x128xbf16>, vector<128x8xbf16>, vector<128x8xf32> -> vector<128x8xf32>
    %61 = tpu.reciprocal %58 {approx = true} : vector<128x1xf32> -> vector<128x1xf32>
    %62 = vector.broadcast %61 : vector<128x1xf32> to vector<128x8xf32>
    %63 = arith.mulf %60, %62 : vector<128x8xf32>
    %c0_28 = arith.constant 0 : index
    %c16 = arith.constant 16 : index
    %64 = vector.load %arg11[%c0_28, %c16] : memref<128x64xf32, #tpu.memory_space<vmem>>, vector<128x8xf32>
    tpu.vector_store %arg11[%c0_28, %c16], %63 {strides = array<i32>} : memref<128x64xf32, #tpu.memory_space<vmem>>, vector<128x8xf32>,
    %65 = vector.extract_strided_slice %15 {offsets = [0, 24], sizes = [128, 8], strides = [1, 1]} : vector<128x192xbf16> to vector<128x8xbf16>
    %66 = vector.extract_strided_slice %15 {offsets = [0, 88], sizes = [128, 8], strides = [1, 1]} : vector<128x192xbf16> to vector<128x8xbf16>
    %67 = vector.extract_strided_slice %15 {offsets = [0, 152], sizes = [128, 8], strides = [1, 1]} : vector<128x192xbf16> to vector<128x8xbf16>
    %cst_29 = arith.constant dense<0.000000e+00> : vector<128x128xf32>
    %68 = tpu.matmul %65, %66, %cst_29 {dimension_numbers = #tpu.dot_dimension_numbers<[1], [1], [0], [0], [0, 0, 1, 0], [], []>} : vector<128x8xbf16>, vector<128x8xbf16>, vector<128x128xf32> -> vector<128x128xf32>
    %69 = math.exp %68 : vector<128x128xf32>
    %70 = arith.mulf %69, %22 : vector<128x128xf32>
    %cst_30 = arith.constant dense<0.000000e+00> : vector<128xf32>
    %71 = vector.multi_reduction <add>, %70, %cst_30 [1] : vector<128x128xf32> to vector<128xf32>
    %72 = vector.shape_cast %71 : vector<128xf32> to vector<128x1xf32>
    %73 = arith.truncf %70 : vector<128x128xf32> to vector<128x128xbf16>
    %cst_31 = arith.constant dense<0.000000e+00> : vector<128x8xf32>
    %74 = tpu.matmul %73, %67, %cst_31 {dimension_numbers = #tpu.dot_dimension_numbers<[1], [0], [0], [1], [0, 0, 1, 1], [], []>} : vector<128x128xbf16>, vector<128x8xbf16>, vector<128x8xf32> -> vector<128x8xf32>
    %75 = tpu.reciprocal %72 {approx = true} : vector<128x1xf32> -> vector<128x1xf32>
    %76 = vector.broadcast %75 : vector<128x1xf32> to vector<128x8xf32>
    %77 = arith.mulf %74, %76 : vector<128x8xf32>
    %c0_32 = arith.constant 0 : index
    %c24 = arith.constant 24 : index
    %78 = vector.load %arg11[%c0_32, %c24] : memref<128x64xf32, #tpu.memory_space<vmem>>, vector<128x8xf32>
    tpu.vector_store %arg11[%c0_32, %c24], %77 {strides = array<i32>} : memref<128x64xf32, #tpu.memory_space<vmem>>, vector<128x8xf32>,
    %79 = vector.extract_strided_slice %15 {offsets = [0, 32], sizes = [128, 8], strides = [1, 1]} : vector<128x192xbf16> to vector<128x8xbf16>
    %80 = vector.extract_strided_slice %15 {offsets = [0, 96], sizes = [128, 8], strides = [1, 1]} : vector<128x192xbf16> to vector<128x8xbf16>
    %81 = vector.extract_strided_slice %15 {offsets = [0, 160], sizes = [128, 8], strides = [1, 1]} : vector<128x192xbf16> to vector<128x8xbf16>
    %cst_33 = arith.constant dense<0.000000e+00> : vector<128x128xf32>
    %82 = tpu.matmul %79, %80, %cst_33 {dimension_numbers = #tpu.dot_dimension_numbers<[1], [1], [0], [0], [0, 0, 1, 0], [], []>} : vector<128x8xbf16>, vector<128x8xbf16>, vector<128x128xf32> -> vector<128x128xf32>
    %83 = math.exp %82 : vector<128x128xf32>
    %84 = arith.mulf %83, %22 : vector<128x128xf32>
    %cst_34 = arith.constant dense<0.000000e+00> : vector<128xf32>
    %85 = vector.multi_reduction <add>, %84, %cst_34 [1] : vector<128x128xf32> to vector<128xf32>
    %86 = vector.shape_cast %85 : vector<128xf32> to vector<128x1xf32>
    %87 = arith.truncf %84 : vector<128x128xf32> to vector<128x128xbf16>
    %cst_35 = arith.constant dense<0.000000e+00> : vector<128x8xf32>
    %88 = tpu.matmul %87, %81, %cst_35 {dimension_numbers = #tpu.dot_dimension_numbers<[1], [0], [0], [1], [0, 0, 1, 1], [], []>} : vector<128x128xbf16>, vector<128x8xbf16>, vector<128x8xf32> -> vector<128x8xf32>
    %89 = tpu.reciprocal %86 {approx = true} : vector<128x1xf32> -> vector<128x1xf32>
    %90 = vector.broadcast %89 : vector<128x1xf32> to vector<128x8xf32>
    %91 = arith.mulf %88, %90 : vector<128x8xf32>
    %c0_36 = arith.constant 0 : index
    %c32 = arith.constant 32 : index
    %92 = vector.load %arg11[%c0_36, %c32] : memref<128x64xf32, #tpu.memory_space<vmem>>, vector<128x8xf32>
    tpu.vector_store %arg11[%c0_36, %c32], %91 {strides = array<i32>} : memref<128x64xf32, #tpu.memory_space<vmem>>, vector<128x8xf32>,
    %93 = vector.extract_strided_slice %15 {offsets = [0, 40], sizes = [128, 8], strides = [1, 1]} : vector<128x192xbf16> to vector<128x8xbf16>
    %94 = vector.extract_strided_slice %15 {offsets = [0, 104], sizes = [128, 8], strides = [1, 1]} : vector<128x192xbf16> to vector<128x8xbf16>
    %95 = vector.extract_strided_slice %15 {offsets = [0, 168], sizes = [128, 8], strides = [1, 1]} : vector<128x192xbf16> to vector<128x8xbf16>
    %cst_37 = arith.constant dense<0.000000e+00> : vector<128x128xf32>
    %96 = tpu.matmul %93, %94, %cst_37 {dimension_numbers = #tpu.dot_dimension_numbers<[1], [1], [0], [0], [0, 0, 1, 0], [], []>} : vector<128x8xbf16>, vector<128x8xbf16>, vector<128x128xf32> -> vector<128x128xf32>
    %97 = math.exp %96 : vector<128x128xf32>
    %98 = arith.mulf %97, %22 : vector<128x128xf32>
    %cst_38 = arith.constant dense<0.000000e+00> : vector<128xf32>
    %99 = vector.multi_reduction <add>, %98, %cst_38 [1] : vector<128x128xf32> to vector<128xf32>
    %100 = vector.shape_cast %99 : vector<128xf32> to vector<128x1xf32>
    %101 = arith.truncf %98 : vector<128x128xf32> to vector<128x128xbf16>
    %cst_39 = arith.constant dense<0.000000e+00> : vector<128x8xf32>
    %102 = tpu.matmul %101, %95, %cst_39 {dimension_numbers = #tpu.dot_dimension_numbers<[1], [0], [0], [1], [0, 0, 1, 1], [], []>} : vector<128x128xbf16>, vector<128x8xbf16>, vector<128x8xf32> -> vector<128x8xf32>
    %103 = tpu.reciprocal %100 {approx = true} : vector<128x1xf32> -> vector<128x1xf32>
    %104 = vector.broadcast %103 : vector<128x1xf32> to vector<128x8xf32>
    %105 = arith.mulf %102, %104 : vector<128x8xf32>
    %c0_40 = arith.constant 0 : index
    %c40 = arith.constant 40 : index
    %106 = vector.load %arg11[%c0_40, %c40] : memref<128x64xf32, #tpu.memory_space<vmem>>, vector<128x8xf32>
    tpu.vector_store %arg11[%c0_40, %c40], %105 {strides = array<i32>} : memref<128x64xf32, #tpu.memory_space<vmem>>, vector<128x8xf32>,
    %107 = vector.extract_strided_slice %15 {offsets = [0, 48], sizes = [128, 8], strides = [1, 1]} : vector<128x192xbf16> to vector<128x8xbf16>
    %108 = vector.extract_strided_slice %15 {offsets = [0, 112], sizes = [128, 8], strides = [1, 1]} : vector<128x192xbf16> to vector<128x8xbf16>
    %109 = vector.extract_strided_slice %15 {offsets = [0, 176], sizes = [128, 8], strides = [1, 1]} : vector<128x192xbf16> to vector<128x8xbf16>
    %cst_41 = arith.constant dense<0.000000e+00> : vector<128x128xf32>
    %110 = tpu.matmul %107, %108, %cst_41 {dimension_numbers = #tpu.dot_dimension_numbers<[1], [1], [0], [0], [0, 0, 1, 0], [], []>} : vector<128x8xbf16>, vector<128x8xbf16>, vector<128x128xf32> -> vector<128x128xf32>
    %111 = math.exp %110 : vector<128x128xf32>
    %112 = arith.mulf %111, %22 : vector<128x128xf32>
    %cst_42 = arith.constant dense<0.000000e+00> : vector<128xf32>
    %113 = vector.multi_reduction <add>, %112, %cst_42 [1] : vector<128x128xf32> to vector<128xf32>
    %114 = vector.shape_cast %113 : vector<128xf32> to vector<128x1xf32>
    %115 = arith.truncf %112 : vector<128x128xf32> to vector<128x128xbf16>
    %cst_43 = arith.constant dense<0.000000e+00> : vector<128x8xf32>
    %116 = tpu.matmul %115, %109, %cst_43 {dimension_numbers = #tpu.dot_dimension_numbers<[1], [0], [0], [1], [0, 0, 1, 1], [], []>} : vector<128x128xbf16>, vector<128x8xbf16>, vector<128x8xf32> -> vector<128x8xf32>
    %117 = tpu.reciprocal %114 {approx = true} : vector<128x1xf32> -> vector<128x1xf32>
    %118 = vector.broadcast %117 : vector<128x1xf32> to vector<128x8xf32>
    %119 = arith.mulf %116, %118 : vector<128x8xf32>
    %c0_44 = arith.constant 0 : index
    %c48 = arith.constant 48 : index
    %120 = vector.load %arg11[%c0_44, %c48] : memref<128x64xf32, #tpu.memory_space<vmem>>, vector<128x8xf32>
    tpu.vector_store %arg11[%c0_44, %c48], %119 {strides = array<i32>} : memref<128x64xf32, #tpu.memory_space<vmem>>, vector<128x8xf32>,
    %121 = vector.extract_strided_slice %15 {offsets = [0, 56], sizes = [128, 8], strides = [1, 1]} : vector<128x192xbf16> to vector<128x8xbf16>
    %122 = vector.extract_strided_slice %15 {offsets = [0, 120], sizes = [128, 8], strides = [1, 1]} : vector<128x192xbf16> to vector<128x8xbf16>
    %123 = vector.extract_strided_slice %15 {offsets = [0, 184], sizes = [128, 8], strides = [1, 1]} : vector<128x192xbf16> to vector<128x8xbf16>
    %cst_45 = arith.constant dense<0.000000e+00> : vector<128x128xf32>
    %124 = tpu.matmul %121, %122, %cst_45 {dimension_numbers = #tpu.dot_dimension_numbers<[1], [1], [0], [0], [0, 0, 1, 0], [], []>} : vector<128x8xbf16>, vector<128x8xbf16>, vector<128x128xf32> -> vector<128x128xf32>
    %125 = math.exp %124 : vector<128x128xf32>
    %126 = arith.mulf %125, %22 : vector<128x128xf32>
    %cst_46 = arith.constant dense<0.000000e+00> : vector<128xf32>
    %127 = vector.multi_reduction <add>, %126, %cst_46 [1] : vector<128x128xf32> to vector<128xf32>
    %128 = vector.shape_cast %127 : vector<128xf32> to vector<128x1xf32>
    %129 = arith.truncf %126 : vector<128x128xf32> to vector<128x128xbf16>
    %cst_47 = arith.constant dense<0.000000e+00> : vector<128x8xf32>
    %130 = tpu.matmul %129, %123, %cst_47 {dimension_numbers = #tpu.dot_dimension_numbers<[1], [0], [0], [1], [0, 0, 1, 1], [], []>} : vector<128x128xbf16>, vector<128x8xbf16>, vector<128x8xf32> -> vector<128x8xf32>
    %131 = tpu.reciprocal %128 {approx = true} : vector<128x1xf32> -> vector<128x1xf32>
    %132 = vector.broadcast %131 : vector<128x1xf32> to vector<128x8xf32>
    %133 = arith.mulf %130, %132 : vector<128x8xf32>
    %c0_48 = arith.constant 0 : index
    %c56 = arith.constant 56 : index
    %134 = vector.load %arg11[%c0_48, %c56] : memref<128x64xf32, #tpu.memory_space<vmem>>, vector<128x8xf32>
    tpu.vector_store %arg11[%c0_48, %c56], %133 {strides = array<i32>} : memref<128x64xf32, #tpu.memory_space<vmem>>, vector<128x8xf32>,
    %c0_49 = arith.constant 0 : index
    %c0_50 = arith.constant 0 : index
    %135 = vector.load %arg11[%c0_49, %c0_50] : memref<128x64xf32, #tpu.memory_space<vmem>>, vector<128x64xf32>
    %136 = arith.truncf %135 : vector<128x64xf32> to vector<128x64xbf16>
    %c0_51 = arith.constant 0 : index
    %c0_52 = arith.constant 0 : index
    %137 = vector.load %arg4[%c0_51, %c0_52] : memref<64x64xbf16, #tpu.memory_space<vmem>>, vector<64x64xbf16>
    %cst_53 = arith.constant dense<0.000000e+00> : vector<128x64xf32>
    %138 = tpu.matmul %136, %137, %cst_53 {dimension_numbers = #tpu.dot_dimension_numbers<[1], [0], [0], [1], [0, 0, 1, 1], [], []>} : vector<128x64xbf16>, vector<64x64xbf16>, vector<128x64xf32> -> vector<128x64xf32>
    %c0_54 = arith.constant 0 : index
    %c0_55 = arith.constant 0 : index
    %139 = vector.load %arg5[%c0_54, %c0_55] : memref<1x64xf32, #tpu.memory_space<vmem>>, vector<1x64xf32>
    %140 = vector.broadcast %139 : vector<1x64xf32> to vector<128x64xf32>
    %141 = arith.addf %138, %140 : vector<128x64xf32>
    %c0_56 = arith.constant 0 : index
    %c0_57 = arith.constant 0 : index
    %142 = vector.load %arg10[%c0_56, %c0_57] : memref<128x64xf32, #tpu.memory_space<vmem>>, vector<128x64xf32>
    tpu.vector_store %arg10[%c0_56, %c0_57], %141 {strides = array<i32>} : memref<128x64xf32, #tpu.memory_space<vmem>>, vector<128x64xf32>,
    return
  }
  func.func @transform_0(%arg0: i32) -> (i32, i32) {
    %c0_i32 = arith.constant 0 : i32
    %c0_i32_0 = arith.constant 0 : i32
    return %arg0, %c0_i32 : i32, i32
  }
  func.func @transform_1(%arg0: i32) -> (i32, i32) {
    %c0_i32 = arith.constant 0 : i32
    %c0_i32_0 = arith.constant 0 : i32
    %c0_i32_1 = arith.constant 0 : i32
    return %c0_i32, %c0_i32_0 : i32, i32
  }
  func.func @transform_2(%arg0: i32) -> (i32, i32) {
    %c0_i32 = arith.constant 0 : i32
    %c0_i32_0 = arith.constant 0 : i32
    %c0_i32_1 = arith.constant 0 : i32
    return %c0_i32, %c0_i32_0 : i32, i32
  }
  func.func @transform_3(%arg0: i32) -> (i32, i32) {
    %c0_i32 = arith.constant 0 : i32
    %c0_i32_0 = arith.constant 0 : i32
    %c0_i32_1 = arith.constant 0 : i32
    return %c0_i32, %c0_i32_0 : i32, i32
  }
  func.func @transform_4(%arg0: i32) -> (i32, i32) {
    %c0_i32 = arith.constant 0 : i32
    %c0_i32_0 = arith.constant 0 : i32
    %c0_i32_1 = arith.constant 0 : i32
    return %c0_i32, %c0_i32_0 : i32, i32
  }
  func.func @transform_5(%arg0: i32) -> (i32, i32) {
    %c0_i32 = arith.constant 0 : i32
    %c0_i32_0 = arith.constant 0 : i32
    %c0_i32_1 = arith.constant 0 : i32
    return %c0_i32, %c0_i32_0 : i32, i32
  }
  func.func @transform_6(%arg0: i32) -> (i32, i32) {
    %c0_i32 = arith.constant 0 : i32
    %c0_i32_0 = arith.constant 0 : i32
    %c0_i32_1 = arith.constant 0 : i32
    return %c0_i32, %c0_i32_0 : i32, i32
  }
  func.func @transform_7(%arg0: i32) -> (i32, i32) {
    %c0_i32 = arith.constant 0 : i32
    %c0_i32_0 = arith.constant 0 : i32
    %c0_i32_1 = arith.constant 0 : i32
    return %c0_i32, %c0_i32_0 : i32, i32
  }
  func.func @transform_8(%arg0: i32) -> (i32, i32) {
    %c0_i32 = arith.constant 0 : i32
    %c0_i32_0 = arith.constant 0 : i32
    %c0_i32_1 = arith.constant 0 : i32
    return %c0_i32, %c0_i32_0 : i32, i32
  }
  func.func @transform_9(%arg0: i32) -> (i32, i32) {
    %c0_i32 = arith.constant 0 : i32
    %c0_i32_0 = arith.constant 0 : i32
    return %arg0, %c0_i32 : i32, i32
  }
}

</mosaic_0001>

<llo_original>
// kernel: tpu_custom_call.1
$region0: #{tpu_custom_call.1}
  #allocation0 [shape = 'u32[]', space=smem, size = 0x4, offset = 0x4, fixed_abs, tag = 'smem constant byte address 0x4 - core index']
  #allocation1 [shape = 'u32[72,128]{1,0:T(1,128)}', space=vmem, size = 0x9000, scoped, tag = 'internal scratch']
  #allocation2 [shape = 'f32[128,64]{1,0:T(8,128)}', space=vmem, size = 0x10000, scoped, tag = 'scratch operand']
  %s0 = inlined_call_operand.vmem [shape: bf16[128,64], index: 0, kind: input, shape index: {}]
  %s1 = inlined_call_operand.vmem [shape: bf16[64,192], index: 1, kind: input, shape index: {}]
  %s2 = inlined_call_operand.vmem [shape: f32[1,192], index: 2, kind: input, shape index: {}]
  %s3 = inlined_call_operand.vmem [shape: bf16[64,64], index: 3, kind: input, shape index: {}]
  %s4 = inlined_call_operand.vmem [shape: f32[1,64], index: 4, kind: input, shape index: {}]
  %s5 = inlined_call_operand.vmem [shape: f32[192,24], index: 5, kind: input, shape index: {}]
  %s6 = inlined_call_operand.vmem [shape: f32[24,192], index: 6, kind: input, shape index: {}]
  %s7 = inlined_call_operand.vmem [shape: f32[128,1], index: 7, kind: input, shape index: {}]
  %s8 = inlined_call_operand.vmem [shape: f32[1,128], index: 8, kind: input, shape index: {}]
  %s9 = inlined_call_operand.vmem [shape: f32[128,64], index: 9, kind: output, shape index: {}]
  %s10 = sld [smem:[#allocation0]]
  $region46: #{tpu_custom_call.1} parent=0
    _
  %s12 = ssub.s32 1, %s10
  %s13 = scalar_select 0, %s12, %s10
  // Predicated region
  $region2: #{tpu_custom_call.1} parent=0 // pred_check
    _
  $region3: #{tpu_custom_call.1} parent=0 // pred_check_branch
    %15 = sbr.rel (0) target = $region5
  $region4: #{tpu_custom_call.1} parent=0 // pred_region
    _
  $region5: #{tpu_custom_call.1} parent=0 // pred_fallthru
    _
  // Predicated region
  $region6: #{tpu_custom_call.1} parent=0 // pred_check
    _
  $region7: #{tpu_custom_call.1} parent=0 // pred_check_branch
    %17 = sbr.rel (0) target = $region9
  $region8: #{tpu_custom_call.1} parent=0 // pred_region
    _
  $region9: #{tpu_custom_call.1} parent=0 // pred_fallthru
    _
  // Predicated region
  $region10: #{tpu_custom_call.1} parent=0 // pred_check
    _
  $region11: #{tpu_custom_call.1} parent=0 // pred_check_branch
    %19 = sbr.rel (0) target = $region13
  $region12: #{tpu_custom_call.1} parent=0 // pred_region
    _
  $region13: #{tpu_custom_call.1} parent=0 // pred_fallthru
    _
  // Predicated region
  $region14: #{tpu_custom_call.1} parent=0 // pred_check
    _
  $region15: #{tpu_custom_call.1} parent=0 // pred_check_branch
    %21 = sbr.rel (0) target = $region17
  $region16: #{tpu_custom_call.1} parent=0 // pred_region
    _
  $region17: #{tpu_custom_call.1} parent=0 // pred_fallthru
    _
  // Predicated region
  $region18: #{tpu_custom_call.1} parent=0 // pred_check
    _
  $region19: #{tpu_custom_call.1} parent=0 // pred_check_branch
    %23 = sbr.rel (0) target = $region21
  $region20: #{tpu_custom_call.1} parent=0 // pred_region
    _
  $region21: #{tpu_custom_call.1} parent=0 // pred_fallthru
    _
  // Predicated region
  $region22: #{tpu_custom_call.1} parent=0 // pred_check
    _
  $region23: #{tpu_custom_call.1} parent=0 // pred_check_branch
    %25 = sbr.rel (0) target = $region25
  $region24: #{tpu_custom_call.1} parent=0 // pred_region
    _
  $region25: #{tpu_custom_call.1} parent=0 // pred_fallthru
    _
  // Predicated region
  $region26: #{tpu_custom_call.1} parent=0 // pred_check
    _
  $region27: #{tpu_custom_call.1} parent=0 // pred_check_branch
    %27 = sbr.rel (0) target = $region29
  $region28: #{tpu_custom_call.1} parent=0 // pred_region
    _
  $region29: #{tpu_custom_call.1} parent=0 // pred_fallthru
    _
  // Predicated region
  $region30: #{tpu_custom_call.1} parent=0 // pred_check
    _
  $region31: #{tpu_custom_call.1} parent=0 // pred_check_branch
    %29 = sbr.rel (0) target = $region33
  $region32: #{tpu_custom_call.1} parent=0 // pred_region
    _
  $region33: #{tpu_custom_call.1} parent=0 // pred_fallthru
    _
  // Predicated region
  $region34: #{tpu_custom_call.1} parent=0 // pred_check
    _
  $region35: #{tpu_custom_call.1} parent=0 // pred_check_branch
    %31 = sbr.rel (0) target = $region37
  $region36: #{tpu_custom_call.1} parent=0 // pred_region
    _
  $region37: #{tpu_custom_call.1} parent=0 // pred_fallthru
    _
  %v33 = vld [vmem:[%s0] sm:$0xf]
  %v34 = vld [vmem:[%s0 + $0x4] sm:$0xf]
  %v35 = vld [vmem:[%s0 + $0x8] sm:$0xf]
  %v36 = vld [vmem:[%s0 + $0xc] sm:$0xf]
  %v37 = vld [vmem:[%s0 + $0x10] sm:$0xf]
  %v38 = vld [vmem:[%s0 + $0x14] sm:$0xf]
  %v39 = vld [vmem:[%s0 + $0x18] sm:$0xf]
  %v40 = vld [vmem:[%s0 + $0x1c] sm:$0xf]
  %v41 = vld [vmem:[%s0 + $0x20] sm:$0xf]
  %v42 = vld [vmem:[%s0 + $0x24] sm:$0xf]
  %v43 = vld [vmem:[%s0 + $0x28] sm:$0xf]
  %v44 = vld [vmem:[%s0 + $0x2c] sm:$0xf]
  %v45 = vld [vmem:[%s0 + $0x30] sm:$0xf]
  %v46 = vld [vmem:[%s0 + $0x34] sm:$0xf]
  %v47 = vld [vmem:[%s0 + $0x38] sm:$0xf]
  %v48 = vld [vmem:[%s0 + $0x3c] sm:$0xf]
  %v49 = vld [vmem:[%s1] sm:$0xff]
  %v50 = vld [vmem:[%s1 + $0x8] sm:$0xff]
  %v51 = vld [vmem:[%s1 + $0x10] sm:$0xff]
  %v52 = vld [vmem:[%s1 + $0x18] sm:$0xff]
  %v53 = vld [vmem:[%s1 + $0x20] sm:$0xff]
  %v54 = vld [vmem:[%s1 + $0x28] sm:$0xff]
  %v55 = vld [vmem:[%s1 + $0x30] sm:$0xff]
  %v56 = vld [vmem:[%s1 + $0x38] sm:$0xff]
  %v57 = vld [vmem:[%s2] sm:$0x3]
  %v59 = vperm.slane %v57, 0
  %v60 = vperm.slane %v57, 1
  %v79 = vunpack.c.l.b16 %v33
  %v80 = vunpack.c.l.b16 %v34
  %v81 = vunpack.c.l.b16 %v35
  %v82 = vunpack.c.l.b16 %v36
  %v83 = vunpack.c.l.b16 %v37
  %v84 = vunpack.c.l.b16 %v38
  %v85 = vunpack.c.l.b16 %v39
  %v86 = vunpack.c.l.b16 %v40
  %v87 = vunpack.c.l.b16 %v41
  %v88 = vunpack.c.l.b16 %v42
  %v89 = vunpack.c.l.b16 %v43
  %v90 = vunpack.c.l.b16 %v44
  %v91 = vunpack.c.l.b16 %v45
  %v92 = vunpack.c.l.b16 %v46
  %v93 = vunpack.c.l.b16 %v47
  %v94 = vunpack.c.l.b16 %v48
  %v95 = vpack.c.b16 %v80, %v79
  %v96 = vpack.c.b16 %v82, %v81
  %v97 = vpack.c.b16 %v84, %v83
  %v98 = vpack.c.b16 %v86, %v85
  %v99 = vpack.c.b16 %v88, %v87
  %v100 = vpack.c.b16 %v90, %v89
  %v101 = vpack.c.b16 %v92, %v91
  %v102 = vpack.c.b16 %v94, %v93
  %v111 = vunpack.c.l.b16 %v49
  %v112 = vunpack.c.h.b16 %v49
  %v113 = vunpack.c.l.b16 %v50
  %v114 = vunpack.c.h.b16 %v50
  %v115 = vunpack.c.l.b16 %v51
  %v116 = vunpack.c.h.b16 %v51
  %v117 = vunpack.c.l.b16 %v52
  %v118 = vunpack.c.h.b16 %v52
  %v119 = vunpack.c.l.b16 %v53
  %v120 = vunpack.c.h.b16 %v53
  %v121 = vunpack.c.l.b16 %v54
  %v122 = vunpack.c.h.b16 %v54
  %v123 = vunpack.c.l.b16 %v55
  %v124 = vunpack.c.h.b16 %v55
  %v125 = vunpack.c.l.b16 %v56
  %v126 = vunpack.c.h.b16 %v56
  %v127 = vpack.c.b16 %v113, %v111
  %v128 = vpack.c.b16 %v114, %v112
  %v129 = vpack.c.b16 %v117, %v115
  %v130 = vpack.c.b16 %v118, %v116
  %v131 = vpack.c.b16 %v121, %v119
  %v132 = vpack.c.b16 %v122, %v120
  %v133 = vpack.c.b16 %v125, %v123
  %v134 = vpack.c.b16 %v126, %v124
  %vm143 = vcmask 523264
  %v145 = vsel %vm143, %v95, 0
  %v148 = vsel %vm143, %v96, 0
  %v151 = vsel %vm143, %v97, 0
  %v154 = vsel %vm143, %v98, 0
  %v157 = vsel %vm143, %v99, 0
  %v160 = vsel %vm143, %v100, 0
  %v163 = vsel %vm143, %v101, 0
  %v166 = vsel %vm143, %v102, 0
  %168 = vmatpush.bf16.msra.mxu0 0
  %169 = vmatpush.bf16.msra.mxu0 0
  %170 = vmatpush.bf16.msra.mxu0 0
  %171 = vmatpush.bf16.msra.mxu0 0
  %172 = vmatpush.bf16.msra.mxu0 %v133
  %173 = vmatpush.bf16.msra.mxu0 %v131
  %174 = vmatpush.bf16.msra.mxu0 %v129
  %175 = vmatpush.bf16.msra.mxu0 %v127
  %176 = vmatmul.bf16.gmra.mxu0 %v145
  %v177 = vpop.f32.mrf.mxu0
  %v178 = vadd.f32 %v59, %v177
  %v179 = vpop.f32.mrf.mxu0
  %v180 = vadd.f32 %v59, %v179
  %181 = vmatmul.bf16.gmra.mxu0 %v148
  %v182 = vpop.f32.mrf.mxu0
  %v183 = vadd.f32 %v59, %v182
  %v184 = vpop.f32.mrf.mxu0
  %v185 = vadd.f32 %v59, %v184
  %186 = vmatmul.bf16.gmra.mxu0 %v151
  %v187 = vpop.f32.mrf.mxu0
  %v188 = vadd.f32 %v59, %v187
  %v189 = vpop.f32.mrf.mxu0
  %v190 = vadd.f32 %v59, %v189
  %191 = vmatmul.bf16.gmra.mxu0 %v154
  %v192 = vpop.f32.mrf.mxu0
  %v193 = vadd.f32 %v59, %v192
  %v194 = vpop.f32.mrf.mxu0
  %v195 = vadd.f32 %v59, %v194
  %196 = vmatmul.bf16.gmra.mxu0 %v157
  %v197 = vpop.f32.mrf.mxu0
  %v198 = vadd.f32 %v59, %v197
  %v199 = vpop.f32.mrf.mxu0
  %v200 = vadd.f32 %v59, %v199
  %201 = vmatmul.bf16.gmra.mxu0 %v160
  %v202 = vpop.f32.mrf.mxu0
  %v203 = vadd.f32 %v59, %v202
  %v204 = vpop.f32.mrf.mxu0
  %v205 = vadd.f32 %v59, %v204
  %206 = vmatmul.bf16.gmra.mxu0 %v163
  %v207 = vpop.f32.mrf.mxu0
  %v208 = vadd.f32 %v59, %v207
  %v209 = vpop.f32.mrf.mxu0
  %v210 = vadd.f32 %v59, %v209
  %211 = vmatmul.bf16.gmra.mxu0 %v166
  %v212 = vpop.f32.mrf.mxu0
  %v213 = vadd.f32 %v59, %v212
  %v214 = vpop.f32.mrf.mxu0
  %v215 = vadd.f32 %v59, %v214
  %216 = vdwg.mxu0
  %217 = vmatpush.bf16.msra.mxu0 0
  %218 = vmatpush.bf16.msra.mxu0 0
  %219 = vmatpush.bf16.msra.mxu0 0
  %220 = vmatpush.bf16.msra.mxu0 0
  %221 = vmatpush.bf16.msra.mxu0 %v134
  %222 = vmatpush.bf16.msra.mxu0 %v132
  %223 = vmatpush.bf16.msra.mxu0 %v130
  %224 = vmatpush.bf16.msra.mxu0 %v128
  %225 = vmatmul.bf16.gmra.mxu0 %v145
  %v226 = vpop.f32.mrf.mxu0
  %v227 = vadd.f32 %v60, %v226
  %v228 = vpop.f32.mrf.mxu0
  %v229 = vadd.f32 %v60, %v228
  %230 = vmatmul.bf16.gmra.mxu0 %v148
  %v231 = vpop.f32.mrf.mxu0
  %v232 = vadd.f32 %v60, %v231
  %v233 = vpop.f32.mrf.mxu0
  %v234 = vadd.f32 %v60, %v233
  %235 = vmatmul.bf16.gmra.mxu0 %v151
  %v236 = vpop.f32.mrf.mxu0
  %v237 = vadd.f32 %v60, %v236
  %v238 = vpop.f32.mrf.mxu0
  %v239 = vadd.f32 %v60, %v238
  %240 = vmatmul.bf16.gmra.mxu0 %v154
  %v241 = vpop.f32.mrf.mxu0
  %v242 = vadd.f32 %v60, %v241
  %v243 = vpop.f32.mrf.mxu0
  %v244 = vadd.f32 %v60, %v243
  %245 = vmatmul.bf16.gmra.mxu0 %v157
  %v246 = vpop.f32.mrf.mxu0
  %v247 = vadd.f32 %v60, %v246
  %v248 = vpop.f32.mrf.mxu0
  %v249 = vadd.f32 %v60, %v248
  %250 = vmatmul.bf16.gmra.mxu0 %v160
  %v251 = vpop.f32.mrf.mxu0
  %v252 = vadd.f32 %v60, %v251
  %v253 = vpop.f32.mrf.mxu0
  %v254 = vadd.f32 %v60, %v253
  %255 = vmatmul.bf16.gmra.mxu0 %v163
  %v256 = vpop.f32.mrf.mxu0
  %v257 = vadd.f32 %v60, %v256
  %v258 = vpop.f32.mrf.mxu0
  %v259 = vadd.f32 %v60, %v258
  %260 = vmatmul.bf16.gmra.mxu0 %v166
  %v261 = vpop.f32.mrf.mxu0
  %v262 = vadd.f32 %v60, %v261
  %v263 = vpop.f32.mrf.mxu0
  %v264 = vadd.f32 %v60, %v263
  %265 = vdwg.mxu0
  %v266 = vmul.f32 %v178, %v178
  %v267 = vmul.f32 %v227, %v227
  %v268 = vmul.f32 %v180, %v180
  %v269 = vmul.f32 %v229, %v229
  %v270 = vmul.f32 %v183, %v183
  %v271 = vmul.f32 %v232, %v232
  %v272 = vmul.f32 %v185, %v185
  %v273 = vmul.f32 %v234, %v234
  %v274 = vmul.f32 %v188, %v188
  %v275 = vmul.f32 %v237, %v237
  %v276 = vmul.f32 %v190, %v190
  %v277 = vmul.f32 %v239, %v239
  %v278 = vmul.f32 %v193, %v193
  %v279 = vmul.f32 %v242, %v242
  %v280 = vmul.f32 %v195, %v195
  %v281 = vmul.f32 %v244, %v244
  %v282 = vmul.f32 %v198, %v198
  %v283 = vmul.f32 %v247, %v247
  %v284 = vmul.f32 %v200, %v200
  %v285 = vmul.f32 %v249, %v249
  %v286 = vmul.f32 %v203, %v203
  %v287 = vmul.f32 %v252, %v252
  %v288 = vmul.f32 %v205, %v205
  %v289 = vmul.f32 %v254, %v254
  %v290 = vmul.f32 %v208, %v208
  %v291 = vmul.f32 %v257, %v257
  %v292 = vmul.f32 %v210, %v210
  %v293 = vmul.f32 %v259, %v259
  %v294 = vmul.f32 %v213, %v213
  %v295 = vmul.f32 %v262, %v262
  %v296 = vmul.f32 %v215, %v215
  %v297 = vmul.f32 %v264, %v264
  %v298 = vld [vmem:[%s5] sm:$0xff]
  %v299 = vld [vmem:[%s5 + $0x8] sm:$0xff]
  %v300 = vld [vmem:[%s5 + $0x10] sm:$0xff]
  %v301 = vld [vmem:[%s5 + $0x18] sm:$0xff]
  %v302 = vld [vmem:[%s5 + $0x20] sm:$0xff]
  %v303 = vld [vmem:[%s5 + $0x28] sm:$0xff]
  %v304 = vld [vmem:[%s5 + $0x30] sm:$0xff]
  %v305 = vld [vmem:[%s5 + $0x38] sm:$0xff]
  %v306 = vld [vmem:[%s5 + $0x40] sm:$0xff]
  %v307 = vld [vmem:[%s5 + $0x48] sm:$0xff]
  %v308 = vld [vmem:[%s5 + $0x50] sm:$0xff]
  %v309 = vld [vmem:[%s5 + $0x58] sm:$0xff]
  %v310 = vld [vmem:[%s5 + $0x60] sm:$0xff]
  %v311 = vld [vmem:[%s5 + $0x68] sm:$0xff]
  %v312 = vld [vmem:[%s5 + $0x70] sm:$0xff]
  %v313 = vld [vmem:[%s5 + $0x78] sm:$0xff]
  %v314 = vld [vmem:[%s5 + $0x80] sm:$0xff]
  %v315 = vld [vmem:[%s5 + $0x88] sm:$0xff]
  %v316 = vld [vmem:[%s5 + $0x90] sm:$0xff]
  %v317 = vld [vmem:[%s5 + $0x98] sm:$0xff]
  %v318 = vld [vmem:[%s5 + $0xa0] sm:$0xff]
  %v319 = vld [vmem:[%s5 + $0xa8] sm:$0xff]
  %v320 = vld [vmem:[%s5 + $0xb0] sm:$0xff]
  %v321 = vld [vmem:[%s5 + $0xb8] sm:$0xff]
  %v323 = vsel %vm143, %v267, 0
  %v326 = vsel %vm143, %v269, 0
  %v329 = vsel %vm143, %v271, 0
  %v332 = vsel %vm143, %v273, 0
  %v335 = vsel %vm143, %v275, 0
  %v338 = vsel %vm143, %v277, 0
  %v341 = vsel %vm143, %v279, 0
  %v344 = vsel %vm143, %v281, 0
  %v347 = vsel %vm143, %v283, 0
  %v350 = vsel %vm143, %v285, 0
  %v353 = vsel %vm143, %v287, 0
  %v356 = vsel %vm143, %v289, 0
  %v359 = vsel %vm143, %v291, 0
  %v362 = vsel %vm143, %v293, 0
  %v365 = vsel %vm143, %v295, 0
  %v368 = vsel %vm143, %v297, 0
  %370 = vmatpush.msra.mxu0 %v313
  %371 = vmatpush.msra.mxu0 %v312
  %372 = vmatpush.msra.mxu0 %v311
  %373 = vmatpush.msra.mxu0 %v310
  %374 = vmatpush.msra.mxu0 %v309
  %375 = vmatpush.msra.mxu0 %v308
  %376 = vmatpush.msra.mxu0 %v307
  %377 = vmatpush.msra.mxu0 %v306
  %378 = vmatpush.msra.mxu0 %v305
  %379 = vmatpush.msra.mxu0 %v304
  %380 = vmatpush.msra.mxu0 %v303
  %381 = vmatpush.msra.mxu0 %v302
  %382 = vmatpush.msra.mxu0 %v301
  %383 = vmatpush.msra.mxu0 %v300
  %384 = vmatpush.msra.mxu0 %v299
  %385 = vmatpush.msra.mxu0 %v298
  %386 = vmatmul.f32.gmra.mxu0 %v266
  %v387 = vpop.f32.mrf.mxu0
  %v388 = vadd.f32 0.0, %v387
  %389 = vmatmul.f32.gmra.mxu0 %v268
  %v390 = vpop.f32.mrf.mxu0
  %v391 = vadd.f32 0.0, %v390
  %392 = vmatmul.f32.gmra.mxu0 %v270
  %v393 = vpop.f32.mrf.mxu0
  %v394 = vadd.f32 0.0, %v393
  %395 = vmatmul.f32.gmra.mxu0 %v272
  %v396 = vpop.f32.mrf.mxu0
  %v397 = vadd.f32 0.0, %v396
  %398 = vmatmul.f32.gmra.mxu0 %v274
  %v399 = vpop.f32.mrf.mxu0
  %v400 = vadd.f32 0.0, %v399
  %401 = vmatmul.f32.gmra.mxu0 %v276
  %v402 = vpop.f32.mrf.mxu0
  %v403 = vadd.f32 0.0, %v402
  %404 = vmatmul.f32.gmra.mxu0 %v278
  %v405 = vpop.f32.mrf.mxu0
  %v406 = vadd.f32 0.0, %v405
  %407 = vmatmul.f32.gmra.mxu0 %v280
  %v408 = vpop.f32.mrf.mxu0
  %v409 = vadd.f32 0.0, %v408
  %410 = vmatmul.f32.gmra.mxu0 %v282
  %v411 = vpop.f32.mrf.mxu0
  %v412 = vadd.f32 0.0, %v411
  %413 = vmatmul.f32.gmra.mxu0 %v284
  %v414 = vpop.f32.mrf.mxu0
  %v415 = vadd.f32 0.0, %v414
  %416 = vmatmul.f32.gmra.mxu0 %v286
  %v417 = vpop.f32.mrf.mxu0
  %v418 = vadd.f32 0.0, %v417
  %419 = vmatmul.f32.gmra.mxu0 %v288
  %v420 = vpop.f32.mrf.mxu0
  %v421 = vadd.f32 0.0, %v420
  %422 = vmatmul.f32.gmra.mxu0 %v290
  %v423 = vpop.f32.mrf.mxu0
  %v424 = vadd.f32 0.0, %v423
  %425 = vmatmul.f32.gmra.mxu0 %v292
  %v426 = vpop.f32.mrf.mxu0
  %v427 = vadd.f32 0.0, %v426
  %428 = vmatmul.f32.gmra.mxu0 %v294
  %v429 = vpop.f32.mrf.mxu0
  %v430 = vadd.f32 0.0, %v429
  %431 = vmatmul.f32.gmra.mxu0 %v296
  %v432 = vpop.f32.mrf.mxu0
  %v433 = vadd.f32 0.0, %v432
  %434 = vdwg.mxu0
  %435 = vmatpush.msra.mxu0 0.0
  %436 = vmatpush.msra.mxu0 0.0
  %437 = vmatpush.msra.mxu0 0.0
  %438 = vmatpush.msra.mxu0 0.0
  %439 = vmatpush.msra.mxu0 0.0
  %440 = vmatpush.msra.mxu0 0.0
  %441 = vmatpush.msra.mxu0 0.0
  %442 = vmatpush.msra.mxu0 0.0
  %443 = vmatpush.msra.mxu0 %v321
  %444 = vmatpush.msra.mxu0 %v320
  %445 = vmatpush.msra.mxu0 %v319
  %446 = vmatpush.msra.mxu0 %v318
  %447 = vmatpush.msra.mxu0 %v317
  %448 = vmatpush.msra.mxu0 %v316
  %449 = vmatpush.msra.mxu0 %v315
  %450 = vmatpush.msra.mxu0 %v314
  %451 = vmatmul.f32.gmra.mxu0 %v323
  %v452 = vpop.f32.mrf.mxu0
  %v453 = vadd.f32 %v388, %v452
  %454 = vmatmul.f32.gmra.mxu0 %v326
  %v455 = vpop.f32.mrf.mxu0
  %v456 = vadd.f32 %v391, %v455
  %457 = vmatmul.f32.gmra.mxu0 %v329
  %v458 = vpop.f32.mrf.mxu0
  %v459 = vadd.f32 %v394, %v458
  %460 = vmatmul.f32.gmra.mxu0 %v332
  %v461 = vpop.f32.mrf.mxu0
  %v462 = vadd.f32 %v397, %v461
  %463 = vmatmul.f32.gmra.mxu0 %v335
  %v464 = vpop.f32.mrf.mxu0
  %v465 = vadd.f32 %v400, %v464
  %466 = vmatmul.f32.gmra.mxu0 %v338
  %v467 = vpop.f32.mrf.mxu0
  %v468 = vadd.f32 %v403, %v467
  %469 = vmatmul.f32.gmra.mxu0 %v341
  %v470 = vpop.f32.mrf.mxu0
  %v471 = vadd.f32 %v406, %v470
  %472 = vmatmul.f32.gmra.mxu0 %v344
  %v473 = vpop.f32.mrf.mxu0
  %v474 = vadd.f32 %v409, %v473
  %475 = vmatmul.f32.gmra.mxu0 %v347
  %v476 = vpop.f32.mrf.mxu0
  %v477 = vadd.f32 %v412, %v476
  %478 = vmatmul.f32.gmra.mxu0 %v350
  %v479 = vpop.f32.mrf.mxu0
  %v480 = vadd.f32 %v415, %v479
  %481 = vmatmul.f32.gmra.mxu0 %v353
  %v482 = vpop.f32.mrf.mxu0
  %v483 = vadd.f32 %v418, %v482
  %484 = vmatmul.f32.gmra.mxu0 %v356
  %v485 = vpop.f32.mrf.mxu0
  %v486 = vadd.f32 %v421, %v485
  %487 = vmatmul.f32.gmra.mxu0 %v359
  %v488 = vpop.f32.mrf.mxu0
  %v489 = vadd.f32 %v424, %v488
  %490 = vmatmul.f32.gmra.mxu0 %v362
  %v491 = vpop.f32.mrf.mxu0
  %v492 = vadd.f32 %v427, %v491
  %493 = vmatmul.f32.gmra.mxu0 %v365
  %v494 = vpop.f32.mrf.mxu0
  %v495 = vadd.f32 %v430, %v494
  %496 = vmatmul.f32.gmra.mxu0 %v368
  %v497 = vpop.f32.mrf.mxu0
  %v498 = vadd.f32 %v433, %v497
  %499 = vdwg.mxu0
  %v500 = vmax.f32 %v453, 1e-24
  %v501 = vmax.f32 %v456, 1e-24
  %v502 = vmax.f32 %v459, 1e-24
  %v503 = vmax.f32 %v462, 1e-24
  %v504 = vmax.f32 %v465, 1e-24
  %v505 = vmax.f32 %v468, 1e-24
  %v506 = vmax.f32 %v471, 1e-24
  %v507 = vmax.f32 %v474, 1e-24
  %v508 = vmax.f32 %v477, 1e-24
  %v509 = vmax.f32 %v480, 1e-24
  %v510 = vmax.f32 %v483, 1e-24
  %v511 = vmax.f32 %v486, 1e-24
  %v512 = vmax.f32 %v489, 1e-24
  %v513 = vmax.f32 %v492, 1e-24
  %v514 = vmax.f32 %v495, 1e-24
  %v515 = vmax.f32 %v498, 1e-24
  %v516 = vrsqrt.pop %v500
  %v517 = vmul.f32 %v516, %v500
  %v518 = vmul.f32 %v517, %v516
  %v519 = vmul.f32 0.5, %v518
  %v520 = vsub.f32 1.5, %v519
  %v521 = vmul.f32 %v516, %v520
  %vm522 = vweird.f32 %v500
  %vm523 = vweird.f32 %v516
  %vm524 = vmor %vm522, %vm523
  %v525 = vsel %vm524, %v516, %v521
  %v526 = vrsqrt.pop %v501
  %v527 = vmul.f32 %v526, %v501
  %v528 = vmul.f32 %v527, %v526
  %v529 = vmul.f32 0.5, %v528
  %v530 = vsub.f32 1.5, %v529
  %v531 = vmul.f32 %v526, %v530
  %vm532 = vweird.f32 %v501
  %vm533 = vweird.f32 %v526
  %vm534 = vmor %vm532, %vm533
  %v535 = vsel %vm534, %v526, %v531
  %v536 = vrsqrt.pop %v502
  %v537 = vmul.f32 %v536, %v502
  %v538 = vmul.f32 %v537, %v536
  %v539 = vmul.f32 0.5, %v538
  %v540 = vsub.f32 1.5, %v539
  %v541 = vmul.f32 %v536, %v540
  %vm542 = vweird.f32 %v502
  %vm543 = vweird.f32 %v536
  %vm544 = vmor %vm542, %vm543
  %v545 = vsel %vm544, %v536, %v541
  %v546 = vrsqrt.pop %v503
  %v547 = vmul.f32 %v546, %v503
  %v548 = vmul.f32 %v547, %v546
  %v549 = vmul.f32 0.5, %v548
  %v550 = vsub.f32 1.5, %v549
  %v551 = vmul.f32 %v546, %v550
  %vm552 = vweird.f32 %v503
  %vm553 = vweird.f32 %v546
  %vm554 = vmor %vm552, %vm553
  %v555 = vsel %vm554, %v546, %v551
  %v556 = vrsqrt.pop %v504
  %v557 = vmul.f32 %v556, %v504
  %v558 = vmul.f32 %v557, %v556
  %v559 = vmul.f32 0.5, %v558
  %v560 = vsub.f32 1.5, %v559
  %v561 = vmul.f32 %v556, %v560
  %vm562 = vweird.f32 %v504
  %vm563 = vweird.f32 %v556
  %vm564 = vmor %vm562, %vm563
  %v565 = vsel %vm564, %v556, %v561
  %v566 = vrsqrt.pop %v505
  %v567 = vmul.f32 %v566, %v505
  %v568 = vmul.f32 %v567, %v566
  %v569 = vmul.f32 0.5, %v568
  %v570 = vsub.f32 1.5, %v569
  %v571 = vmul.f32 %v566, %v570
  %vm572 = vweird.f32 %v505
  %vm573 = vweird.f32 %v566
  %vm574 = vmor %vm572, %vm573
  %v575 = vsel %vm574, %v566, %v571
  %v576 = vrsqrt.pop %v506
  %v577 = vmul.f32 %v576, %v506
  %v578 = vmul.f32 %v577, %v576
  %v579 = vmul.f32 0.5, %v578
  %v580 = vsub.f32 1.5, %v579
  %v581 = vmul.f32 %v576, %v580
  %vm582 = vweird.f32 %v506
  %vm583 = vweird.f32 %v576
  %vm584 = vmor %vm582, %vm583
  %v585 = vsel %vm584, %v576, %v581
  %v586 = vrsqrt.pop %v507
  %v587 = vmul.f32 %v586, %v507
  %v588 = vmul.f32 %v587, %v586
  %v589 = vmul.f32 0.5, %v588
  %v590 = vsub.f32 1.5, %v589
  %v591 = vmul.f32 %v586, %v590
  %vm592 = vweird.f32 %v507
  %vm593 = vweird.f32 %v586
  %vm594 = vmor %vm592, %vm593
  %v595 = vsel %vm594, %v586, %v591
  %v596 = vrsqrt.pop %v508
  %v597 = vmul.f32 %v596, %v508
  %v598 = vmul.f32 %v597, %v596
  %v599 = vmul.f32 0.5, %v598
  %v600 = vsub.f32 1.5, %v599
  %v601 = vmul.f32 %v596, %v600
  %vm602 = vweird.f32 %v508
  %vm603 = vweird.f32 %v596
  %vm604 = vmor %vm602, %vm603
  %v605 = vsel %vm604, %v596, %v601
  %v606 = vrsqrt.pop %v509
  %v607 = vmul.f32 %v606, %v509
  %v608 = vmul.f32 %v607, %v606
  %v609 = vmul.f32 0.5, %v608
  %v610 = vsub.f32 1.5, %v609
  %v611 = vmul.f32 %v606, %v610
  %vm612 = vweird.f32 %v509
  %vm613 = vweird.f32 %v606
  %vm614 = vmor %vm612, %vm613
  %v615 = vsel %vm614, %v606, %v611
  %v616 = vrsqrt.pop %v510
  %v617 = vmul.f32 %v616, %v510
  %v618 = vmul.f32 %v617, %v616
  %v619 = vmul.f32 0.5, %v618
  %v620 = vsub.f32 1.5, %v619
  %v621 = vmul.f32 %v616, %v620
  %vm622 = vweird.f32 %v510
  %vm623 = vweird.f32 %v616
  %vm624 = vmor %vm622, %vm623
  %v625 = vsel %vm624, %v616, %v621
  %v626 = vrsqrt.pop %v511
  %v627 = vmul.f32 %v626, %v511
  %v628 = vmul.f32 %v627, %v626
  %v629 = vmul.f32 0.5, %v628
  %v630 = vsub.f32 1.5, %v629
  %v631 = vmul.f32 %v626, %v630
  %vm632 = vweird.f32 %v511
  %vm633 = vweird.f32 %v626
  %vm634 = vmor %vm632, %vm633
  %v635 = vsel %vm634, %v626, %v631
  %v636 = vrsqrt.pop %v512
  %v637 = vmul.f32 %v636, %v512
  %v638 = vmul.f32 %v637, %v636
  %v639 = vmul.f32 0.5, %v638
  %v640 = vsub.f32 1.5, %v639
  %v641 = vmul.f32 %v636, %v640
  %vm642 = vweird.f32 %v512
  %vm643 = vweird.f32 %v636
  %vm644 = vmor %vm642, %vm643
  %v645 = vsel %vm644, %v636, %v641
  %v646 = vrsqrt.pop %v513
  %v647 = vmul.f32 %v646, %v513
  %v648 = vmul.f32 %v647, %v646
  %v649 = vmul.f32 0.5, %v648
  %v650 = vsub.f32 1.5, %v649
  %v651 = vmul.f32 %v646, %v650
  %vm652 = vweird.f32 %v513
  %vm653 = vweird.f32 %v646
  %vm654 = vmor %vm652, %vm653
  %v655 = vsel %vm654, %v646, %v651
  %v656 = vrsqrt.pop %v514
  %v657 = vmul.f32 %v656, %v514
  %v658 = vmul.f32 %v657, %v656
  %v659 = vmul.f32 0.5, %v658
  %v660 = vsub.f32 1.5, %v659
  %v661 = vmul.f32 %v656, %v660
  %vm662 = vweird.f32 %v514
  %vm663 = vweird.f32 %v656
  %vm664 = vmor %vm662, %vm663
  %v665 = vsel %vm664, %v656, %v661
  %v666 = vrsqrt.pop %v515
  %v667 = vmul.f32 %v666, %v515
  %v668 = vmul.f32 %v667, %v666
  %v669 = vmul.f32 0.5, %v668
  %v670 = vsub.f32 1.5, %v669
  %v671 = vmul.f32 %v666, %v670
  %vm672 = vweird.f32 %v515
  %vm673 = vweird.f32 %v666
  %vm674 = vmor %vm672, %vm673
  %v675 = vsel %vm674, %v666, %v671
  %v676 = vld [vmem:[%s6] sm:$0xff]
  %v677 = vld [vmem:[%s6 + $0x8] sm:$0xff]
  %v678 = vld [vmem:[%s6 + $0x10] sm:$0xff]
  %v679 = vld [vmem:[%s6 + $0x18] sm:$0xff]
  %v680 = vld [vmem:[%s6 + $0x20] sm:$0xff]
  %v681 = vld [vmem:[%s6 + $0x28] sm:$0xff]
  %vm682 = vcmask 195584
  %v684 = vsel %vm682, %v525, 0
  %v687 = vsel %vm682, %v535, 0
  %v690 = vsel %vm682, %v545, 0
  %v693 = vsel %vm682, %v555, 0
  %v696 = vsel %vm682, %v565, 0
  %v699 = vsel %vm682, %v575, 0
  %v702 = vsel %vm682, %v585, 0
  %v705 = vsel %vm682, %v595, 0
  %v708 = vsel %vm682, %v605, 0
  %v711 = vsel %vm682, %v615, 0
  %v714 = vsel %vm682, %v625, 0
  %v717 = vsel %vm682, %v635, 0
  %v720 = vsel %vm682, %v645, 0
  %v723 = vsel %vm682, %v655, 0
  %v726 = vsel %vm682, %v665, 0
  %v729 = vsel %vm682, %v675, 0
  %731 = vmatpush.msra.mxu0 0.0
  %732 = vmatpush.msra.mxu0 0.0
  %733 = vmatpush.msra.mxu0 0.0
  %734 = vmatpush.msra.mxu0 0.0
  %735 = vmatpush.msra.mxu0 0.0
  %736 = vmatpush.msra.mxu0 0.0
  %737 = vmatpush.msra.mxu0 0.0
  %738 = vmatpush.msra.mxu0 0.0
  %739 = vmatpush.msra.mxu0 0.0
  %740 = vmatpush.msra.mxu0 0.0
  %741 = vmatpush.msra.mxu0 0.0
  %742 = vmatpush.msra.mxu0 0.0
  %743 = vmatpush.msra.mxu0 0.0
  %744 = vmatpush.msra.mxu0 %v680
  %745 = vmatpush.msra.mxu0 %v678
  %746 = vmatpush.msra.mxu0 %v676
  %747 = vmatmul.f32.gmra.mxu0 %v684
  %v748 = vpop.f32.mrf.mxu0
  %v749 = vadd.f32 0.0, %v748
  %750 = vmatmul.f32.gmra.mxu0 %v687
  %v751 = vpop.f32.mrf.mxu0
  %v752 = vadd.f32 0.0, %v751
  %753 = vmatmul.f32.gmra.mxu0 %v690
  %v754 = vpop.f32.mrf.mxu0
  %v755 = vadd.f32 0.0, %v754
  %756 = vmatmul.f32.gmra.mxu0 %v693
  %v757 = vpop.f32.mrf.mxu0
  %v758 = vadd.f32 0.0, %v757
  %759 = vmatmul.f32.gmra.mxu0 %v696
  %v760 = vpop.f32.mrf.mxu0
  %v761 = vadd.f32 0.0, %v760
  %762 = vmatmul.f32.gmra.mxu0 %v699
  %v763 = vpop.f32.mrf.mxu0
  %v764 = vadd.f32 0.0, %v763
  %765 = vmatmul.f32.gmra.mxu0 %v702
  %v766 = vpop.f32.mrf.mxu0
  %v767 = vadd.f32 0.0, %v766
  %768 = vmatmul.f32.gmra.mxu0 %v705
  %v769 = vpop.f32.mrf.mxu0
  %v770 = vadd.f32 0.0, %v769
  %771 = vmatmul.f32.gmra.mxu0 %v708
  %v772 = vpop.f32.mrf.mxu0
  %v773 = vadd.f32 0.0, %v772
  %774 = vmatmul.f32.gmra.mxu0 %v711
  %v775 = vpop.f32.mrf.mxu0
  %v776 = vadd.f32 0.0, %v775
  %777 = vmatmul.f32.gmra.mxu0 %v714
  %v778 = vpop.f32.mrf.mxu0
  %v779 = vadd.f32 0.0, %v778
  %780 = vmatmul.f32.gmra.mxu0 %v717
  %v781 = vpop.f32.mrf.mxu0
  %v782 = vadd.f32 0.0, %v781
  %783 = vmatmul.f32.gmra.mxu0 %v720
  %v784 = vpop.f32.mrf.mxu0
  %v785 = vadd.f32 0.0, %v784
  %786 = vmatmul.f32.gmra.mxu0 %v723
  %v787 = vpop.f32.mrf.mxu0
  %v788 = vadd.f32 0.0, %v787
  %789 = vmatmul.f32.gmra.mxu0 %v726
  %v790 = vpop.f32.mrf.mxu0
  %v791 = vadd.f32 0.0, %v790
  %792 = vmatmul.f32.gmra.mxu0 %v729
  %v793 = vpop.f32.mrf.mxu0
  %v794 = vadd.f32 0.0, %v793
  %795 = vdwg.mxu0
  %796 = vmatpush.msra.mxu0 0.0
  %797 = vmatpush.msra.mxu0 0.0
  %798 = vmatpush.msra.mxu0 0.0
  %799 = vmatpush.msra.mxu0 0.0
  %800 = vmatpush.msra.mxu0 0.0
  %801 = vmatpush.msra.mxu0 0.0
  %802 = vmatpush.msra.mxu0 0.0
  %803 = vmatpush.msra.mxu0 0.0
  %804 = vmatpush.msra.mxu0 0.0
  %805 = vmatpush.msra.mxu0 0.0
  %806 = vmatpush.msra.mxu0 0.0
  %807 = vmatpush.msra.mxu0 0.0
  %808 = vmatpush.msra.mxu0 0.0
  %809 = vmatpush.msra.mxu0 %v681
  %810 = vmatpush.msra.mxu0 %v679
  %811 = vmatpush.msra.mxu0 %v677
  %812 = vmatmul.f32.gmra.mxu0 %v684
  %v813 = vpop.f32.mrf.mxu0
  %v814 = vadd.f32 0.0, %v813
  %815 = vmatmul.f32.gmra.mxu0 %v687
  %v816 = vpop.f32.mrf.mxu0
  %v817 = vadd.f32 0.0, %v816
  %818 = vmatmul.f32.gmra.mxu0 %v690
  %v819 = vpop.f32.mrf.mxu0
  %v820 = vadd.f32 0.0, %v819
  %821 = vmatmul.f32.gmra.mxu0 %v693
  %v822 = vpop.f32.mrf.mxu0
  %v823 = vadd.f32 0.0, %v822
  %824 = vmatmul.f32.gmra.mxu0 %v696
  %v825 = vpop.f32.mrf.mxu0
  %v826 = vadd.f32 0.0, %v825
  %827 = vmatmul.f32.gmra.mxu0 %v699
  %v828 = vpop.f32.mrf.mxu0
  %v829 = vadd.f32 0.0, %v828
  %830 = vmatmul.f32.gmra.mxu0 %v702
  %v831 = vpop.f32.mrf.mxu0
  %v832 = vadd.f32 0.0, %v831
  %833 = vmatmul.f32.gmra.mxu0 %v705
  %v834 = vpop.f32.mrf.mxu0
  %v835 = vadd.f32 0.0, %v834
  %836 = vmatmul.f32.gmra.mxu0 %v708
  %v837 = vpop.f32.mrf.mxu0
  %v838 = vadd.f32 0.0, %v837
  %839 = vmatmul.f32.gmra.mxu0 %v711
  %v840 = vpop.f32.mrf.mxu0
  %v841 = vadd.f32 0.0, %v840
  %842 = vmatmul.f32.gmra.mxu0 %v714
  %v843 = vpop.f32.mrf.mxu0
  %v844 = vadd.f32 0.0, %v843
  %845 = vmatmul.f32.gmra.mxu0 %v717
  %v846 = vpop.f32.mrf.mxu0
  %v847 = vadd.f32 0.0, %v846
  %848 = vmatmul.f32.gmra.mxu0 %v720
  %v849 = vpop.f32.mrf.mxu0
  %v850 = vadd.f32 0.0, %v849
  %851 = vmatmul.f32.gmra.mxu0 %v723
  %v852 = vpop.f32.mrf.mxu0
  %v853 = vadd.f32 0.0, %v852
  %854 = vmatmul.f32.gmra.mxu0 %v726
  %v855 = vpop.f32.mrf.mxu0
  %v856 = vadd.f32 0.0, %v855
  %857 = vmatmul.f32.gmra.mxu0 %v729
  %v858 = vpop.f32.mrf.mxu0
  %v859 = vadd.f32 0.0, %v858
  %860 = vdwg.mxu0
  %v861 = vmul.f32 %v178, %v749
  %v862 = vmul.f32 %v227, %v814
  %v863 = vmul.f32 %v180, %v752
  %v864 = vmul.f32 %v229, %v817
  %v865 = vmul.f32 %v183, %v755
  %v866 = vmul.f32 %v232, %v820
  %v867 = vmul.f32 %v185, %v758
  %v868 = vmul.f32 %v234, %v823
  %v869 = vmul.f32 %v188, %v761
  %v870 = vmul.f32 %v237, %v826
  %v871 = vmul.f32 %v190, %v764
  %v872 = vmul.f32 %v239, %v829
  %v873 = vmul.f32 %v193, %v767
  %v874 = vmul.f32 %v242, %v832
  %v875 = vmul.f32 %v195, %v770
  %v876 = vmul.f32 %v244, %v835
  %v877 = vmul.f32 %v198, %v773
  %v878 = vmul.f32 %v247, %v838
  %v879 = vmul.f32 %v200, %v776
  %v880 = vmul.f32 %v249, %v841
  %v881 = vmul.f32 %v203, %v779
  %v882 = vmul.f32 %v252, %v844
  %v883 = vmul.f32 %v205, %v782
  %v884 = vmul.f32 %v254, %v847
  %v885 = vmul.f32 %v208, %v785
  %v886 = vmul.f32 %v257, %v850
  %v887 = vmul.f32 %v210, %v788
  %v888 = vmul.f32 %v259, %v853
  %v889 = vmul.f32 %v213, %v791
  %v890 = vmul.f32 %v262, %v856
  %v891 = vmul.f32 %v215, %v794
  %v892 = vmul.f32 %v264, %v859
  %v893 = vpack.c.bf16 %v862, %v861
  %v894 = vpack.c.bf16 %v864, %v863
  %v895 = vpack.c.bf16 %v866, %v865
  %v896 = vpack.c.bf16 %v868, %v867
  %v897 = vpack.c.bf16 %v870, %v869
  %v898 = vpack.c.bf16 %v872, %v871
  %v899 = vpack.c.bf16 %v874, %v873
  %v900 = vpack.c.bf16 %v876, %v875
  %v901 = vpack.c.bf16 %v878, %v877
  %v902 = vpack.c.bf16 %v880, %v879
  %v903 = vpack.c.bf16 %v882, %v881
  %v904 = vpack.c.bf16 %v884, %v883
  %v905 = vpack.c.bf16 %v886, %v885
  %v906 = vpack.c.bf16 %v888, %v887
  %v907 = vpack.c.bf16 %v890, %v889
  %v908 = vpack.c.bf16 %v892, %v891
  %v909 = vld [vmem:[%s7] sm:$0xff]
  %v910 = vld [vmem:[%s7 + $0x8] sm:$0xff]
  %v911 = vld [vmem:[%s7 + $0x10] sm:$0xff]
  %v912 = vld [vmem:[%s7 + $0x18] sm:$0xff]
  %v913 = vld [vmem:[%s7 + $0x20] sm:$0xff]
  %v914 = vld [vmem:[%s7 + $0x28] sm:$0xff]
  %v915 = vld [vmem:[%s7 + $0x30] sm:$0xff]
  %v916 = vld [vmem:[%s7 + $0x38] sm:$0xff]
  %v917 = vld [vmem:[%s7 + $0x40] sm:$0xff]
  %v918 = vld [vmem:[%s7 + $0x48] sm:$0xff]
  %v919 = vld [vmem:[%s7 + $0x50] sm:$0xff]
  %v920 = vld [vmem:[%s7 + $0x58] sm:$0xff]
  %v921 = vld [vmem:[%s7 + $0x60] sm:$0xff]
  %v922 = vld [vmem:[%s7 + $0x68] sm:$0xff]
  %v923 = vld [vmem:[%s7 + $0x70] sm:$0xff]
  %v924 = vld [vmem:[%s7 + $0x78] sm:$0xff]
  %v925 = vld [vmem:[%s8] sm:$0x1]
  %927 = vset.pattern.permute.xlu0 0
  %928 = vperm.xlu0 %927, %v909
  %v929 = vpop.permute.xlu0 %928
  %932 = vset.pattern.permute.xlu0 0
  %933 = vperm.xlu0 %932, %v910
  %v934 = vpop.permute.xlu0 %933
  %937 = vset.pattern.permute.xlu0 0
  %938 = vperm.xlu0 %937, %v911
  %v939 = vpop.permute.xlu0 %938
  %942 = vset.pattern.permute.xlu0 0
  %943 = vperm.xlu0 %942, %v912
  %v944 = vpop.permute.xlu0 %943
  %947 = vset.pattern.permute.xlu0 0
  %948 = vperm.xlu0 %947, %v913
  %v949 = vpop.permute.xlu0 %948
  %952 = vset.pattern.permute.xlu0 0
  %953 = vperm.xlu0 %952, %v914
  %v954 = vpop.permute.xlu0 %953
  %957 = vset.pattern.permute.xlu0 0
  %958 = vperm.xlu0 %957, %v915
  %v959 = vpop.permute.xlu0 %958
  %962 = vset.pattern.permute.xlu0 0
  %963 = vperm.xlu0 %962, %v916
  %v964 = vpop.permute.xlu0 %963
  %967 = vset.pattern.permute.xlu0 0
  %968 = vperm.xlu0 %967, %v917
  %v969 = vpop.permute.xlu0 %968
  %972 = vset.pattern.permute.xlu0 0
  %973 = vperm.xlu0 %972, %v918
  %v974 = vpop.permute.xlu0 %973
  %977 = vset.pattern.permute.xlu0 0
  %978 = vperm.xlu0 %977, %v919
  %v979 = vpop.permute.xlu0 %978
  %982 = vset.pattern.permute.xlu0 0
  %983 = vperm.xlu0 %982, %v920
  %v984 = vpop.permute.xlu0 %983
  %987 = vset.pattern.permute.xlu0 0
  %988 = vperm.xlu0 %987, %v921
  %v989 = vpop.permute.xlu0 %988
  %992 = vset.pattern.permute.xlu0 0
  %993 = vperm.xlu0 %992, %v922
  %v994 = vpop.permute.xlu0 %993
  %997 = vset.pattern.permute.xlu0 0
  %998 = vperm.xlu0 %997, %v923
  %v999 = vpop.permute.xlu0 %998
  %1002 = vset.pattern.permute.xlu0 0
  %1003 = vperm.xlu0 %1002, %v924
  %v1004 = vpop.permute.xlu0 %1003
  %v1007 = vperm.slane %v925, 0
  %vm1009 = vcmp.eq.f32.partialorder %v929, %v1007
  %vm1010 = vcmp.eq.f32.partialorder %v934, %v1007
  %vm1011 = vcmp.eq.f32.partialorder %v939, %v1007
  %vm1012 = vcmp.eq.f32.partialorder %v944, %v1007
  %vm1013 = vcmp.eq.f32.partialorder %v949, %v1007
  %vm1014 = vcmp.eq.f32.partialorder %v954, %v1007
  %vm1015 = vcmp.eq.f32.partialorder %v959, %v1007
  %vm1016 = vcmp.eq.f32.partialorder %v964, %v1007
  %vm1017 = vcmp.eq.f32.partialorder %v969, %v1007
  %vm1018 = vcmp.eq.f32.partialorder %v974, %v1007
  %vm1019 = vcmp.eq.f32.partialorder %v979, %v1007
  %vm1020 = vcmp.eq.f32.partialorder %v984, %v1007
  %vm1021 = vcmp.eq.f32.partialorder %v989, %v1007
  %vm1022 = vcmp.eq.f32.partialorder %v994, %v1007
  %vm1023 = vcmp.eq.f32.partialorder %v999, %v1007
  %vm1024 = vcmp.eq.f32.partialorder %v1004, %v1007
  %v1025 = vsel %vm1009, 1, 0
  %v1026 = vsel %vm1010, 1, 0
  %v1027 = vsel %vm1011, 1, 0
  %v1028 = vsel %vm1012, 1, 0
  %v1029 = vsel %vm1013, 1, 0
  %v1030 = vsel %vm1014, 1, 0
  %v1031 = vsel %vm1015, 1, 0
  %v1032 = vsel %vm1016, 1, 0
  %v1033 = vsel %vm1017, 1, 0
  %v1034 = vsel %vm1018, 1, 0
  %v1035 = vsel %vm1019, 1, 0
  %v1036 = vsel %vm1020, 1, 0
  %v1037 = vsel %vm1021, 1, 0
  %v1038 = vsel %vm1022, 1, 0
  %v1039 = vsel %vm1023, 1, 0
  %v1040 = vsel %vm1024, 1, 0
  %v1041 = vcvt.s32.f32 %v1025
  %v1042 = vcvt.s32.f32 %v1026
  %v1043 = vcvt.s32.f32 %v1027
  %v1044 = vcvt.s32.f32 %v1028
  %v1045 = vcvt.s32.f32 %v1029
  %v1046 = vcvt.s32.f32 %v1030
  %v1047 = vcvt.s32.f32 %v1031
  %v1048 = vcvt.s32.f32 %v1032
  %v1049 = vcvt.s32.f32 %v1033
  %v1050 = vcvt.s32.f32 %v1034
  %v1051 = vcvt.s32.f32 %v1035
  %v1052 = vcvt.s32.f32 %v1036
  %v1053 = vcvt.s32.f32 %v1037
  %v1054 = vcvt.s32.f32 %v1038
  %v1055 = vcvt.s32.f32 %v1039
  %v1056 = vcvt.s32.f32 %v1040
  %v1073 = vunpack.c.l.b16 %v893
  %v1074 = vunpack.c.l.b16 %v894
  %v1075 = vunpack.c.l.b16 %v895
  %v1076 = vunpack.c.l.b16 %v896
  %v1077 = vunpack.c.l.b16 %v897
  %v1078 = vunpack.c.l.b16 %v898
  %v1079 = vunpack.c.l.b16 %v899
  %v1080 = vunpack.c.l.b16 %v900
  %v1081 = vunpack.c.l.b16 %v901
  %v1082 = vunpack.c.l.b16 %v902
  %v1083 = vunpack.c.l.b16 %v903
  %v1084 = vunpack.c.l.b16 %v904
  %v1085 = vunpack.c.l.b16 %v905
  %v1086 = vunpack.c.l.b16 %v906
  %v1087 = vunpack.c.l.b16 %v907
  %v1088 = vunpack.c.l.b16 %v908
  %v1089 = vpack.c.b16 %v1074, %v1073
  %v1090 = vpack.c.b16 %v1076, %v1075
  %v1091 = vpack.c.b16 %v1078, %v1077
  %v1092 = vpack.c.b16 %v1080, %v1079
  %v1093 = vpack.c.b16 %v1082, %v1081
  %v1094 = vpack.c.b16 %v1084, %v1083
  %v1095 = vpack.c.b16 %v1086, %v1085
  %v1096 = vpack.c.b16 %v1088, %v1087
  %1097 = vrot.lane.b32.xlu0 %v1089, 64
  %v1098 = vpop.permute.xlu0 %1097
  %1099 = vrot.lane.b32.xlu0 %v1090, 64
  %v1100 = vpop.permute.xlu0 %1099
  %1101 = vrot.lane.b32.xlu0 %v1091, 64
  %v1102 = vpop.permute.xlu0 %1101
  %1103 = vrot.lane.b32.xlu0 %v1092, 64
  %v1104 = vpop.permute.xlu0 %1103
  %1105 = vrot.lane.b32.xlu0 %v1093, 64
  %v1106 = vpop.permute.xlu0 %1105
  %1107 = vrot.lane.b32.xlu0 %v1094, 64
  %v1108 = vpop.permute.xlu0 %1107
  %1109 = vrot.lane.b32.xlu0 %v1095, 64
  %v1110 = vpop.permute.xlu0 %1109
  %1111 = vrot.lane.b32.xlu0 %v1096, 64
  %v1112 = vpop.permute.xlu0 %1111
  %vm1113 = vcmask 64512
  %v1115 = vsel %vm1113, %v1089, 0
  %v1118 = vsel %vm1113, %v1090, 0
  %v1121 = vsel %vm1113, %v1091, 0
  %v1124 = vsel %vm1113, %v1092, 0
  %v1127 = vsel %vm1113, %v1093, 0
  %v1130 = vsel %vm1113, %v1094, 0
  %v1133 = vsel %vm1113, %v1095, 0
  %v1136 = vsel %vm1113, %v1096, 0
  %v1139 = vsel %vm1113, %v1098, 0
  %v1142 = vsel %vm1113, %v1100, 0
  %v1145 = vsel %vm1113, %v1102, 0
  %v1148 = vsel %vm1113, %v1104, 0
  %v1151 = vsel %vm1113, %v1106, 0
  %v1154 = vsel %vm1113, %v1108, 0
  %v1157 = vsel %vm1113, %v1110, 0
  %v1160 = vsel %vm1113, %v1112, 0
  %1162 = vmatpush.bf16.xpose.msra.mxu0 %v1160
  %1163 = vmatpush.bf16.xpose.msra.mxu0 %v1157
  %1164 = vmatpush.bf16.xpose.msra.mxu0 %v1154
  %1165 = vmatpush.bf16.xpose.msra.mxu0 %v1151
  %1166 = vmatpush.bf16.xpose.msra.mxu0 %v1148
  %1167 = vmatpush.bf16.xpose.msra.mxu0 %v1145
  %1168 = vmatpush.bf16.xpose.msra.mxu0 %v1142
  %1169 = vmatpush.bf16.xpose.msra.mxu0 %v1139
  %1170 = vmatmul.bf16.gmra.mxu0 %v1115
  %v1171 = vpop.f32.mrf.mxu0
  %v1172 = vadd.f32 0.0, %v1171
  %v1173 = vpop.f32.mrf.mxu0
  %v1174 = vadd.f32 0.0, %v1173
  %1175 = vmatmul.bf16.gmra.mxu0 %v1118
  %v1176 = vpop.f32.mrf.mxu0
  %v1177 = vadd.f32 0.0, %v1176
  %v1178 = vpop.f32.mrf.mxu0
  %v1179 = vadd.f32 0.0, %v1178
  %1180 = vmatmul.bf16.gmra.mxu0 %v1121
  %v1181 = vpop.f32.mrf.mxu0
  %v1182 = vadd.f32 0.0, %v1181
  %v1183 = vpop.f32.mrf.mxu0
  %v1184 = vadd.f32 0.0, %v1183
  %1185 = vmatmul.bf16.gmra.mxu0 %v1124
  %v1186 = vpop.f32.mrf.mxu0
  %v1187 = vadd.f32 0.0, %v1186
  %v1188 = vpop.f32.mrf.mxu0
  %v1189 = vadd.f32 0.0, %v1188
  %1190 = vmatmul.bf16.gmra.mxu0 %v1127
  %v1191 = vpop.f32.mrf.mxu0
  %v1192 = vadd.f32 0.0, %v1191
  %v1193 = vpop.f32.mrf.mxu0
  %v1194 = vadd.f32 0.0, %v1193
  %1195 = vmatmul.bf16.gmra.mxu0 %v1130
  %v1196 = vpop.f32.mrf.mxu0
  %v1197 = vadd.f32 0.0, %v1196
  %v1198 = vpop.f32.mrf.mxu0
  %v1199 = vadd.f32 0.0, %v1198
  %1200 = vmatmul.bf16.gmra.mxu0 %v1133
  %v1201 = vpop.f32.mrf.mxu0
  %v1202 = vadd.f32 0.0, %v1201
  %v1203 = vpop.f32.mrf.mxu0
  %v1204 = vadd.f32 0.0, %v1203
  %1205 = vmatmul.bf16.gmra.mxu0 %v1136
  %v1206 = vpop.f32.mrf.mxu0
  %v1207 = vadd.f32 0.0, %v1206
  %v1208 = vpop.f32.mrf.mxu0
  %v1209 = vadd.f32 0.0, %v1208
  %1210 = vdwg.mxu0
  %v1211 = vmul.f32 %v1172, 1.442695
  %v1212 = vpow.pop %v1211
  %v1213 = vmul.f32 %v1174, 1.442695
  %v1214 = vpow.pop %v1213
  %v1215 = vmul.f32 %v1177, 1.442695
  %v1216 = vpow.pop %v1215
  %v1217 = vmul.f32 %v1179, 1.442695
  %v1218 = vpow.pop %v1217
  %v1219 = vmul.f32 %v1182, 1.442695
  %v1220 = vpow.pop %v1219
  %v1221 = vmul.f32 %v1184, 1.442695
  %v1222 = vpow.pop %v1221
  %v1223 = vmul.f32 %v1187, 1.442695
  %v1224 = vpow.pop %v1223
  %v1225 = vmul.f32 %v1189, 1.442695
  %v1226 = vpow.pop %v1225
  %v1227 = vmul.f32 %v1192, 1.442695
  %v1228 = vpow.pop %v1227
  %v1229 = vmul.f32 %v1194, 1.442695
  %v1230 = vpow.pop %v1229
  %v1231 = vmul.f32 %v1197, 1.442695
  %v1232 = vpow.pop %v1231
  %v1233 = vmul.f32 %v1199, 1.442695
  %v1234 = vpow.pop %v1233
  %v1235 = vmul.f32 %v1202, 1.442695
  %v1236 = vpow.pop %v1235
  %v1237 = vmul.f32 %v1204, 1.442695
  %v1238 = vpow.pop %v1237
  %v1239 = vmul.f32 %v1207, 1.442695
  %v1240 = vpow.pop %v1239
  %v1241 = vmul.f32 %v1209, 1.442695
  %v1242 = vpow.pop %v1241
  %v1243 = vmul.f32 %v1212, %v1041
  %v1244 = vmul.f32 %v1214, %v1042
  %v1245 = vmul.f32 %v1216, %v1043
  %v1246 = vmul.f32 %v1218, %v1044
  %v1247 = vmul.f32 %v1220, %v1045
  %v1248 = vmul.f32 %v1222, %v1046
  %v1249 = vmul.f32 %v1224, %v1047
  %v1250 = vmul.f32 %v1226, %v1048
  %v1251 = vmul.f32 %v1228, %v1049
  %v1252 = vmul.f32 %v1230, %v1050
  %v1253 = vmul.f32 %v1232, %v1051
  %v1254 = vmul.f32 %v1234, %v1052
  %v1255 = vmul.f32 %v1236, %v1053
  %v1256 = vmul.f32 %v1238, %v1054
  %v1257 = vmul.f32 %v1240, %v1055
  %v1258 = vmul.f32 %v1242, %v1056
  %1259 = vadd.xlane.f32.xlu0 %v1243
  %v1260 = vpop.xlane.xlu0 %1259
  %1261 = vadd.xlane.f32.xlu0 %v1244
  %v1262 = vpop.xlane.xlu0 %1261
  %1263 = vadd.xlane.f32.xlu0 %v1245
  %v1264 = vpop.xlane.xlu0 %1263
  %1265 = vadd.xlane.f32.xlu0 %v1246
  %v1266 = vpop.xlane.xlu0 %1265
  %1267 = vadd.xlane.f32.xlu0 %v1247
  %v1268 = vpop.xlane.xlu0 %1267
  %1269 = vadd.xlane.f32.xlu0 %v1248
  %v1270 = vpop.xlane.xlu0 %1269
  %1271 = vadd.xlane.f32.xlu0 %v1249
  %v1272 = vpop.xlane.xlu0 %1271
  %1273 = vadd.xlane.f32.xlu0 %v1250
  %v1274 = vpop.xlane.xlu0 %1273
  %1275 = vadd.xlane.f32.xlu0 %v1251
  %v1276 = vpop.xlane.xlu0 %1275
  %1277 = vadd.xlane.f32.xlu0 %v1252
  %v1278 = vpop.xlane.xlu0 %1277
  %1279 = vadd.xlane.f32.xlu0 %v1253
  %v1280 = vpop.xlane.xlu0 %1279
  %1281 = vadd.xlane.f32.xlu0 %v1254
  %v1282 = vpop.xlane.xlu0 %1281
  %1283 = vadd.xlane.f32.xlu0 %v1255
  %v1284 = vpop.xlane.xlu0 %1283
  %1285 = vadd.xlane.f32.xlu0 %v1256
  %v1286 = vpop.xlane.xlu0 %1285
  %1287 = vadd.xlane.f32.xlu0 %v1257
  %v1288 = vpop.xlane.xlu0 %1287
  %1289 = vadd.xlane.f32.xlu0 %v1258
  %v1290 = vpop.xlane.xlu0 %1289
  %v1291 = vpack.c.bf16 %v1244, %v1243
  %v1292 = vpack.c.bf16 %v1246, %v1245
  %v1293 = vpack.c.bf16 %v1248, %v1247
  %v1294 = vpack.c.bf16 %v1250, %v1249
  %v1295 = vpack.c.bf16 %v1252, %v1251
  %v1296 = vpack.c.bf16 %v1254, %v1253
  %v1297 = vpack.c.bf16 %v1256, %v1255
  %v1298 = vpack.c.bf16 %v1258, %v1257
  %v1299 = vunpack.c.h.b16 %v893
  %v1300 = vunpack.c.h.b16 %v894
  %v1301 = vunpack.c.h.b16 %v895
  %v1302 = vunpack.c.h.b16 %v896
  %v1303 = vunpack.c.h.b16 %v897
  %v1304 = vunpack.c.h.b16 %v898
  %v1305 = vunpack.c.h.b16 %v899
  %v1306 = vunpack.c.h.b16 %v900
  %v1307 = vunpack.c.h.b16 %v901
  %v1308 = vunpack.c.h.b16 %v902
  %v1309 = vunpack.c.h.b16 %v903
  %v1310 = vunpack.c.h.b16 %v904
  %v1311 = vunpack.c.h.b16 %v905
  %v1312 = vunpack.c.h.b16 %v906
  %v1313 = vunpack.c.h.b16 %v907
  %v1314 = vunpack.c.h.b16 %v908
  %v1315 = vpack.c.b16 %v1300, %v1299
  %v1316 = vpack.c.b16 %v1302, %v1301
  %v1317 = vpack.c.b16 %v1304, %v1303
  %v1318 = vpack.c.b16 %v1306, %v1305
  %v1319 = vpack.c.b16 %v1308, %v1307
  %v1320 = vpack.c.b16 %v1310, %v1309
  %v1321 = vpack.c.b16 %v1312, %v1311
  %v1322 = vpack.c.b16 %v1314, %v1313
  %1331 = vmatpush.bf16.msra.mxu0 %v1322
  %1332 = vmatpush.bf16.msra.mxu0 %v1321
  %1333 = vmatpush.bf16.msra.mxu0 %v1320
  %1334 = vmatpush.bf16.msra.mxu0 %v1319
  %1335 = vmatpush.bf16.msra.mxu0 %v1318
  %1336 = vmatpush.bf16.msra.mxu0 %v1317
  %1337 = vmatpush.bf16.msra.mxu0 %v1316
  %1338 = vmatpush.bf16.msra.mxu0 %v1315
  %1339 = vmatmul.bf16.gmra.mxu0 %v1291
  %v1340 = vpop.f32.mrf.mxu0
  %v1341 = vadd.f32 0.0, %v1340
  %v1342 = vpop.f32.mrf.mxu0
  %v1343 = vadd.f32 0.0, %v1342
  %1344 = vmatmul.bf16.gmra.mxu0 %v1292
  %v1345 = vpop.f32.mrf.mxu0
  %v1346 = vadd.f32 0.0, %v1345
  %v1347 = vpop.f32.mrf.mxu0
  %v1348 = vadd.f32 0.0, %v1347
  %1349 = vmatmul.bf16.gmra.mxu0 %v1293
  %v1350 = vpop.f32.mrf.mxu0
  %v1351 = vadd.f32 0.0, %v1350
  %v1352 = vpop.f32.mrf.mxu0
  %v1353 = vadd.f32 0.0, %v1352
  %1354 = vmatmul.bf16.gmra.mxu0 %v1294
  %v1355 = vpop.f32.mrf.mxu0
  %v1356 = vadd.f32 0.0, %v1355
  %v1357 = vpop.f32.mrf.mxu0
  %v1358 = vadd.f32 0.0, %v1357
  %1359 = vmatmul.bf16.gmra.mxu0 %v1295
  %v1360 = vpop.f32.mrf.mxu0
  %v1361 = vadd.f32 0.0, %v1360
  %v1362 = vpop.f32.mrf.mxu0
  %v1363 = vadd.f32 0.0, %v1362
  %1364 = vmatmul.bf16.gmra.mxu0 %v1296
  %v1365 = vpop.f32.mrf.mxu0
  %v1366 = vadd.f32 0.0, %v1365
  %v1367 = vpop.f32.mrf.mxu0
  %v1368 = vadd.f32 0.0, %v1367
  %1369 = vmatmul.bf16.gmra.mxu0 %v1297
  %v1370 = vpop.f32.mrf.mxu0
  %v1371 = vadd.f32 0.0, %v1370
  %v1372 = vpop.f32.mrf.mxu0
  %v1373 = vadd.f32 0.0, %v1372
  %1374 = vmatmul.bf16.gmra.mxu0 %v1298
  %v1375 = vpop.f32.mrf.mxu0
  %v1376 = vadd.f32 0.0, %v1375
  %v1377 = vpop.f32.mrf.mxu0
  %v1378 = vadd.f32 0.0, %v1377
  %1379 = vdwg.mxu0
  %v1380 = vrcp.pop %v1260
  %v1381 = vrcp.pop %v1262
  %v1382 = vrcp.pop %v1264
  %v1383 = vrcp.pop %v1266
  %v1384 = vrcp.pop %v1268
  %v1385 = vrcp.pop %v1270
  %v1386 = vrcp.pop %v1272
  %v1387 = vrcp.pop %v1274
  %v1388 = vrcp.pop %v1276
  %v1389 = vrcp.pop %v1278
  %v1390 = vrcp.pop %v1280
  %v1391 = vrcp.pop %v1282
  %v1392 = vrcp.pop %v1284
  %v1393 = vrcp.pop %v1286
  %v1394 = vrcp.pop %v1288
  %v1395 = vrcp.pop %v1290
  %v1396 = vmul.f32 %v1341, %v1380
  %v1397 = vmul.f32 %v1343, %v1381
  %v1398 = vmul.f32 %v1346, %v1382
  %v1399 = vmul.f32 %v1348, %v1383
  %v1400 = vmul.f32 %v1351, %v1384
  %v1401 = vmul.f32 %v1353, %v1385
  %v1402 = vmul.f32 %v1356, %v1386
  %v1403 = vmul.f32 %v1358, %v1387
  %v1404 = vmul.f32 %v1361, %v1388
  %v1405 = vmul.f32 %v1363, %v1389
  %v1406 = vmul.f32 %v1366, %v1390
  %v1407 = vmul.f32 %v1368, %v1391
  %v1408 = vmul.f32 %v1371, %v1392
  %v1409 = vmul.f32 %v1373, %v1393
  %v1410 = vmul.f32 %v1376, %v1394
  %v1411 = vmul.f32 %v1378, %v1395
  %1412 = vst.msk [vmem:[#allocation2] sm:$0xff] %vm1113, %v1396
  %1413 = vst.msk [vmem:[#allocation2 + $0x8] sm:$0xff] %vm1113, %v1397
  %1414 = vst.msk [vmem:[#allocation2 + $0x10] sm:$0xff] %vm1113, %v1398
  %1415 = vst.msk [vmem:[#allocation2 + $0x18] sm:$0xff] %vm1113, %v1399
  %1416 = vst.msk [vmem:[#allocation2 + $0x20] sm:$0xff] %vm1113, %v1400
  %1417 = vst.msk [vmem:[#allocation2 + $0x28] sm:$0xff] %vm1113, %v1401
  %1418 = vst.msk [vmem:[#allocation2 + $0x30] sm:$0xff] %vm1113, %v1402
  %1419 = vst.msk [vmem:[#allocation2 + $0x38] sm:$0xff] %vm1113, %v1403
  %1420 = vst.msk [vmem:[#allocation2 + $0x40] sm:$0xff] %vm1113, %v1404
  %1421 = vst.msk [vmem:[#allocation2 + $0x48] sm:$0xff] %vm1113, %v1405
  %1422 = vst.msk [vmem:[#allocation2 + $0x50] sm:$0xff] %vm1113, %v1406
  %1423 = vst.msk [vmem:[#allocation2 + $0x58] sm:$0xff] %vm1113, %v1407
  %1424 = vst.msk [vmem:[#allocation2 + $0x60] sm:$0xff] %vm1113, %v1408
  %1425 = vst.msk [vmem:[#allocation2 + $0x68] sm:$0xff] %vm1113, %v1409
  %1426 = vst.msk [vmem:[#allocation2 + $0x70] sm:$0xff] %vm1113, %v1410
  %1427 = vst.msk [vmem:[#allocation2 + $0x78] sm:$0xff] %vm1113, %v1411
  %1428 = vrot.lane.b32.xlu0 %v1089, 120
  %v1429 = vpop.permute.xlu0 %1428
  %1430 = vrot.lane.b32.xlu0 %v1090, 120
  %v1431 = vpop.permute.xlu0 %1430
  %1432 = vrot.lane.b32.xlu0 %v1091, 120
  %v1433 = vpop.permute.xlu0 %1432
  %1434 = vrot.lane.b32.xlu0 %v1092, 120
  %v1435 = vpop.permute.xlu0 %1434
  %1436 = vrot.lane.b32.xlu0 %v1093, 120
  %v1437 = vpop.permute.xlu0 %1436
  %1438 = vrot.lane.b32.xlu0 %v1094, 120
  %v1439 = vpop.permute.xlu0 %1438
  %1440 = vrot.lane.b32.xlu0 %v1095, 120
  %v1441 = vpop.permute.xlu0 %1440
  %1442 = vrot.lane.b32.xlu0 %v1096, 120
  %v1443 = vpop.permute.xlu0 %1442
  %1444 = vrot.lane.b32.xlu0 %v1089, 56
  %v1445 = vpop.permute.xlu0 %1444
  %1446 = vrot.lane.b32.xlu0 %v1090, 56
  %v1447 = vpop.permute.xlu0 %1446
  %1448 = vrot.lane.b32.xlu0 %v1091, 56
  %v1449 = vpop.permute.xlu0 %1448
  %1450 = vrot.lane.b32.xlu0 %v1092, 56
  %v1451 = vpop.permute.xlu0 %1450
  %1452 = vrot.lane.b32.xlu0 %v1093, 56
  %v1453 = vpop.permute.xlu0 %1452
  %1454 = vrot.lane.b32.xlu0 %v1094, 56
  %v1455 = vpop.permute.xlu0 %1454
  %1456 = vrot.lane.b32.xlu0 %v1095, 56
  %v1457 = vpop.permute.xlu0 %1456
  %1458 = vrot.lane.b32.xlu0 %v1096, 56
  %v1459 = vpop.permute.xlu0 %1458
  %v1461 = vsel %vm1113, %v1429, 0
  %v1464 = vsel %vm1113, %v1431, 0
  %v1467 = vsel %vm1113, %v1433, 0
  %v1470 = vsel %vm1113, %v1435, 0
  %v1473 = vsel %vm1113, %v1437, 0
  %v1476 = vsel %vm1113, %v1439, 0
  %v1479 = vsel %vm1113, %v1441, 0
  %v1482 = vsel %vm1113, %v1443, 0
  %v1485 = vsel %vm1113, %v1445, 0
  %v1488 = vsel %vm1113, %v1447, 0
  %v1491 = vsel %vm1113, %v1449, 0
  %v1494 = vsel %vm1113, %v1451, 0
  %v1497 = vsel %vm1113, %v1453, 0
  %v1500 = vsel %vm1113, %v1455, 0
  %v1503 = vsel %vm1113, %v1457, 0
  %v1506 = vsel %vm1113, %v1459, 0
  %1508 = vmatpush.bf16.xpose.msra.mxu0 %v1506
  %1509 = vmatpush.bf16.xpose.msra.mxu0 %v1503
  %1510 = vmatpush.bf16.xpose.msra.mxu0 %v1500
  %1511 = vmatpush.bf16.xpose.msra.mxu0 %v1497
  %1512 = vmatpush.bf16.xpose.msra.mxu0 %v1494
  %1513 = vmatpush.bf16.xpose.msra.mxu0 %v1491
  %1514 = vmatpush.bf16.xpose.msra.mxu0 %v1488
  %1515 = vmatpush.bf16.xpose.msra.mxu0 %v1485
  %1516 = vmatmul.bf16.gmra.mxu0 %v1461
  %v1517 = vpop.f32.mrf.mxu0
  %v1518 = vadd.f32 0.0, %v1517
  %v1519 = vpop.f32.mrf.mxu0
  %v1520 = vadd.f32 0.0, %v1519
  %1521 = vmatmul.bf16.gmra.mxu0 %v1464
  %v1522 = vpop.f32.mrf.mxu0
  %v1523 = vadd.f32 0.0, %v1522
  %v1524 = vpop.f32.mrf.mxu0
  %v1525 = vadd.f32 0.0, %v1524
  %1526 = vmatmul.bf16.gmra.mxu0 %v1467
  %v1527 = vpop.f32.mrf.mxu0
  %v1528 = vadd.f32 0.0, %v1527
  %v1529 = vpop.f32.mrf.mxu0
  %v1530 = vadd.f32 0.0, %v1529
  %1531 = vmatmul.bf16.gmra.mxu0 %v1470
  %v1532 = vpop.f32.mrf.mxu0
  %v1533 = vadd.f32 0.0, %v1532
  %v1534 = vpop.f32.mrf.mxu0
  %v1535 = vadd.f32 0.0, %v1534
  %1536 = vmatmul.bf16.gmra.mxu0 %v1473
  %v1537 = vpop.f32.mrf.mxu0
  %v1538 = vadd.f32 0.0, %v1537
  %v1539 = vpop.f32.mrf.mxu0
  %v1540 = vadd.f32 0.0, %v1539
  %1541 = vmatmul.bf16.gmra.mxu0 %v1476
  %v1542 = vpop.f32.mrf.mxu0
  %v1543 = vadd.f32 0.0, %v1542
  %v1544 = vpop.f32.mrf.mxu0
  %v1545 = vadd.f32 0.0, %v1544
  %1546 = vmatmul.bf16.gmra.mxu0 %v1479
  %v1547 = vpop.f32.mrf.mxu0
  %v1548 = vadd.f32 0.0, %v1547
  %v1549 = vpop.f32.mrf.mxu0
  %v1550 = vadd.f32 0.0, %v1549
  %1551 = vmatmul.bf16.gmra.mxu0 %v1482
  %v1552 = vpop.f32.mrf.mxu0
  %v1553 = vadd.f32 0.0, %v1552
  %v1554 = vpop.f32.mrf.mxu0
  %v1555 = vadd.f32 0.0, %v1554
  %1556 = vdwg.mxu0
  %v1557 = vmul.f32 %v1518, 1.442695
  %v1558 = vpow.pop %v1557
  %v1559 = vmul.f32 %v1520, 1.442695
  %v1560 = vpow.pop %v1559
  %v1561 = vmul.f32 %v1523, 1.442695
  %v1562 = vpow.pop %v1561
  %v1563 = vmul.f32 %v1525, 1.442695
  %v1564 = vpow.pop %v1563
  %v1565 = vmul.f32 %v1528, 1.442695
  %v1566 = vpow.pop %v1565
  %v1567 = vmul.f32 %v1530, 1.442695
  %v1568 = vpow.pop %v1567
  %v1569 = vmul.f32 %v1533, 1.442695
  %v1570 = vpow.pop %v1569
  %v1571 = vmul.f32 %v1535, 1.442695
  %v1572 = vpow.pop %v1571
  %v1573 = vmul.f32 %v1538, 1.442695
  %v1574 = vpow.pop %v1573
  %v1575 = vmul.f32 %v1540, 1.442695
  %v1576 = vpow.pop %v1575
  %v1577 = vmul.f32 %v1543, 1.442695
  %v1578 = vpow.pop %v1577
  %v1579 = vmul.f32 %v1545, 1.442695
  %v1580 = vpow.pop %v1579
  %v1581 = vmul.f32 %v1548, 1.442695
  %v1582 = vpow.pop %v1581
  %v1583 = vmul.f32 %v1550, 1.442695
  %v1584 = vpow.pop %v1583
  %v1585 = vmul.f32 %v1553, 1.442695
  %v1586 = vpow.pop %v1585
  %v1587 = vmul.f32 %v1555, 1.442695
  %v1588 = vpow.pop %v1587
  %v1589 = vmul.f32 %v1558, %v1041
  %v1590 = vmul.f32 %v1560, %v1042
  %v1591 = vmul.f32 %v1562, %v1043
  %v1592 = vmul.f32 %v1564, %v1044
  %v1593 = vmul.f32 %v1566, %v1045
  %v1594 = vmul.f32 %v1568, %v1046
  %v1595 = vmul.f32 %v1570, %v1047
  %v1596 = vmul.f32 %v1572, %v1048
  %v1597 = vmul.f32 %v1574, %v1049
  %v1598 = vmul.f32 %v1576, %v1050
  %v1599 = vmul.f32 %v1578, %v1051
  %v1600 = vmul.f32 %v1580, %v1052
  %v1601 = vmul.f32 %v1582, %v1053
  %v1602 = vmul.f32 %v1584, %v1054
  %v1603 = vmul.f32 %v1586, %v1055
  %v1604 = vmul.f32 %v1588, %v1056
  %1605 = vadd.xlane.f32.xlu0 %v1589
  %v1606 = vpop.xlane.xlu0 %1605
  %1607 = vadd.xlane.f32.xlu0 %v1590
  %v1608 = vpop.xlane.xlu0 %1607
  %1609 = vadd.xlane.f32.xlu0 %v1591
  %v1610 = vpop.xlane.xlu0 %1609
  %1611 = vadd.xlane.f32.xlu0 %v1592
  %v1612 = vpop.xlane.xlu0 %1611
  %1613 = vadd.xlane.f32.xlu0 %v1593
  %v1614 = vpop.xlane.xlu0 %1613
  %1615 = vadd.xlane.f32.xlu0 %v1594
  %v1616 = vpop.xlane.xlu0 %1615
  %1617 = vadd.xlane.f32.xlu0 %v1595
  %v1618 = vpop.xlane.xlu0 %1617
  %1619 = vadd.xlane.f32.xlu0 %v1596
  %v1620 = vpop.xlane.xlu0 %1619
  %1621 = vadd.xlane.f32.xlu0 %v1597
  %v1622 = vpop.xlane.xlu0 %1621
  %1623 = vadd.xlane.f32.xlu0 %v1598
  %v1624 = vpop.xlane.xlu0 %1623
  %1625 = vadd.xlane.f32.xlu0 %v1599
  %v1626 = vpop.xlane.xlu0 %1625
  %1627 = vadd.xlane.f32.xlu0 %v1600
  %v1628 = vpop.xlane.xlu0 %1627
  %1629 = vadd.xlane.f32.xlu0 %v1601
  %v1630 = vpop.xlane.xlu0 %1629
  %1631 = vadd.xlane.f32.xlu0 %v1602
  %v1632 = vpop.xlane.xlu0 %1631
  %1633 = vadd.xlane.f32.xlu0 %v1603
  %v1634 = vpop.xlane.xlu0 %1633
  %1635 = vadd.xlane.f32.xlu0 %v1604
  %v1636 = vpop.xlane.xlu0 %1635
  %v1637 = vpack.c.bf16 %v1590, %v1589
  %v1638 = vpack.c.bf16 %v1592, %v1591
  %v1639 = vpack.c.bf16 %v1594, %v1593
  %v1640 = vpack.c.bf16 %v1596, %v1595
  %v1641 = vpack.c.bf16 %v1598, %v1597
  %v1642 = vpack.c.bf16 %v1600, %v1599
  %v1643 = vpack.c.bf16 %v1602, %v1601
  %v1644 = vpack.c.bf16 %v1604, %v1603
  %1645 = vrot.lane.b32.xlu0 %v1315, 120
  %v1646 = vpop.permute.xlu0 %1645
  %1647 = vrot.lane.b32.xlu0 %v1316, 120
  %v1648 = vpop.permute.xlu0 %1647
  %1649 = vrot.lane.b32.xlu0 %v1317, 120
  %v1650 = vpop.permute.xlu0 %1649
  %1651 = vrot.lane.b32.xlu0 %v1318, 120
  %v1652 = vpop.permute.xlu0 %1651
  %1653 = vrot.lane.b32.xlu0 %v1319, 120
  %v1654 = vpop.permute.xlu0 %1653
  %1655 = vrot.lane.b32.xlu0 %v1320, 120
  %v1656 = vpop.permute.xlu0 %1655
  %1657 = vrot.lane.b32.xlu0 %v1321, 120
  %v1658 = vpop.permute.xlu0 %1657
  %1659 = vrot.lane.b32.xlu0 %v1322, 120
  %v1660 = vpop.permute.xlu0 %1659
  %1669 = vmatpush.bf16.msra.mxu0 %v1660
  %1670 = vmatpush.bf16.msra.mxu0 %v1658
  %1671 = vmatpush.bf16.msra.mxu0 %v1656
  %1672 = vmatpush.bf16.msra.mxu0 %v1654
  %1673 = vmatpush.bf16.msra.mxu0 %v1652
  %1674 = vmatpush.bf16.msra.mxu0 %v1650
  %1675 = vmatpush.bf16.msra.mxu0 %v1648
  %1676 = vmatpush.bf16.msra.mxu0 %v1646
  %1677 = vmatmul.bf16.gmra.mxu0 %v1637
  %v1678 = vpop.f32.mrf.mxu0
  %v1679 = vadd.f32 0.0, %v1678
  %v1680 = vpop.f32.mrf.mxu0
  %v1681 = vadd.f32 0.0, %v1680
  %1682 = vmatmul.bf16.gmra.mxu0 %v1638
  %v1683 = vpop.f32.mrf.mxu0
  %v1684 = vadd.f32 0.0, %v1683
  %v1685 = vpop.f32.mrf.mxu0
  %v1686 = vadd.f32 0.0, %v1685
  %1687 = vmatmul.bf16.gmra.mxu0 %v1639
  %v1688 = vpop.f32.mrf.mxu0
  %v1689 = vadd.f32 0.0, %v1688
  %v1690 = vpop.f32.mrf.mxu0
  %v1691 = vadd.f32 0.0, %v1690
  %1692 = vmatmul.bf16.gmra.mxu0 %v1640
  %v1693 = vpop.f32.mrf.mxu0
  %v1694 = vadd.f32 0.0, %v1693
  %v1695 = vpop.f32.mrf.mxu0
  %v1696 = vadd.f32 0.0, %v1695
  %1697 = vmatmul.bf16.gmra.mxu0 %v1641
  %v1698 = vpop.f32.mrf.mxu0
  %v1699 = vadd.f32 0.0, %v1698
  %v1700 = vpop.f32.mrf.mxu0
  %v1701 = vadd.f32 0.0, %v1700
  %1702 = vmatmul.bf16.gmra.mxu0 %v1642
  %v1703 = vpop.f32.mrf.mxu0
  %v1704 = vadd.f32 0.0, %v1703
  %v1705 = vpop.f32.mrf.mxu0
  %v1706 = vadd.f32 0.0, %v1705
  %1707 = vmatmul.bf16.gmra.mxu0 %v1643
  %v1708 = vpop.f32.mrf.mxu0
  %v1709 = vadd.f32 0.0, %v1708
  %v1710 = vpop.f32.mrf.mxu0
  %v1711 = vadd.f32 0.0, %v1710
  %1712 = vmatmul.bf16.gmra.mxu0 %v1644
  %v1713 = vpop.f32.mrf.mxu0
  %v1714 = vadd.f32 0.0, %v1713
  %v1715 = vpop.f32.mrf.mxu0
  %v1716 = vadd.f32 0.0, %v1715
  %1717 = vdwg.mxu0
  %v1718 = vrcp.pop %v1606
  %v1719 = vrcp.pop %v1608
  %v1720 = vrcp.pop %v1610
  %v1721 = vrcp.pop %v1612
  %v1722 = vrcp.pop %v1614
  %v1723 = vrcp.pop %v1616
  %v1724 = vrcp.pop %v1618
  %v1725 = vrcp.pop %v1620
  %v1726 = vrcp.pop %v1622
  %v1727 = vrcp.pop %v1624
  %v1728 = vrcp.pop %v1626
  %v1729 = vrcp.pop %v1628
  %v1730 = vrcp.pop %v1630
  %v1731 = vrcp.pop %v1632
  %v1732 = vrcp.pop %v1634
  %v1733 = vrcp.pop %v1636
  %v1734 = vmul.f32 %v1679, %v1718
  %v1735 = vmul.f32 %v1681, %v1719
  %v1736 = vmul.f32 %v1684, %v1720
  %v1737 = vmul.f32 %v1686, %v1721
  %v1738 = vmul.f32 %v1689, %v1722
  %v1739 = vmul.f32 %v1691, %v1723
  %v1740 = vmul.f32 %v1694, %v1724
  %v1741 = vmul.f32 %v1696, %v1725
  %v1742 = vmul.f32 %v1699, %v1726
  %v1743 = vmul.f32 %v1701, %v1727
  %v1744 = vmul.f32 %v1704, %v1728
  %v1745 = vmul.f32 %v1706, %v1729
  %v1746 = vmul.f32 %v1709, %v1730
  %v1747 = vmul.f32 %v1711, %v1731
  %v1748 = vmul.f32 %v1714, %v1732
  %v1749 = vmul.f32 %v1716, %v1733
  %1766 = vrot.lane.b32.xlu0 %v1734, 8
  %v1767 = vpop.permute.xlu0 %1766
  %1768 = vrot.lane.b32.xlu0 %v1735, 8
  %v1769 = vpop.permute.xlu0 %1768
  %1770 = vrot.lane.b32.xlu0 %v1736, 8
  %v1771 = vpop.permute.xlu0 %1770
  %1772 = vrot.lane.b32.xlu0 %v1737, 8
  %v1773 = vpop.permute.xlu0 %1772
  %1774 = vrot.lane.b32.xlu0 %v1738, 8
  %v1775 = vpop.permute.xlu0 %1774
  %1776 = vrot.lane.b32.xlu0 %v1739, 8
  %v1777 = vpop.permute.xlu0 %1776
  %1778 = vrot.lane.b32.xlu0 %v1740, 8
  %v1779 = vpop.permute.xlu0 %1778
  %1780 = vrot.lane.b32.xlu0 %v1741, 8
  %v1781 = vpop.permute.xlu0 %1780
  %1782 = vrot.lane.b32.xlu0 %v1742, 8
  %v1783 = vpop.permute.xlu0 %1782
  %1784 = vrot.lane.b32.xlu0 %v1743, 8
  %v1785 = vpop.permute.xlu0 %1784
  %1786 = vrot.lane.b32.xlu0 %v1744, 8
  %v1787 = vpop.permute.xlu0 %1786
  %1788 = vrot.lane.b32.xlu0 %v1745, 8
  %v1789 = vpop.permute.xlu0 %1788
  %1790 = vrot.lane.b32.xlu0 %v1746, 8
  %v1791 = vpop.permute.xlu0 %1790
  %1792 = vrot.lane.b32.xlu0 %v1747, 8
  %v1793 = vpop.permute.xlu0 %1792
  %1794 = vrot.lane.b32.xlu0 %v1748, 8
  %v1795 = vpop.permute.xlu0 %1794
  %1796 = vrot.lane.b32.xlu0 %v1749, 8
  %v1797 = vpop.permute.xlu0 %1796
  %vm1814 = vcmask 130112
  %1815 = vst.msk [vmem:[#allocation2] sm:$0xff] %vm1814, %v1767
  %1816 = vst.msk [vmem:[#allocation2 + $0x8] sm:$0xff] %vm1814, %v1769
  %1817 = vst.msk [vmem:[#allocation2 + $0x10] sm:$0xff] %vm1814, %v1771
  %1818 = vst.msk [vmem:[#allocation2 + $0x18] sm:$0xff] %vm1814, %v1773
  %1819 = vst.msk [vmem:[#allocation2 + $0x20] sm:$0xff] %vm1814, %v1775
  %1820 = vst.msk [vmem:[#allocation2 + $0x28] sm:$0xff] %vm1814, %v1777
  %1821 = vst.msk [vmem:[#allocation2 + $0x30] sm:$0xff] %vm1814, %v1779
  %1822 = vst.msk [vmem:[#allocation2 + $0x38] sm:$0xff] %vm1814, %v1781
  %1823 = vst.msk [vmem:[#allocation2 + $0x40] sm:$0xff] %vm1814, %v1783
  %1824 = vst.msk [vmem:[#allocation2 + $0x48] sm:$0xff] %vm1814, %v1785
  %1825 = vst.msk [vmem:[#allocation2 + $0x50] sm:$0xff] %vm1814, %v1787
  %1826 = vst.msk [vmem:[#allocation2 + $0x58] sm:$0xff] %vm1814, %v1789
  %1827 = vst.msk [vmem:[#allocation2 + $0x60] sm:$0xff] %vm1814, %v1791
  %1828 = vst.msk [vmem:[#allocation2 + $0x68] sm:$0xff] %vm1814, %v1793
  %1829 = vst.msk [vmem:[#allocation2 + $0x70] sm:$0xff] %vm1814, %v1795
  %1830 = vst.msk [vmem:[#allocation2 + $0x78] sm:$0xff] %vm1814, %v1797
  %1831 = vrot.lane.b32.xlu0 %v1089, 112
  %v1832 = vpop.permute.xlu0 %1831
  %1833 = vrot.lane.b32.xlu0 %v1090, 112
  %v1834 = vpop.permute.xlu0 %1833
  %1835 = vrot.lane.b32.xlu0 %v1091, 112
  %v1836 = vpop.permute.xlu0 %1835
  %1837 = vrot.lane.b32.xlu0 %v1092, 112
  %v1838 = vpop.permute.xlu0 %1837
  %1839 = vrot.lane.b32.xlu0 %v1093, 112
  %v1840 = vpop.permute.xlu0 %1839
  %1841 = vrot.lane.b32.xlu0 %v1094, 112
  %v1842 = vpop.permute.xlu0 %1841
  %1843 = vrot.lane.b32.xlu0 %v1095, 112
  %v1844 = vpop.permute.xlu0 %1843
  %1845 = vrot.lane.b32.xlu0 %v1096, 112
  %v1846 = vpop.permute.xlu0 %1845
  %1847 = vrot.lane.b32.xlu0 %v1089, 48
  %v1848 = vpop.permute.xlu0 %1847
  %1849 = vrot.lane.b32.xlu0 %v1090, 48
  %v1850 = vpop.permute.xlu0 %1849
  %1851 = vrot.lane.b32.xlu0 %v1091, 48
  %v1852 = vpop.permute.xlu0 %1851
  %1853 = vrot.lane.b32.xlu0 %v1092, 48
  %v1854 = vpop.permute.xlu0 %1853
  %1855 = vrot.lane.b32.xlu0 %v1093, 48
  %v1856 = vpop.permute.xlu0 %1855
  %1857 = vrot.lane.b32.xlu0 %v1094, 48
  %v1858 = vpop.permute.xlu0 %1857
  %1859 = vrot.lane.b32.xlu0 %v1095, 48
  %v1860 = vpop.permute.xlu0 %1859
  %1861 = vrot.lane.b32.xlu0 %v1096, 48
  %v1862 = vpop.permute.xlu0 %1861
  %v1864 = vsel %vm1113, %v1832, 0
  %v1867 = vsel %vm1113, %v1834, 0
  %v1870 = vsel %vm1113, %v1836, 0
  %v1873 = vsel %vm1113, %v1838, 0
  %v1876 = vsel %vm1113, %v1840, 0
  %v1879 = vsel %vm1113, %v1842, 0
  %v1882 = vsel %vm1113, %v1844, 0
  %v1885 = vsel %vm1113, %v1846, 0
  %v1888 = vsel %vm1113, %v1848, 0
  %v1891 = vsel %vm1113, %v1850, 0
  %v1894 = vsel %vm1113, %v1852, 0
  %v1897 = vsel %vm1113, %v1854, 0
  %v1900 = vsel %vm1113, %v1856, 0
  %v1903 = vsel %vm1113, %v1858, 0
  %v1906 = vsel %vm1113, %v1860, 0
  %v1909 = vsel %vm1113, %v1862, 0
  %1911 = vmatpush.bf16.xpose.msra.mxu0 %v1909
  %1912 = vmatpush.bf16.xpose.msra.mxu0 %v1906
  %1913 = vmatpush.bf16.xpose.msra.mxu0 %v1903
  %1914 = vmatpush.bf16.xpose.msra.mxu0 %v1900
  %1915 = vmatpush.bf16.xpose.msra.mxu0 %v1897
  %1916 = vmatpush.bf16.xpose.msra.mxu0 %v1894
  %1917 = vmatpush.bf16.xpose.msra.mxu0 %v1891
  %1918 = vmatpush.bf16.xpose.msra.mxu0 %v1888
  %1919 = vmatmul.bf16.gmra.mxu0 %v1864
  %v1920 = vpop.f32.mrf.mxu0
  %v1921 = vadd.f32 0.0, %v1920
  %v1922 = vpop.f32.mrf.mxu0
  %v1923 = vadd.f32 0.0, %v1922
  %1924 = vmatmul.bf16.gmra.mxu0 %v1867
  %v1925 = vpop.f32.mrf.mxu0
  %v1926 = vadd.f32 0.0, %v1925
  %v1927 = vpop.f32.mrf.mxu0
  %v1928 = vadd.f32 0.0, %v1927
  %1929 = vmatmul.bf16.gmra.mxu0 %v1870
  %v1930 = vpop.f32.mrf.mxu0
  %v1931 = vadd.f32 0.0, %v1930
  %v1932 = vpop.f32.mrf.mxu0
  %v1933 = vadd.f32 0.0, %v1932
  %1934 = vmatmul.bf16.gmra.mxu0 %v1873
  %v1935 = vpop.f32.mrf.mxu0
  %v1936 = vadd.f32 0.0, %v1935
  %v1937 = vpop.f32.mrf.mxu0
  %v1938 = vadd.f32 0.0, %v1937
  %1939 = vmatmul.bf16.gmra.mxu0 %v1876
  %v1940 = vpop.f32.mrf.mxu0
  %v1941 = vadd.f32 0.0, %v1940
  %v1942 = vpop.f32.mrf.mxu0
  %v1943 = vadd.f32 0.0, %v1942
  %1944 = vmatmul.bf16.gmra.mxu0 %v1879
  %v1945 = vpop.f32.mrf.mxu0
  %v1946 = vadd.f32 0.0, %v1945
  %v1947 = vpop.f32.mrf.mxu0
  %v1948 = vadd.f32 0.0, %v1947
  %1949 = vmatmul.bf16.gmra.mxu0 %v1882
  %v1950 = vpop.f32.mrf.mxu0
  %v1951 = vadd.f32 0.0, %v1950
  %v1952 = vpop.f32.mrf.mxu0
  %v1953 = vadd.f32 0.0, %v1952
  %1954 = vmatmul.bf16.gmra.mxu0 %v1885
  %v1955 = vpop.f32.mrf.mxu0
  %v1956 = vadd.f32 0.0, %v1955
  %v1957 = vpop.f32.mrf.mxu0
  %v1958 = vadd.f32 0.0, %v1957
  %1959 = vdwg.mxu0
  %v1960 = vmul.f32 %v1921, 1.442695
  %v1961 = vpow.pop %v1960
  %v1962 = vmul.f32 %v1923, 1.442695
  %v1963 = vpow.pop %v1962
  %v1964 = vmul.f32 %v1926, 1.442695
  %v1965 = vpow.pop %v1964
  %v1966 = vmul.f32 %v1928, 1.442695
  %v1967 = vpow.pop %v1966
  %v1968 = vmul.f32 %v1931, 1.442695
  %v1969 = vpow.pop %v1968
  %v1970 = vmul.f32 %v1933, 1.442695
  %v1971 = vpow.pop %v1970
  %v1972 = vmul.f32 %v1936, 1.442695
  %v1973 = vpow.pop %v1972
  %v1974 = vmul.f32 %v1938, 1.442695
  %v1975 = vpow.pop %v1974
  %v1976 = vmul.f32 %v1941, 1.442695
  %v1977 = vpow.pop %v1976
  %v1978 = vmul.f32 %v1943, 1.442695
  %v1979 = vpow.pop %v1978
  %v1980 = vmul.f32 %v1946, 1.442695
  %v1981 = vpow.pop %v1980
  %v1982 = vmul.f32 %v1948, 1.442695
  %v1983 = vpow.pop %v1982
  %v1984 = vmul.f32 %v1951, 1.442695
  %v1985 = vpow.pop %v1984
  %v1986 = vmul.f32 %v1953, 1.442695
  %v1987 = vpow.pop %v1986
  %v1988 = vmul.f32 %v1956, 1.442695
  %v1989 = vpow.pop %v1988
  %v1990 = vmul.f32 %v1958, 1.442695
  %v1991 = vpow.pop %v1990
  %v1992 = vmul.f32 %v1961, %v1041
  %v1993 = vmul.f32 %v1963, %v1042
  %v1994 = vmul.f32 %v1965, %v1043
  %v1995 = vmul.f32 %v1967, %v1044
  %v1996 = vmul.f32 %v1969, %v1045
  %v1997 = vmul.f32 %v1971, %v1046
  %v1998 = vmul.f32 %v1973, %v1047
  %v1999 = vmul.f32 %v1975, %v1048
  %v2000 = vmul.f32 %v1977, %v1049
  %v2001 = vmul.f32 %v1979, %v1050
  %v2002 = vmul.f32 %v1981, %v1051
  %v2003 = vmul.f32 %v1983, %v1052
  %v2004 = vmul.f32 %v1985, %v1053
  %v2005 = vmul.f32 %v1987, %v1054
  %v2006 = vmul.f32 %v1989, %v1055
  %v2007 = vmul.f32 %v1991, %v1056
  %2008 = vadd.xlane.f32.xlu0 %v1992
  %v2009 = vpop.xlane.xlu0 %2008
  %2010 = vadd.xlane.f32.xlu0 %v1993
  %v2011 = vpop.xlane.xlu0 %2010
  %2012 = vadd.xlane.f32.xlu0 %v1994
  %v2013 = vpop.xlane.xlu0 %2012
  %2014 = vadd.xlane.f32.xlu0 %v1995
  %v2015 = vpop.xlane.xlu0 %2014
  %2016 = vadd.xlane.f32.xlu0 %v1996
  %v2017 = vpop.xlane.xlu0 %2016
  %2018 = vadd.xlane.f32.xlu0 %v1997
  %v2019 = vpop.xlane.xlu0 %2018
  %2020 = vadd.xlane.f32.xlu0 %v1998
  %v2021 = vpop.xlane.xlu0 %2020
  %2022 = vadd.xlane.f32.xlu0 %v1999
  %v2023 = vpop.xlane.xlu0 %2022
  %2024 = vadd.xlane.f32.xlu0 %v2000
  %v2025 = vpop.xlane.xlu0 %2024
  %2026 = vadd.xlane.f32.xlu0 %v2001
  %v2027 = vpop.xlane.xlu0 %2026
  %2028 = vadd.xlane.f32.xlu0 %v2002
  %v2029 = vpop.xlane.xlu0 %2028
  %2030 = vadd.xlane.f32.xlu0 %v2003
  %v2031 = vpop.xlane.xlu0 %2030
  %2032 = vadd.xlane.f32.xlu0 %v2004
  %v2033 = vpop.xlane.xlu0 %2032
  %2034 = vadd.xlane.f32.xlu0 %v2005
  %v2035 = vpop.xlane.xlu0 %2034
  %2036 = vadd.xlane.f32.xlu0 %v2006
  %v2037 = vpop.xlane.xlu0 %2036
  %2038 = vadd.xlane.f32.xlu0 %v2007
  %v2039 = vpop.xlane.xlu0 %2038
  %v2040 = vpack.c.bf16 %v1993, %v1992
  %v2041 = vpack.c.bf16 %v1995, %v1994
  %v2042 = vpack.c.bf16 %v1997, %v1996
  %v2043 = vpack.c.bf16 %v1999, %v1998
  %v2044 = vpack.c.bf16 %v2001, %v2000
  %v2045 = vpack.c.bf16 %v2003, %v2002
  %v2046 = vpack.c.bf16 %v2005, %v2004
  %v2047 = vpack.c.bf16 %v2007, %v2006
  %2048 = vrot.lane.b32.xlu0 %v1315, 112
  %v2049 = vpop.permute.xlu0 %2048
  %2050 = vrot.lane.b32.xlu0 %v1316, 112
  %v2051 = vpop.permute.xlu0 %2050
  %2052 = vrot.lane.b32.xlu0 %v1317, 112
  %v2053 = vpop.permute.xlu0 %2052
  %2054 = vrot.lane.b32.xlu0 %v1318, 112
  %v2055 = vpop.permute.xlu0 %2054
  %2056 = vrot.lane.b32.xlu0 %v1319, 112
  %v2057 = vpop.permute.xlu0 %2056
  %2058 = vrot.lane.b32.xlu0 %v1320, 112
  %v2059 = vpop.permute.xlu0 %2058
  %2060 = vrot.lane.b32.xlu0 %v1321, 112
  %v2061 = vpop.permute.xlu0 %2060
  %2062 = vrot.lane.b32.xlu0 %v1322, 112
  %v2063 = vpop.permute.xlu0 %2062
  %2072 = vmatpush.bf16.msra.mxu0 %v2063
  %2073 = vmatpush.bf16.msra.mxu0 %v2061
  %2074 = vmatpush.bf16.msra.mxu0 %v2059
  %2075 = vmatpush.bf16.msra.mxu0 %v2057
  %2076 = vmatpush.bf16.msra.mxu0 %v2055
  %2077 = vmatpush.bf16.msra.mxu0 %v2053
  %2078 = vmatpush.bf16.msra.mxu0 %v2051
  %2079 = vmatpush.bf16.msra.mxu0 %v2049
  %2080 = vmatmul.bf16.gmra.mxu0 %v2040
  %v2081 = vpop.f32.mrf.mxu0
  %v2082 = vadd.f32 0.0, %v2081
  %v2083 = vpop.f32.mrf.mxu0
  %v2084 = vadd.f32 0.0, %v2083
  %2085 = vmatmul.bf16.gmra.mxu0 %v2041
  %v2086 = vpop.f32.mrf.mxu0
  %v2087 = vadd.f32 0.0, %v2086
  %v2088 = vpop.f32.mrf.mxu0
  %v2089 = vadd.f32 0.0, %v2088
  %2090 = vmatmul.bf16.gmra.mxu0 %v2042
  %v2091 = vpop.f32.mrf.mxu0
  %v2092 = vadd.f32 0.0, %v2091
  %v2093 = vpop.f32.mrf.mxu0
  %v2094 = vadd.f32 0.0, %v2093
  %2095 = vmatmul.bf16.gmra.mxu0 %v2043
  %v2096 = vpop.f32.mrf.mxu0
  %v2097 = vadd.f32 0.0, %v2096
  %v2098 = vpop.f32.mrf.mxu0
  %v2099 = vadd.f32 0.0, %v2098
  %2100 = vmatmul.bf16.gmra.mxu0 %v2044
  %v2101 = vpop.f32.mrf.mxu0
  %v2102 = vadd.f32 0.0, %v2101
  %v2103 = vpop.f32.mrf.mxu0
  %v2104 = vadd.f32 0.0, %v2103
  %2105 = vmatmul.bf16.gmra.mxu0 %v2045
  %v2106 = vpop.f32.mrf.mxu0
  %v2107 = vadd.f32 0.0, %v2106
  %v2108 = vpop.f32.mrf.mxu0
  %v2109 = vadd.f32 0.0, %v2108
  %2110 = vmatmul.bf16.gmra.mxu0 %v2046
  %v2111 = vpop.f32.mrf.mxu0
  %v2112 = vadd.f32 0.0, %v2111
  %v2113 = vpop.f32.mrf.mxu0
  %v2114 = vadd.f32 0.0, %v2113
  %2115 = vmatmul.bf16.gmra.mxu0 %v2047
  %v2116 = vpop.f32.mrf.mxu0
  %v2117 = vadd.f32 0.0, %v2116
  %v2118 = vpop.f32.mrf.mxu0
  %v2119 = vadd.f32 0.0, %v2118
  %2120 = vdwg.mxu0
  %v2121 = vrcp.pop %v2009
  %v2122 = vrcp.pop %v2011
  %v2123 = vrcp.pop %v2013
  %v2124 = vrcp.pop %v2015
  %v2125 = vrcp.pop %v2017
  %v2126 = vrcp.pop %v2019
  %v2127 = vrcp.pop %v2021
  %v2128 = vrcp.pop %v2023
  %v2129 = vrcp.pop %v2025
  %v2130 = vrcp.pop %v2027
  %v2131 = vrcp.pop %v2029
  %v2132 = vrcp.pop %v2031
  %v2133 = vrcp.pop %v2033
  %v2134 = vrcp.pop %v2035
  %v2135 = vrcp.pop %v2037
  %v2136 = vrcp.pop %v2039
  %v2137 = vmul.f32 %v2082, %v2121
  %v2138 = vmul.f32 %v2084, %v2122
  %v2139 = vmul.f32 %v2087, %v2123
  %v2140 = vmul.f32 %v2089, %v2124
  %v2141 = vmul.f32 %v2092, %v2125
  %v2142 = vmul.f32 %v2094, %v2126
  %v2143 = vmul.f32 %v2097, %v2127
  %v2144 = vmul.f32 %v2099, %v2128
  %v2145 = vmul.f32 %v2102, %v2129
  %v2146 = vmul.f32 %v2104, %v2130
  %v2147 = vmul.f32 %v2107, %v2131
  %v2148 = vmul.f32 %v2109, %v2132
  %v2149 = vmul.f32 %v2112, %v2133
  %v2150 = vmul.f32 %v2114, %v2134
  %v2151 = vmul.f32 %v2117, %v2135
  %v2152 = vmul.f32 %v2119, %v2136
  %2169 = vrot.lane.b32.xlu0 %v2137, 16
  %v2170 = vpop.permute.xlu0 %2169
  %2171 = vrot.lane.b32.xlu0 %v2138, 16
  %v2172 = vpop.permute.xlu0 %2171
  %2173 = vrot.lane.b32.xlu0 %v2139, 16
  %v2174 = vpop.permute.xlu0 %2173
  %2175 = vrot.lane.b32.xlu0 %v2140, 16
  %v2176 = vpop.permute.xlu0 %2175
  %2177 = vrot.lane.b32.xlu0 %v2141, 16
  %v2178 = vpop.permute.xlu0 %2177
  %2179 = vrot.lane.b32.xlu0 %v2142, 16
  %v2180 = vpop.permute.xlu0 %2179
  %2181 = vrot.lane.b32.xlu0 %v2143, 16
  %v2182 = vpop.permute.xlu0 %2181
  %2183 = vrot.lane.b32.xlu0 %v2144, 16
  %v2184 = vpop.permute.xlu0 %2183
  %2185 = vrot.lane.b32.xlu0 %v2145, 16
  %v2186 = vpop.permute.xlu0 %2185
  %2187 = vrot.lane.b32.xlu0 %v2146, 16
  %v2188 = vpop.permute.xlu0 %2187
  %2189 = vrot.lane.b32.xlu0 %v2147, 16
  %v2190 = vpop.permute.xlu0 %2189
  %2191 = vrot.lane.b32.xlu0 %v2148, 16
  %v2192 = vpop.permute.xlu0 %2191
  %2193 = vrot.lane.b32.xlu0 %v2149, 16
  %v2194 = vpop.permute.xlu0 %2193
  %2195 = vrot.lane.b32.xlu0 %v2150, 16
  %v2196 = vpop.permute.xlu0 %2195
  %2197 = vrot.lane.b32.xlu0 %v2151, 16
  %v2198 = vpop.permute.xlu0 %2197
  %2199 = vrot.lane.b32.xlu0 %v2152, 16
  %v2200 = vpop.permute.xlu0 %2199
  %vm2217 = vcmask 195712
  %2218 = vst.msk [vmem:[#allocation2] sm:$0xff] %vm2217, %v2170
  %2219 = vst.msk [vmem:[#allocation2 + $0x8] sm:$0xff] %vm2217, %v2172
  %2220 = vst.msk [vmem:[#allocation2 + $0x10] sm:$0xff] %vm2217, %v2174
  %2221 = vst.msk [vmem:[#allocation2 + $0x18] sm:$0xff] %vm2217, %v2176
  %2222 = vst.msk [vmem:[#allocation2 + $0x20] sm:$0xff] %vm2217, %v2178
  %2223 = vst.msk [vmem:[#allocation2 + $0x28] sm:$0xff] %vm2217, %v2180
  %2224 = vst.msk [vmem:[#allocation2 + $0x30] sm:$0xff] %vm2217, %v2182
  %2225 = vst.msk [vmem:[#allocation2 + $0x38] sm:$0xff] %vm2217, %v2184
  %2226 = vst.msk [vmem:[#allocation2 + $0x40] sm:$0xff] %vm2217, %v2186
  %2227 = vst.msk [vmem:[#allocation2 + $0x48] sm:$0xff] %vm2217, %v2188
  %2228 = vst.msk [vmem:[#allocation2 + $0x50] sm:$0xff] %vm2217, %v2190
  %2229 = vst.msk [vmem:[#allocation2 + $0x58] sm:$0xff] %vm2217, %v2192
  %2230 = vst.msk [vmem:[#allocation2 + $0x60] sm:$0xff] %vm2217, %v2194
  %2231 = vst.msk [vmem:[#allocation2 + $0x68] sm:$0xff] %vm2217, %v2196
  %2232 = vst.msk [vmem:[#allocation2 + $0x70] sm:$0xff] %vm2217, %v2198
  %2233 = vst.msk [vmem:[#allocation2 + $0x78] sm:$0xff] %vm2217, %v2200
  %2234 = vrot.lane.b32.xlu0 %v1089, 104
  %v2235 = vpop.permute.xlu0 %2234
  %2236 = vrot.lane.b32.xlu0 %v1090, 104
  %v2237 = vpop.permute.xlu0 %2236
  %2238 = vrot.lane.b32.xlu0 %v1091, 104
  %v2239 = vpop.permute.xlu0 %2238
  %2240 = vrot.lane.b32.xlu0 %v1092, 104
  %v2241 = vpop.permute.xlu0 %2240
  %2242 = vrot.lane.b32.xlu0 %v1093, 104
  %v2243 = vpop.permute.xlu0 %2242
  %2244 = vrot.lane.b32.xlu0 %v1094, 104
  %v2245 = vpop.permute.xlu0 %2244
  %2246 = vrot.lane.b32.xlu0 %v1095, 104
  %v2247 = vpop.permute.xlu0 %2246
  %2248 = vrot.lane.b32.xlu0 %v1096, 104
  %v2249 = vpop.permute.xlu0 %2248
  %2250 = vrot.lane.b32.xlu0 %v1089, 40
  %v2251 = vpop.permute.xlu0 %2250
  %2252 = vrot.lane.b32.xlu0 %v1090, 40
  %v2253 = vpop.permute.xlu0 %2252
  %2254 = vrot.lane.b32.xlu0 %v1091, 40
  %v2255 = vpop.permute.xlu0 %2254
  %2256 = vrot.lane.b32.xlu0 %v1092, 40
  %v2257 = vpop.permute.xlu0 %2256
  %2258 = vrot.lane.b32.xlu0 %v1093, 40
  %v2259 = vpop.permute.xlu0 %2258
  %2260 = vrot.lane.b32.xlu0 %v1094, 40
  %v2261 = vpop.permute.xlu0 %2260
  %2262 = vrot.lane.b32.xlu0 %v1095, 40
  %v2263 = vpop.permute.xlu0 %2262
  %2264 = vrot.lane.b32.xlu0 %v1096, 40
  %v2265 = vpop.permute.xlu0 %2264
  %v2267 = vsel %vm1113, %v2235, 0
  %v2270 = vsel %vm1113, %v2237, 0
  %v2273 = vsel %vm1113, %v2239, 0
  %v2276 = vsel %vm1113, %v2241, 0
  %v2279 = vsel %vm1113, %v2243, 0
  %v2282 = vsel %vm1113, %v2245, 0
  %v2285 = vsel %vm1113, %v2247, 0
  %v2288 = vsel %vm1113, %v2249, 0
  %v2291 = vsel %vm1113, %v2251, 0
  %v2294 = vsel %vm1113, %v2253, 0
  %v2297 = vsel %vm1113, %v2255, 0
  %v2300 = vsel %vm1113, %v2257, 0
  %v2303 = vsel %vm1113, %v2259, 0
  %v2306 = vsel %vm1113, %v2261, 0
  %v2309 = vsel %vm1113, %v2263, 0
  %v2312 = vsel %vm1113, %v2265, 0
  %2314 = vmatpush.bf16.xpose.msra.mxu0 %v2312
  %2315 = vmatpush.bf16.xpose.msra.mxu0 %v2309
  %2316 = vmatpush.bf16.xpose.msra.mxu0 %v2306
  %2317 = vmatpush.bf16.xpose.msra.mxu0 %v2303
  %2318 = vmatpush.bf16.xpose.msra.mxu0 %v2300
  %2319 = vmatpush.bf16.xpose.msra.mxu0 %v2297
  %2320 = vmatpush.bf16.xpose.msra.mxu0 %v2294
  %2321 = vmatpush.bf16.xpose.msra.mxu0 %v2291
  %2322 = vmatmul.bf16.gmra.mxu0 %v2267
  %v2323 = vpop.f32.mrf.mxu0
  %v2324 = vadd.f32 0.0, %v2323
  %v2325 = vpop.f32.mrf.mxu0
  %v2326 = vadd.f32 0.0, %v2325
  %2327 = vmatmul.bf16.gmra.mxu0 %v2270
  %v2328 = vpop.f32.mrf.mxu0
  %v2329 = vadd.f32 0.0, %v2328
  %v2330 = vpop.f32.mrf.mxu0
  %v2331 = vadd.f32 0.0, %v2330
  %2332 = vmatmul.bf16.gmra.mxu0 %v2273
  %v2333 = vpop.f32.mrf.mxu0
  %v2334 = vadd.f32 0.0, %v2333
  %v2335 = vpop.f32.mrf.mxu0
  %v2336 = vadd.f32 0.0, %v2335
  %2337 = vmatmul.bf16.gmra.mxu0 %v2276
  %v2338 = vpop.f32.mrf.mxu0
  %v2339 = vadd.f32 0.0, %v2338
  %v2340 = vpop.f32.mrf.mxu0
  %v2341 = vadd.f32 0.0, %v2340
  %2342 = vmatmul.bf16.gmra.mxu0 %v2279
  %v2343 = vpop.f32.mrf.mxu0
  %v2344 = vadd.f32 0.0, %v2343
  %v2345 = vpop.f32.mrf.mxu0
  %v2346 = vadd.f32 0.0, %v2345
  %2347 = vmatmul.bf16.gmra.mxu0 %v2282
  %v2348 = vpop.f32.mrf.mxu0
  %v2349 = vadd.f32 0.0, %v2348
  %v2350 = vpop.f32.mrf.mxu0
  %v2351 = vadd.f32 0.0, %v2350
  %2352 = vmatmul.bf16.gmra.mxu0 %v2285
  %v2353 = vpop.f32.mrf.mxu0
  %v2354 = vadd.f32 0.0, %v2353
  %v2355 = vpop.f32.mrf.mxu0
  %v2356 = vadd.f32 0.0, %v2355
  %2357 = vmatmul.bf16.gmra.mxu0 %v2288
  %v2358 = vpop.f32.mrf.mxu0
  %v2359 = vadd.f32 0.0, %v2358
  %v2360 = vpop.f32.mrf.mxu0
  %v2361 = vadd.f32 0.0, %v2360
  %2362 = vdwg.mxu0
  %v2363 = vmul.f32 %v2324, 1.442695
  %v2364 = vpow.pop %v2363
  %v2365 = vmul.f32 %v2326, 1.442695
  %v2366 = vpow.pop %v2365
  %v2367 = vmul.f32 %v2329, 1.442695
  %v2368 = vpow.pop %v2367
  %v2369 = vmul.f32 %v2331, 1.442695
  %v2370 = vpow.pop %v2369
  %v2371 = vmul.f32 %v2334, 1.442695
  %v2372 = vpow.pop %v2371
  %v2373 = vmul.f32 %v2336, 1.442695
  %v2374 = vpow.pop %v2373
  %v2375 = vmul.f32 %v2339, 1.442695
  %v2376 = vpow.pop %v2375
  %v2377 = vmul.f32 %v2341, 1.442695
  %v2378 = vpow.pop %v2377
  %v2379 = vmul.f32 %v2344, 1.442695
  %v2380 = vpow.pop %v2379
  %v2381 = vmul.f32 %v2346, 1.442695
  %v2382 = vpow.pop %v2381
  %v2383 = vmul.f32 %v2349, 1.442695
  %v2384 = vpow.pop %v2383
  %v2385 = vmul.f32 %v2351, 1.442695
  %v2386 = vpow.pop %v2385
  %v2387 = vmul.f32 %v2354, 1.442695
  %v2388 = vpow.pop %v2387
  %v2389 = vmul.f32 %v2356, 1.442695
  %v2390 = vpow.pop %v2389
  %v2391 = vmul.f32 %v2359, 1.442695
  %v2392 = vpow.pop %v2391
  %v2393 = vmul.f32 %v2361, 1.442695
  %v2394 = vpow.pop %v2393
  %v2395 = vmul.f32 %v2364, %v1041
  %v2396 = vmul.f32 %v2366, %v1042
  %v2397 = vmul.f32 %v2368, %v1043
  %v2398 = vmul.f32 %v2370, %v1044
  %v2399 = vmul.f32 %v2372, %v1045
  %v2400 = vmul.f32 %v2374, %v1046
  %v2401 = vmul.f32 %v2376, %v1047
  %v2402 = vmul.f32 %v2378, %v1048
  %v2403 = vmul.f32 %v2380, %v1049
  %v2404 = vmul.f32 %v2382, %v1050
  %v2405 = vmul.f32 %v2384, %v1051
  %v2406 = vmul.f32 %v2386, %v1052
  %v2407 = vmul.f32 %v2388, %v1053
  %v2408 = vmul.f32 %v2390, %v1054
  %v2409 = vmul.f32 %v2392, %v1055
  %v2410 = vmul.f32 %v2394, %v1056
  %2411 = vadd.xlane.f32.xlu0 %v2395
  %v2412 = vpop.xlane.xlu0 %2411
  %2413 = vadd.xlane.f32.xlu0 %v2396
  %v2414 = vpop.xlane.xlu0 %2413
  %2415 = vadd.xlane.f32.xlu0 %v2397
  %v2416 = vpop.xlane.xlu0 %2415
  %2417 = vadd.xlane.f32.xlu0 %v2398
  %v2418 = vpop.xlane.xlu0 %2417
  %2419 = vadd.xlane.f32.xlu0 %v2399
  %v2420 = vpop.xlane.xlu0 %2419
  %2421 = vadd.xlane.f32.xlu0 %v2400
  %v2422 = vpop.xlane.xlu0 %2421
  %2423 = vadd.xlane.f32.xlu0 %v2401
  %v2424 = vpop.xlane.xlu0 %2423
  %2425 = vadd.xlane.f32.xlu0 %v2402
  %v2426 = vpop.xlane.xlu0 %2425
  %2427 = vadd.xlane.f32.xlu0 %v2403
  %v2428 = vpop.xlane.xlu0 %2427
  %2429 = vadd.xlane.f32.xlu0 %v2404
  %v2430 = vpop.xlane.xlu0 %2429
  %2431 = vadd.xlane.f32.xlu0 %v2405
  %v2432 = vpop.xlane.xlu0 %2431
  %2433 = vadd.xlane.f32.xlu0 %v2406
  %v2434 = vpop.xlane.xlu0 %2433
  %2435 = vadd.xlane.f32.xlu0 %v2407
  %v2436 = vpop.xlane.xlu0 %2435
  %2437 = vadd.xlane.f32.xlu0 %v2408
  %v2438 = vpop.xlane.xlu0 %2437
  %2439 = vadd.xlane.f32.xlu0 %v2409
  %v2440 = vpop.xlane.xlu0 %2439
  %2441 = vadd.xlane.f32.xlu0 %v2410
  %v2442 = vpop.xlane.xlu0 %2441
  %v2443 = vpack.c.bf16 %v2396, %v2395
  %v2444 = vpack.c.bf16 %v2398, %v2397
  %v2445 = vpack.c.bf16 %v2400, %v2399
  %v2446 = vpack.c.bf16 %v2402, %v2401
  %v2447 = vpack.c.bf16 %v2404, %v2403
  %v2448 = vpack.c.bf16 %v2406, %v2405
  %v2449 = vpack.c.bf16 %v2408, %v2407
  %v2450 = vpack.c.bf16 %v2410, %v2409
  %2451 = vrot.lane.b32.xlu0 %v1315, 104
  %v2452 = vpop.permute.xlu0 %2451
  %2453 = vrot.lane.b32.xlu0 %v1316, 104
  %v2454 = vpop.permute.xlu0 %2453
  %2455 = vrot.lane.b32.xlu0 %v1317, 104
  %v2456 = vpop.permute.xlu0 %2455
  %2457 = vrot.lane.b32.xlu0 %v1318, 104
  %v2458 = vpop.permute.xlu0 %2457
  %2459 = vrot.lane.b32.xlu0 %v1319, 104
  %v2460 = vpop.permute.xlu0 %2459
  %2461 = vrot.lane.b32.xlu0 %v1320, 104
  %v2462 = vpop.permute.xlu0 %2461
  %2463 = vrot.lane.b32.xlu0 %v1321, 104
  %v2464 = vpop.permute.xlu0 %2463
  %2465 = vrot.lane.b32.xlu0 %v1322, 104
  %v2466 = vpop.permute.xlu0 %2465
  %2475 = vmatpush.bf16.msra.mxu0 %v2466
  %2476 = vmatpush.bf16.msra.mxu0 %v2464
  %2477 = vmatpush.bf16.msra.mxu0 %v2462
  %2478 = vmatpush.bf16.msra.mxu0 %v2460
  %2479 = vmatpush.bf16.msra.mxu0 %v2458
  %2480 = vmatpush.bf16.msra.mxu0 %v2456
  %2481 = vmatpush.bf16.msra.mxu0 %v2454
  %2482 = vmatpush.bf16.msra.mxu0 %v2452
  %2483 = vmatmul.bf16.gmra.mxu0 %v2443
  %v2484 = vpop.f32.mrf.mxu0
  %v2485 = vadd.f32 0.0, %v2484
  %v2486 = vpop.f32.mrf.mxu0
  %v2487 = vadd.f32 0.0, %v2486
  %2488 = vmatmul.bf16.gmra.mxu0 %v2444
  %v2489 = vpop.f32.mrf.mxu0
  %v2490 = vadd.f32 0.0, %v2489
  %v2491 = vpop.f32.mrf.mxu0
  %v2492 = vadd.f32 0.0, %v2491
  %2493 = vmatmul.bf16.gmra.mxu0 %v2445
  %v2494 = vpop.f32.mrf.mxu0
  %v2495 = vadd.f32 0.0, %v2494
  %v2496 = vpop.f32.mrf.mxu0
  %v2497 = vadd.f32 0.0, %v2496
  %2498 = vmatmul.bf16.gmra.mxu0 %v2446
  %v2499 = vpop.f32.mrf.mxu0
  %v2500 = vadd.f32 0.0, %v2499
  %v2501 = vpop.f32.mrf.mxu0
  %v2502 = vadd.f32 0.0, %v2501
  %2503 = vmatmul.bf16.gmra.mxu0 %v2447
  %v2504 = vpop.f32.mrf.mxu0
  %v2505 = vadd.f32 0.0, %v2504
  %v2506 = vpop.f32.mrf.mxu0
  %v2507 = vadd.f32 0.0, %v2506
  %2508 = vmatmul.bf16.gmra.mxu0 %v2448
  %v2509 = vpop.f32.mrf.mxu0
  %v2510 = vadd.f32 0.0, %v2509
  %v2511 = vpop.f32.mrf.mxu0
  %v2512 = vadd.f32 0.0, %v2511
  %2513 = vmatmul.bf16.gmra.mxu0 %v2449
  %v2514 = vpop.f32.mrf.mxu0
  %v2515 = vadd.f32 0.0, %v2514
  %v2516 = vpop.f32.mrf.mxu0
  %v2517 = vadd.f32 0.0, %v2516
  %2518 = vmatmul.bf16.gmra.mxu0 %v2450
  %v2519 = vpop.f32.mrf.mxu0
  %v2520 = vadd.f32 0.0, %v2519
  %v2521 = vpop.f32.mrf.mxu0
  %v2522 = vadd.f32 0.0, %v2521
  %2523 = vdwg.mxu0
  %v2524 = vrcp.pop %v2412
  %v2525 = vrcp.pop %v2414
  %v2526 = vrcp.pop %v2416
  %v2527 = vrcp.pop %v2418
  %v2528 = vrcp.pop %v2420
  %v2529 = vrcp.pop %v2422
  %v2530 = vrcp.pop %v2424
  %v2531 = vrcp.pop %v2426
  %v2532 = vrcp.pop %v2428
  %v2533 = vrcp.pop %v2430
  %v2534 = vrcp.pop %v2432
  %v2535 = vrcp.pop %v2434
  %v2536 = vrcp.pop %v2436
  %v2537 = vrcp.pop %v2438
  %v2538 = vrcp.pop %v2440
  %v2539 = vrcp.pop %v2442
  %v2540 = vmul.f32 %v2485, %v2524
  %v2541 = vmul.f32 %v2487, %v2525
  %v2542 = vmul.f32 %v2490, %v2526
  %v2543 = vmul.f32 %v2492, %v2527
  %v2544 = vmul.f32 %v2495, %v2528
  %v2545 = vmul.f32 %v2497, %v2529
  %v2546 = vmul.f32 %v2500, %v2530
  %v2547 = vmul.f32 %v2502, %v2531
  %v2548 = vmul.f32 %v2505, %v2532
  %v2549 = vmul.f32 %v2507, %v2533
  %v2550 = vmul.f32 %v2510, %v2534
  %v2551 = vmul.f32 %v2512, %v2535
  %v2552 = vmul.f32 %v2515, %v2536
  %v2553 = vmul.f32 %v2517, %v2537
  %v2554 = vmul.f32 %v2520, %v2538
  %v2555 = vmul.f32 %v2522, %v2539
  %2572 = vrot.lane.b32.xlu0 %v2540, 24
  %v2573 = vpop.permute.xlu0 %2572
  %2574 = vrot.lane.b32.xlu0 %v2541, 24
  %v2575 = vpop.permute.xlu0 %2574
  %2576 = vrot.lane.b32.xlu0 %v2542, 24
  %v2577 = vpop.permute.xlu0 %2576
  %2578 = vrot.lane.b32.xlu0 %v2543, 24
  %v2579 = vpop.permute.xlu0 %2578
  %2580 = vrot.lane.b32.xlu0 %v2544, 24
  %v2581 = vpop.permute.xlu0 %2580
  %2582 = vrot.lane.b32.xlu0 %v2545, 24
  %v2583 = vpop.permute.xlu0 %2582
  %2584 = vrot.lane.b32.xlu0 %v2546, 24
  %v2585 = vpop.permute.xlu0 %2584
  %2586 = vrot.lane.b32.xlu0 %v2547, 24
  %v2587 = vpop.permute.xlu0 %2586
  %2588 = vrot.lane.b32.xlu0 %v2548, 24
  %v2589 = vpop.permute.xlu0 %2588
  %2590 = vrot.lane.b32.xlu0 %v2549, 24
  %v2591 = vpop.permute.xlu0 %2590
  %2592 = vrot.lane.b32.xlu0 %v2550, 24
  %v2593 = vpop.permute.xlu0 %2592
  %2594 = vrot.lane.b32.xlu0 %v2551, 24
  %v2595 = vpop.permute.xlu0 %2594
  %2596 = vrot.lane.b32.xlu0 %v2552, 24
  %v2597 = vpop.permute.xlu0 %2596
  %2598 = vrot.lane.b32.xlu0 %v2553, 24
  %v2599 = vpop.permute.xlu0 %2598
  %2600 = vrot.lane.b32.xlu0 %v2554, 24
  %v2601 = vpop.permute.xlu0 %2600
  %2602 = vrot.lane.b32.xlu0 %v2555, 24
  %v2603 = vpop.permute.xlu0 %2602
  %vm2620 = vcmask 261312
  %2621 = vst.msk [vmem:[#allocation2] sm:$0xff] %vm2620, %v2573
  %2622 = vst.msk [vmem:[#allocation2 + $0x8] sm:$0xff] %vm2620, %v2575
  %2623 = vst.msk [vmem:[#allocation2 + $0x10] sm:$0xff] %vm2620, %v2577
  %2624 = vst.msk [vmem:[#allocation2 + $0x18] sm:$0xff] %vm2620, %v2579
  %2625 = vst.msk [vmem:[#allocation2 + $0x20] sm:$0xff] %vm2620, %v2581
  %2626 = vst.msk [vmem:[#allocation2 + $0x28] sm:$0xff] %vm2620, %v2583
  %2627 = vst.msk [vmem:[#allocation2 + $0x30] sm:$0xff] %vm2620, %v2585
  %2628 = vst.msk [vmem:[#allocation2 + $0x38] sm:$0xff] %vm2620, %v2587
  %2629 = vst.msk [vmem:[#allocation2 + $0x40] sm:$0xff] %vm2620, %v2589
  %2630 = vst.msk [vmem:[#allocation2 + $0x48] sm:$0xff] %vm2620, %v2591
  %2631 = vst.msk [vmem:[#allocation2 + $0x50] sm:$0xff] %vm2620, %v2593
  %2632 = vst.msk [vmem:[#allocation2 + $0x58] sm:$0xff] %vm2620, %v2595
  %2633 = vst.msk [vmem:[#allocation2 + $0x60] sm:$0xff] %vm2620, %v2597
  %2634 = vst.msk [vmem:[#allocation2 + $0x68] sm:$0xff] %vm2620, %v2599
  %2635 = vst.msk [vmem:[#allocation2 + $0x70] sm:$0xff] %vm2620, %v2601
  %2636 = vst.msk [vmem:[#allocation2 + $0x78] sm:$0xff] %vm2620, %v2603
  %2637 = vrot.lane.b32.xlu0 %v1089, 96
  %v2638 = vpop.permute.xlu0 %2637
  %2639 = vrot.lane.b32.xlu0 %v1090, 96
  %v2640 = vpop.permute.xlu0 %2639
  %2641 = vrot.lane.b32.xlu0 %v1091, 96
  %v2642 = vpop.permute.xlu0 %2641
  %2643 = vrot.lane.b32.xlu0 %v1092, 96
  %v2644 = vpop.permute.xlu0 %2643
  %2645 = vrot.lane.b32.xlu0 %v1093, 96
  %v2646 = vpop.permute.xlu0 %2645
  %2647 = vrot.lane.b32.xlu0 %v1094, 96
  %v2648 = vpop.permute.xlu0 %2647
  %2649 = vrot.lane.b32.xlu0 %v1095, 96
  %v2650 = vpop.permute.xlu0 %2649
  %2651 = vrot.lane.b32.xlu0 %v1096, 96
  %v2652 = vpop.permute.xlu0 %2651
  %2653 = vrot.lane.b32.xlu0 %v1089, 32
  %v2654 = vpop.permute.xlu0 %2653
  %2655 = vrot.lane.b32.xlu0 %v1090, 32
  %v2656 = vpop.permute.xlu0 %2655
  %2657 = vrot.lane.b32.xlu0 %v1091, 32
  %v2658 = vpop.permute.xlu0 %2657
  %2659 = vrot.lane.b32.xlu0 %v1092, 32
  %v2660 = vpop.permute.xlu0 %2659
  %2661 = vrot.lane.b32.xlu0 %v1093, 32
  %v2662 = vpop.permute.xlu0 %2661
  %2663 = vrot.lane.b32.xlu0 %v1094, 32
  %v2664 = vpop.permute.xlu0 %2663
  %2665 = vrot.lane.b32.xlu0 %v1095, 32
  %v2666 = vpop.permute.xlu0 %2665
  %2667 = vrot.lane.b32.xlu0 %v1096, 32
  %v2668 = vpop.permute.xlu0 %2667
  %v2670 = vsel %vm1113, %v2638, 0
  %v2673 = vsel %vm1113, %v2640, 0
  %v2676 = vsel %vm1113, %v2642, 0
  %v2679 = vsel %vm1113, %v2644, 0
  %v2682 = vsel %vm1113, %v2646, 0
  %v2685 = vsel %vm1113, %v2648, 0
  %v2688 = vsel %vm1113, %v2650, 0
  %v2691 = vsel %vm1113, %v2652, 0
  %v2694 = vsel %vm1113, %v2654, 0
  %v2697 = vsel %vm1113, %v2656, 0
  %v2700 = vsel %vm1113, %v2658, 0
  %v2703 = vsel %vm1113, %v2660, 0
  %v2706 = vsel %vm1113, %v2662, 0
  %v2709 = vsel %vm1113, %v2664, 0
  %v2712 = vsel %vm1113, %v2666, 0
  %v2715 = vsel %vm1113, %v2668, 0
  %2717 = vmatpush.bf16.xpose.msra.mxu0 %v2715
  %2718 = vmatpush.bf16.xpose.msra.mxu0 %v2712
  %2719 = vmatpush.bf16.xpose.msra.mxu0 %v2709
  %2720 = vmatpush.bf16.xpose.msra.mxu0 %v2706
  %2721 = vmatpush.bf16.xpose.msra.mxu0 %v2703
  %2722 = vmatpush.bf16.xpose.msra.mxu0 %v2700
  %2723 = vmatpush.bf16.xpose.msra.mxu0 %v2697
  %2724 = vmatpush.bf16.xpose.msra.mxu0 %v2694
  %2725 = vmatmul.bf16.gmra.mxu0 %v2670
  %v2726 = vpop.f32.mrf.mxu0
  %v2727 = vadd.f32 0.0, %v2726
  %v2728 = vpop.f32.mrf.mxu0
  %v2729 = vadd.f32 0.0, %v2728
  %2730 = vmatmul.bf16.gmra.mxu0 %v2673
  %v2731 = vpop.f32.mrf.mxu0
  %v2732 = vadd.f32 0.0, %v2731
  %v2733 = vpop.f32.mrf.mxu0
  %v2734 = vadd.f32 0.0, %v2733
  %2735 = vmatmul.bf16.gmra.mxu0 %v2676
  %v2736 = vpop.f32.mrf.mxu0
  %v2737 = vadd.f32 0.0, %v2736
  %v2738 = vpop.f32.mrf.mxu0
  %v2739 = vadd.f32 0.0, %v2738
  %2740 = vmatmul.bf16.gmra.mxu0 %v2679
  %v2741 = vpop.f32.mrf.mxu0
  %v2742 = vadd.f32 0.0, %v2741
  %v2743 = vpop.f32.mrf.mxu0
  %v2744 = vadd.f32 0.0, %v2743
  %2745 = vmatmul.bf16.gmra.mxu0 %v2682
  %v2746 = vpop.f32.mrf.mxu0
  %v2747 = vadd.f32 0.0, %v2746
  %v2748 = vpop.f32.mrf.mxu0
  %v2749 = vadd.f32 0.0, %v2748
  %2750 = vmatmul.bf16.gmra.mxu0 %v2685
  %v2751 = vpop.f32.mrf.mxu0
  %v2752 = vadd.f32 0.0, %v2751
  %v2753 = vpop.f32.mrf.mxu0
  %v2754 = vadd.f32 0.0, %v2753
  %2755 = vmatmul.bf16.gmra.mxu0 %v2688
  %v2756 = vpop.f32.mrf.mxu0
  %v2757 = vadd.f32 0.0, %v2756
  %v2758 = vpop.f32.mrf.mxu0
  %v2759 = vadd.f32 0.0, %v2758
  %2760 = vmatmul.bf16.gmra.mxu0 %v2691
  %v2761 = vpop.f32.mrf.mxu0
  %v2762 = vadd.f32 0.0, %v2761
  %v2763 = vpop.f32.mrf.mxu0
  %v2764 = vadd.f32 0.0, %v2763
  %2765 = vdwg.mxu0
  %v2766 = vmul.f32 %v2727, 1.442695
  %v2767 = vpow.pop %v2766
  %v2768 = vmul.f32 %v2729, 1.442695
  %v2769 = vpow.pop %v2768
  %v2770 = vmul.f32 %v2732, 1.442695
  %v2771 = vpow.pop %v2770
  %v2772 = vmul.f32 %v2734, 1.442695
  %v2773 = vpow.pop %v2772
  %v2774 = vmul.f32 %v2737, 1.442695
  %v2775 = vpow.pop %v2774
  %v2776 = vmul.f32 %v2739, 1.442695
  %v2777 = vpow.pop %v2776
  %v2778 = vmul.f32 %v2742, 1.442695
  %v2779 = vpow.pop %v2778
  %v2780 = vmul.f32 %v2744, 1.442695
  %v2781 = vpow.pop %v2780
  %v2782 = vmul.f32 %v2747, 1.442695
  %v2783 = vpow.pop %v2782
  %v2784 = vmul.f32 %v2749, 1.442695
  %v2785 = vpow.pop %v2784
  %v2786 = vmul.f32 %v2752, 1.442695
  %v2787 = vpow.pop %v2786
  %v2788 = vmul.f32 %v2754, 1.442695
  %v2789 = vpow.pop %v2788
  %v2790 = vmul.f32 %v2757, 1.442695
  %v2791 = vpow.pop %v2790
  %v2792 = vmul.f32 %v2759, 1.442695
  %v2793 = vpow.pop %v2792
  %v2794 = vmul.f32 %v2762, 1.442695
  %v2795 = vpow.pop %v2794
  %v2796 = vmul.f32 %v2764, 1.442695
  %v2797 = vpow.pop %v2796
  %v2798 = vmul.f32 %v2767, %v1041
  %v2799 = vmul.f32 %v2769, %v1042
  %v2800 = vmul.f32 %v2771, %v1043
  %v2801 = vmul.f32 %v2773, %v1044
  %v2802 = vmul.f32 %v2775, %v1045
  %v2803 = vmul.f32 %v2777, %v1046
  %v2804 = vmul.f32 %v2779, %v1047
  %v2805 = vmul.f32 %v2781, %v1048
  %v2806 = vmul.f32 %v2783, %v1049
  %v2807 = vmul.f32 %v2785, %v1050
  %v2808 = vmul.f32 %v2787, %v1051
  %v2809 = vmul.f32 %v2789, %v1052
  %v2810 = vmul.f32 %v2791, %v1053
  %v2811 = vmul.f32 %v2793, %v1054
  %v2812 = vmul.f32 %v2795, %v1055
  %v2813 = vmul.f32 %v2797, %v1056
  %2814 = vadd.xlane.f32.xlu0 %v2798
  %v2815 = vpop.xlane.xlu0 %2814
  %2816 = vadd.xlane.f32.xlu0 %v2799
  %v2817 = vpop.xlane.xlu0 %2816
  %2818 = vadd.xlane.f32.xlu0 %v2800
  %v2819 = vpop.xlane.xlu0 %2818
  %2820 = vadd.xlane.f32.xlu0 %v2801
  %v2821 = vpop.xlane.xlu0 %2820
  %2822 = vadd.xlane.f32.xlu0 %v2802
  %v2823 = vpop.xlane.xlu0 %2822
  %2824 = vadd.xlane.f32.xlu0 %v2803
  %v2825 = vpop.xlane.xlu0 %2824
  %2826 = vadd.xlane.f32.xlu0 %v2804
  %v2827 = vpop.xlane.xlu0 %2826
  %2828 = vadd.xlane.f32.xlu0 %v2805
  %v2829 = vpop.xlane.xlu0 %2828
  %2830 = vadd.xlane.f32.xlu0 %v2806
  %v2831 = vpop.xlane.xlu0 %2830
  %2832 = vadd.xlane.f32.xlu0 %v2807
  %v2833 = vpop.xlane.xlu0 %2832
  %2834 = vadd.xlane.f32.xlu0 %v2808
  %v2835 = vpop.xlane.xlu0 %2834
  %2836 = vadd.xlane.f32.xlu0 %v2809
  %v2837 = vpop.xlane.xlu0 %2836
  %2838 = vadd.xlane.f32.xlu0 %v2810
  %v2839 = vpop.xlane.xlu0 %2838
  %2840 = vadd.xlane.f32.xlu0 %v2811
  %v2841 = vpop.xlane.xlu0 %2840
  %2842 = vadd.xlane.f32.xlu0 %v2812
  %v2843 = vpop.xlane.xlu0 %2842
  %2844 = vadd.xlane.f32.xlu0 %v2813
  %v2845 = vpop.xlane.xlu0 %2844
  %v2846 = vpack.c.bf16 %v2799, %v2798
  %v2847 = vpack.c.bf16 %v2801, %v2800
  %v2848 = vpack.c.bf16 %v2803, %v2802
  %v2849 = vpack.c.bf16 %v2805, %v2804
  %v2850 = vpack.c.bf16 %v2807, %v2806
  %v2851 = vpack.c.bf16 %v2809, %v2808
  %v2852 = vpack.c.bf16 %v2811, %v2810
  %v2853 = vpack.c.bf16 %v2813, %v2812
  %2854 = vrot.lane.b32.xlu0 %v1315, 96
  %v2855 = vpop.permute.xlu0 %2854
  %2856 = vrot.lane.b32.xlu0 %v1316, 96
  %v2857 = vpop.permute.xlu0 %2856
  %2858 = vrot.lane.b32.xlu0 %v1317, 96
  %v2859 = vpop.permute.xlu0 %2858
  %2860 = vrot.lane.b32.xlu0 %v1318, 96
  %v2861 = vpop.permute.xlu0 %2860
  %2862 = vrot.lane.b32.xlu0 %v1319, 96
  %v2863 = vpop.permute.xlu0 %2862
  %2864 = vrot.lane.b32.xlu0 %v1320, 96
  %v2865 = vpop.permute.xlu0 %2864
  %2866 = vrot.lane.b32.xlu0 %v1321, 96
  %v2867 = vpop.permute.xlu0 %2866
  %2868 = vrot.lane.b32.xlu0 %v1322, 96
  %v2869 = vpop.permute.xlu0 %2868
  %2878 = vmatpush.bf16.msra.mxu0 %v2869
  %2879 = vmatpush.bf16.msra.mxu0 %v2867
  %2880 = vmatpush.bf16.msra.mxu0 %v2865
  %2881 = vmatpush.bf16.msra.mxu0 %v2863
  %2882 = vmatpush.bf16.msra.mxu0 %v2861
  %2883 = vmatpush.bf16.msra.mxu0 %v2859
  %2884 = vmatpush.bf16.msra.mxu0 %v2857
  %2885 = vmatpush.bf16.msra.mxu0 %v2855
  %2886 = vmatmul.bf16.gmra.mxu0 %v2846
  %v2887 = vpop.f32.mrf.mxu0
  %v2888 = vadd.f32 0.0, %v2887
  %v2889 = vpop.f32.mrf.mxu0
  %v2890 = vadd.f32 0.0, %v2889
  %2891 = vmatmul.bf16.gmra.mxu0 %v2847
  %v2892 = vpop.f32.mrf.mxu0
  %v2893 = vadd.f32 0.0, %v2892
  %v2894 = vpop.f32.mrf.mxu0
  %v2895 = vadd.f32 0.0, %v2894
  %2896 = vmatmul.bf16.gmra.mxu0 %v2848
  %v2897 = vpop.f32.mrf.mxu0
  %v2898 = vadd.f32 0.0, %v2897
  %v2899 = vpop.f32.mrf.mxu0
  %v2900 = vadd.f32 0.0, %v2899
  %2901 = vmatmul.bf16.gmra.mxu0 %v2849
  %v2902 = vpop.f32.mrf.mxu0
  %v2903 = vadd.f32 0.0, %v2902
  %v2904 = vpop.f32.mrf.mxu0
  %v2905 = vadd.f32 0.0, %v2904
  %2906 = vmatmul.bf16.gmra.mxu0 %v2850
  %v2907 = vpop.f32.mrf.mxu0
  %v2908 = vadd.f32 0.0, %v2907
  %v2909 = vpop.f32.mrf.mxu0
  %v2910 = vadd.f32 0.0, %v2909
  %2911 = vmatmul.bf16.gmra.mxu0 %v2851
  %v2912 = vpop.f32.mrf.mxu0
  %v2913 = vadd.f32 0.0, %v2912
  %v2914 = vpop.f32.mrf.mxu0
  %v2915 = vadd.f32 0.0, %v2914
  %2916 = vmatmul.bf16.gmra.mxu0 %v2852
  %v2917 = vpop.f32.mrf.mxu0
  %v2918 = vadd.f32 0.0, %v2917
  %v2919 = vpop.f32.mrf.mxu0
  %v2920 = vadd.f32 0.0, %v2919
  %2921 = vmatmul.bf16.gmra.mxu0 %v2853
  %v2922 = vpop.f32.mrf.mxu0
  %v2923 = vadd.f32 0.0, %v2922
  %v2924 = vpop.f32.mrf.mxu0
  %v2925 = vadd.f32 0.0, %v2924
  %2926 = vdwg.mxu0
  %v2927 = vrcp.pop %v2815
  %v2928 = vrcp.pop %v2817
  %v2929 = vrcp.pop %v2819
  %v2930 = vrcp.pop %v2821
  %v2931 = vrcp.pop %v2823
  %v2932 = vrcp.pop %v2825
  %v2933 = vrcp.pop %v2827
  %v2934 = vrcp.pop %v2829
  %v2935 = vrcp.pop %v2831
  %v2936 = vrcp.pop %v2833
  %v2937 = vrcp.pop %v2835
  %v2938 = vrcp.pop %v2837
  %v2939 = vrcp.pop %v2839
  %v2940 = vrcp.pop %v2841
  %v2941 = vrcp.pop %v2843
  %v2942 = vrcp.pop %v2845
  %v2943 = vmul.f32 %v2888, %v2927
  %v2944 = vmul.f32 %v2890, %v2928
  %v2945 = vmul.f32 %v2893, %v2929
  %v2946 = vmul.f32 %v2895, %v2930
  %v2947 = vmul.f32 %v2898, %v2931
  %v2948 = vmul.f32 %v2900, %v2932
  %v2949 = vmul.f32 %v2903, %v2933
  %v2950 = vmul.f32 %v2905, %v2934
  %v2951 = vmul.f32 %v2908, %v2935
  %v2952 = vmul.f32 %v2910, %v2936
  %v2953 = vmul.f32 %v2913, %v2937
  %v2954 = vmul.f32 %v2915, %v2938
  %v2955 = vmul.f32 %v2918, %v2939
  %v2956 = vmul.f32 %v2920, %v2940
  %v2957 = vmul.f32 %v2923, %v2941
  %v2958 = vmul.f32 %v2925, %v2942
  %2975 = vrot.lane.b32.xlu0 %v2943, 32
  %v2976 = vpop.permute.xlu0 %2975
  %2977 = vrot.lane.b32.xlu0 %v2944, 32
  %v2978 = vpop.permute.xlu0 %2977
  %2979 = vrot.lane.b32.xlu0 %v2945, 32
  %v2980 = vpop.permute.xlu0 %2979
  %2981 = vrot.lane.b32.xlu0 %v2946, 32
  %v2982 = vpop.permute.xlu0 %2981
  %2983 = vrot.lane.b32.xlu0 %v2947, 32
  %v2984 = vpop.permute.xlu0 %2983
  %2985 = vrot.lane.b32.xlu0 %v2948, 32
  %v2986 = vpop.permute.xlu0 %2985
  %2987 = vrot.lane.b32.xlu0 %v2949, 32
  %v2988 = vpop.permute.xlu0 %2987
  %2989 = vrot.lane.b32.xlu0 %v2950, 32
  %v2990 = vpop.permute.xlu0 %2989
  %2991 = vrot.lane.b32.xlu0 %v2951, 32
  %v2992 = vpop.permute.xlu0 %2991
  %2993 = vrot.lane.b32.xlu0 %v2952, 32
  %v2994 = vpop.permute.xlu0 %2993
  %2995 = vrot.lane.b32.xlu0 %v2953, 32
  %v2996 = vpop.permute.xlu0 %2995
  %2997 = vrot.lane.b32.xlu0 %v2954, 32
  %v2998 = vpop.permute.xlu0 %2997
  %2999 = vrot.lane.b32.xlu0 %v2955, 32
  %v3000 = vpop.permute.xlu0 %2999
  %3001 = vrot.lane.b32.xlu0 %v2956, 32
  %v3002 = vpop.permute.xlu0 %3001
  %3003 = vrot.lane.b32.xlu0 %v2957, 32
  %v3004 = vpop.permute.xlu0 %3003
  %3005 = vrot.lane.b32.xlu0 %v2958, 32
  %v3006 = vpop.permute.xlu0 %3005
  %vm3023 = vcmask 326912
  %3024 = vst.msk [vmem:[#allocation2] sm:$0xff] %vm3023, %v2976
  %3025 = vst.msk [vmem:[#allocation2 + $0x8] sm:$0xff] %vm3023, %v2978
  %3026 = vst.msk [vmem:[#allocation2 + $0x10] sm:$0xff] %vm3023, %v2980
  %3027 = vst.msk [vmem:[#allocation2 + $0x18] sm:$0xff] %vm3023, %v2982
  %3028 = vst.msk [vmem:[#allocation2 + $0x20] sm:$0xff] %vm3023, %v2984
  %3029 = vst.msk [vmem:[#allocation2 + $0x28] sm:$0xff] %vm3023, %v2986
  %3030 = vst.msk [vmem:[#allocation2 + $0x30] sm:$0xff] %vm3023, %v2988
  %3031 = vst.msk [vmem:[#allocation2 + $0x38] sm:$0xff] %vm3023, %v2990
  %3032 = vst.msk [vmem:[#allocation2 + $0x40] sm:$0xff] %vm3023, %v2992
  %3033 = vst.msk [vmem:[#allocation2 + $0x48] sm:$0xff] %vm3023, %v2994
  %3034 = vst.msk [vmem:[#allocation2 + $0x50] sm:$0xff] %vm3023, %v2996
  %3035 = vst.msk [vmem:[#allocation2 + $0x58] sm:$0xff] %vm3023, %v2998
  %3036 = vst.msk [vmem:[#allocation2 + $0x60] sm:$0xff] %vm3023, %v3000
  %3037 = vst.msk [vmem:[#allocation2 + $0x68] sm:$0xff] %vm3023, %v3002
  %3038 = vst.msk [vmem:[#allocation2 + $0x70] sm:$0xff] %vm3023, %v3004
  %3039 = vst.msk [vmem:[#allocation2 + $0x78] sm:$0xff] %vm3023, %v3006
  %3040 = vrot.lane.b32.xlu0 %v1089, 88
  %v3041 = vpop.permute.xlu0 %3040
  %3042 = vrot.lane.b32.xlu0 %v1090, 88
  %v3043 = vpop.permute.xlu0 %3042
  %3044 = vrot.lane.b32.xlu0 %v1091, 88
  %v3045 = vpop.permute.xlu0 %3044
  %3046 = vrot.lane.b32.xlu0 %v1092, 88
  %v3047 = vpop.permute.xlu0 %3046
  %3048 = vrot.lane.b32.xlu0 %v1093, 88
  %v3049 = vpop.permute.xlu0 %3048
  %3050 = vrot.lane.b32.xlu0 %v1094, 88
  %v3051 = vpop.permute.xlu0 %3050
  %3052 = vrot.lane.b32.xlu0 %v1095, 88
  %v3053 = vpop.permute.xlu0 %3052
  %3054 = vrot.lane.b32.xlu0 %v1096, 88
  %v3055 = vpop.permute.xlu0 %3054
  %3056 = vrot.lane.b32.xlu0 %v1089, 24
  %v3057 = vpop.permute.xlu0 %3056
  %3058 = vrot.lane.b32.xlu0 %v1090, 24
  %v3059 = vpop.permute.xlu0 %3058
  %3060 = vrot.lane.b32.xlu0 %v1091, 24
  %v3061 = vpop.permute.xlu0 %3060
  %3062 = vrot.lane.b32.xlu0 %v1092, 24
  %v3063 = vpop.permute.xlu0 %3062
  %3064 = vrot.lane.b32.xlu0 %v1093, 24
  %v3065 = vpop.permute.xlu0 %3064
  %3066 = vrot.lane.b32.xlu0 %v1094, 24
  %v3067 = vpop.permute.xlu0 %3066
  %3068 = vrot.lane.b32.xlu0 %v1095, 24
  %v3069 = vpop.permute.xlu0 %3068
  %3070 = vrot.lane.b32.xlu0 %v1096, 24
  %v3071 = vpop.permute.xlu0 %3070
  %v3073 = vsel %vm1113, %v3041, 0
  %v3076 = vsel %vm1113, %v3043, 0
  %v3079 = vsel %vm1113, %v3045, 0
  %v3082 = vsel %vm1113, %v3047, 0
  %v3085 = vsel %vm1113, %v3049, 0
  %v3088 = vsel %vm1113, %v3051, 0
  %v3091 = vsel %vm1113, %v3053, 0
  %v3094 = vsel %vm1113, %v3055, 0
  %v3097 = vsel %vm1113, %v3057, 0
  %v3100 = vsel %vm1113, %v3059, 0
  %v3103 = vsel %vm1113, %v3061, 0
  %v3106 = vsel %vm1113, %v3063, 0
  %v3109 = vsel %vm1113, %v3065, 0
  %v3112 = vsel %vm1113, %v3067, 0
  %v3115 = vsel %vm1113, %v3069, 0
  %v3118 = vsel %vm1113, %v3071, 0
  %3120 = vmatpush.bf16.xpose.msra.mxu0 %v3118
  %3121 = vmatpush.bf16.xpose.msra.mxu0 %v3115
  %3122 = vmatpush.bf16.xpose.msra.mxu0 %v3112
  %3123 = vmatpush.bf16.xpose.msra.mxu0 %v3109
  %3124 = vmatpush.bf16.xpose.msra.mxu0 %v3106
  %3125 = vmatpush.bf16.xpose.msra.mxu0 %v3103
  %3126 = vmatpush.bf16.xpose.msra.mxu0 %v3100
  %3127 = vmatpush.bf16.xpose.msra.mxu0 %v3097
  %3128 = vmatmul.bf16.gmra.mxu0 %v3073
  %v3129 = vpop.f32.mrf.mxu0
  %v3130 = vadd.f32 0.0, %v3129
  %v3131 = vpop.f32.mrf.mxu0
  %v3132 = vadd.f32 0.0, %v3131
  %3133 = vmatmul.bf16.gmra.mxu0 %v3076
  %v3134 = vpop.f32.mrf.mxu0
  %v3135 = vadd.f32 0.0, %v3134
  %v3136 = vpop.f32.mrf.mxu0
  %v3137 = vadd.f32 0.0, %v3136
  %3138 = vmatmul.bf16.gmra.mxu0 %v3079
  %v3139 = vpop.f32.mrf.mxu0
  %v3140 = vadd.f32 0.0, %v3139
  %v3141 = vpop.f32.mrf.mxu0
  %v3142 = vadd.f32 0.0, %v3141
  %3143 = vmatmul.bf16.gmra.mxu0 %v3082
  %v3144 = vpop.f32.mrf.mxu0
  %v3145 = vadd.f32 0.0, %v3144
  %v3146 = vpop.f32.mrf.mxu0
  %v3147 = vadd.f32 0.0, %v3146
  %3148 = vmatmul.bf16.gmra.mxu0 %v3085
  %v3149 = vpop.f32.mrf.mxu0
  %v3150 = vadd.f32 0.0, %v3149
  %v3151 = vpop.f32.mrf.mxu0
  %v3152 = vadd.f32 0.0, %v3151
  %3153 = vmatmul.bf16.gmra.mxu0 %v3088
  %v3154 = vpop.f32.mrf.mxu0
  %v3155 = vadd.f32 0.0, %v3154
  %v3156 = vpop.f32.mrf.mxu0
  %v3157 = vadd.f32 0.0, %v3156
  %3158 = vmatmul.bf16.gmra.mxu0 %v3091
  %v3159 = vpop.f32.mrf.mxu0
  %v3160 = vadd.f32 0.0, %v3159
  %v3161 = vpop.f32.mrf.mxu0
  %v3162 = vadd.f32 0.0, %v3161
  %3163 = vmatmul.bf16.gmra.mxu0 %v3094
  %v3164 = vpop.f32.mrf.mxu0
  %v3165 = vadd.f32 0.0, %v3164
  %v3166 = vpop.f32.mrf.mxu0
  %v3167 = vadd.f32 0.0, %v3166
  %3168 = vdwg.mxu0
  %v3169 = vmul.f32 %v3130, 1.442695
  %v3170 = vpow.pop %v3169
  %v3171 = vmul.f32 %v3132, 1.442695
  %v3172 = vpow.pop %v3171
  %v3173 = vmul.f32 %v3135, 1.442695
  %v3174 = vpow.pop %v3173
  %v3175 = vmul.f32 %v3137, 1.442695
  %v3176 = vpow.pop %v3175
  %v3177 = vmul.f32 %v3140, 1.442695
  %v3178 = vpow.pop %v3177
  %v3179 = vmul.f32 %v3142, 1.442695
  %v3180 = vpow.pop %v3179
  %v3181 = vmul.f32 %v3145, 1.442695
  %v3182 = vpow.pop %v3181
  %v3183 = vmul.f32 %v3147, 1.442695
  %v3184 = vpow.pop %v3183
  %v3185 = vmul.f32 %v3150, 1.442695
  %v3186 = vpow.pop %v3185
  %v3187 = vmul.f32 %v3152, 1.442695
  %v3188 = vpow.pop %v3187
  %v3189 = vmul.f32 %v3155, 1.442695
  %v3190 = vpow.pop %v3189
  %v3191 = vmul.f32 %v3157, 1.442695
  %v3192 = vpow.pop %v3191
  %v3193 = vmul.f32 %v3160, 1.442695
  %v3194 = vpow.pop %v3193
  %v3195 = vmul.f32 %v3162, 1.442695
  %v3196 = vpow.pop %v3195
  %v3197 = vmul.f32 %v3165, 1.442695
  %v3198 = vpow.pop %v3197
  %v3199 = vmul.f32 %v3167, 1.442695
  %v3200 = vpow.pop %v3199
  %v3201 = vmul.f32 %v3170, %v1041
  %v3202 = vmul.f32 %v3172, %v1042
  %v3203 = vmul.f32 %v3174, %v1043
  %v3204 = vmul.f32 %v3176, %v1044
  %v3205 = vmul.f32 %v3178, %v1045
  %v3206 = vmul.f32 %v3180, %v1046
  %v3207 = vmul.f32 %v3182, %v1047
  %v3208 = vmul.f32 %v3184, %v1048
  %v3209 = vmul.f32 %v3186, %v1049
  %v3210 = vmul.f32 %v3188, %v1050
  %v3211 = vmul.f32 %v3190, %v1051
  %v3212 = vmul.f32 %v3192, %v1052
  %v3213 = vmul.f32 %v3194, %v1053
  %v3214 = vmul.f32 %v3196, %v1054
  %v3215 = vmul.f32 %v3198, %v1055
  %v3216 = vmul.f32 %v3200, %v1056
  %3217 = vadd.xlane.f32.xlu0 %v3201
  %v3218 = vpop.xlane.xlu0 %3217
  %3219 = vadd.xlane.f32.xlu0 %v3202
  %v3220 = vpop.xlane.xlu0 %3219
  %3221 = vadd.xlane.f32.xlu0 %v3203
  %v3222 = vpop.xlane.xlu0 %3221
  %3223 = vadd.xlane.f32.xlu0 %v3204
  %v3224 = vpop.xlane.xlu0 %3223
  %3225 = vadd.xlane.f32.xlu0 %v3205
  %v3226 = vpop.xlane.xlu0 %3225
  %3227 = vadd.xlane.f32.xlu0 %v3206
  %v3228 = vpop.xlane.xlu0 %3227
  %3229 = vadd.xlane.f32.xlu0 %v3207
  %v3230 = vpop.xlane.xlu0 %3229
  %3231 = vadd.xlane.f32.xlu0 %v3208
  %v3232 = vpop.xlane.xlu0 %3231
  %3233 = vadd.xlane.f32.xlu0 %v3209
  %v3234 = vpop.xlane.xlu0 %3233
  %3235 = vadd.xlane.f32.xlu0 %v3210
  %v3236 = vpop.xlane.xlu0 %3235
  %3237 = vadd.xlane.f32.xlu0 %v3211
  %v3238 = vpop.xlane.xlu0 %3237
  %3239 = vadd.xlane.f32.xlu0 %v3212
  %v3240 = vpop.xlane.xlu0 %3239
  %3241 = vadd.xlane.f32.xlu0 %v3213
  %v3242 = vpop.xlane.xlu0 %3241
  %3243 = vadd.xlane.f32.xlu0 %v3214
  %v3244 = vpop.xlane.xlu0 %3243
  %3245 = vadd.xlane.f32.xlu0 %v3215
  %v3246 = vpop.xlane.xlu0 %3245
  %3247 = vadd.xlane.f32.xlu0 %v3216
  %v3248 = vpop.xlane.xlu0 %3247
  %v3249 = vpack.c.bf16 %v3202, %v3201
  %v3250 = vpack.c.bf16 %v3204, %v3203
  %v3251 = vpack.c.bf16 %v3206, %v3205
  %v3252 = vpack.c.bf16 %v3208, %v3207
  %v3253 = vpack.c.bf16 %v3210, %v3209
  %v3254 = vpack.c.bf16 %v3212, %v3211
  %v3255 = vpack.c.bf16 %v3214, %v3213
  %v3256 = vpack.c.bf16 %v3216, %v3215
  %3257 = vrot.lane.b32.xlu0 %v1315, 88
  %v3258 = vpop.permute.xlu0 %3257
  %3259 = vrot.lane.b32.xlu0 %v1316, 88
  %v3260 = vpop.permute.xlu0 %3259
  %3261 = vrot.lane.b32.xlu0 %v1317, 88
  %v3262 = vpop.permute.xlu0 %3261
  %3263 = vrot.lane.b32.xlu0 %v1318, 88
  %v3264 = vpop.permute.xlu0 %3263
  %3265 = vrot.lane.b32.xlu0 %v1319, 88
  %v3266 = vpop.permute.xlu0 %3265
  %3267 = vrot.lane.b32.xlu0 %v1320, 88
  %v3268 = vpop.permute.xlu0 %3267
  %3269 = vrot.lane.b32.xlu0 %v1321, 88
  %v3270 = vpop.permute.xlu0 %3269
  %3271 = vrot.lane.b32.xlu0 %v1322, 88
  %v3272 = vpop.permute.xlu0 %3271
  %3281 = vmatpush.bf16.msra.mxu0 %v3272
  %3282 = vmatpush.bf16.msra.mxu0 %v3270
  %3283 = vmatpush.bf16.msra.mxu0 %v3268
  %3284 = vmatpush.bf16.msra.mxu0 %v3266
  %3285 = vmatpush.bf16.msra.mxu0 %v3264
  %3286 = vmatpush.bf16.msra.mxu0 %v3262
  %3287 = vmatpush.bf16.msra.mxu0 %v3260
  %3288 = vmatpush.bf16.msra.mxu0 %v3258
  %3289 = vmatmul.bf16.gmra.mxu0 %v3249
  %v3290 = vpop.f32.mrf.mxu0
  %v3291 = vadd.f32 0.0, %v3290
  %v3292 = vpop.f32.mrf.mxu0
  %v3293 = vadd.f32 0.0, %v3292
  %3294 = vmatmul.bf16.gmra.mxu0 %v3250
  %v3295 = vpop.f32.mrf.mxu0
  %v3296 = vadd.f32 0.0, %v3295
  %v3297 = vpop.f32.mrf.mxu0
  %v3298 = vadd.f32 0.0, %v3297
  %3299 = vmatmul.bf16.gmra.mxu0 %v3251
  %v3300 = vpop.f32.mrf.mxu0
  %v3301 = vadd.f32 0.0, %v3300
  %v3302 = vpop.f32.mrf.mxu0
  %v3303 = vadd.f32 0.0, %v3302
  %3304 = vmatmul.bf16.gmra.mxu0 %v3252
  %v3305 = vpop.f32.mrf.mxu0
  %v3306 = vadd.f32 0.0, %v3305
  %v3307 = vpop.f32.mrf.mxu0
  %v3308 = vadd.f32 0.0, %v3307
  %3309 = vmatmul.bf16.gmra.mxu0 %v3253
  %v3310 = vpop.f32.mrf.mxu0
  %v3311 = vadd.f32 0.0, %v3310
  %v3312 = vpop.f32.mrf.mxu0
  %v3313 = vadd.f32 0.0, %v3312
  %3314 = vmatmul.bf16.gmra.mxu0 %v3254
  %v3315 = vpop.f32.mrf.mxu0
  %v3316 = vadd.f32 0.0, %v3315
  %v3317 = vpop.f32.mrf.mxu0
  %v3318 = vadd.f32 0.0, %v3317
  %3319 = vmatmul.bf16.gmra.mxu0 %v3255
  %v3320 = vpop.f32.mrf.mxu0
  %v3321 = vadd.f32 0.0, %v3320
  %v3322 = vpop.f32.mrf.mxu0
  %v3323 = vadd.f32 0.0, %v3322
  %3324 = vmatmul.bf16.gmra.mxu0 %v3256
  %v3325 = vpop.f32.mrf.mxu0
  %v3326 = vadd.f32 0.0, %v3325
  %v3327 = vpop.f32.mrf.mxu0
  %v3328 = vadd.f32 0.0, %v3327
  %3329 = vdwg.mxu0
  %v3330 = vrcp.pop %v3218
  %v3331 = vrcp.pop %v3220
  %v3332 = vrcp.pop %v3222
  %v3333 = vrcp.pop %v3224
  %v3334 = vrcp.pop %v3226
  %v3335 = vrcp.pop %v3228
  %v3336 = vrcp.pop %v3230
  %v3337 = vrcp.pop %v3232
  %v3338 = vrcp.pop %v3234
  %v3339 = vrcp.pop %v3236
  %v3340 = vrcp.pop %v3238
  %v3341 = vrcp.pop %v3240
  %v3342 = vrcp.pop %v3242
  %v3343 = vrcp.pop %v3244
  %v3344 = vrcp.pop %v3246
  %v3345 = vrcp.pop %v3248
  %v3346 = vmul.f32 %v3291, %v3330
  %v3347 = vmul.f32 %v3293, %v3331
  %v3348 = vmul.f32 %v3296, %v3332
  %v3349 = vmul.f32 %v3298, %v3333
  %v3350 = vmul.f32 %v3301, %v3334
  %v3351 = vmul.f32 %v3303, %v3335
  %v3352 = vmul.f32 %v3306, %v3336
  %v3353 = vmul.f32 %v3308, %v3337
  %v3354 = vmul.f32 %v3311, %v3338
  %v3355 = vmul.f32 %v3313, %v3339
  %v3356 = vmul.f32 %v3316, %v3340
  %v3357 = vmul.f32 %v3318, %v3341
  %v3358 = vmul.f32 %v3321, %v3342
  %v3359 = vmul.f32 %v3323, %v3343
  %v3360 = vmul.f32 %v3326, %v3344
  %v3361 = vmul.f32 %v3328, %v3345
  %3378 = vrot.lane.b32.xlu0 %v3346, 40
  %v3379 = vpop.permute.xlu0 %3378
  %3380 = vrot.lane.b32.xlu0 %v3347, 40
  %v3381 = vpop.permute.xlu0 %3380
  %3382 = vrot.lane.b32.xlu0 %v3348, 40
  %v3383 = vpop.permute.xlu0 %3382
  %3384 = vrot.lane.b32.xlu0 %v3349, 40
  %v3385 = vpop.permute.xlu0 %3384
  %3386 = vrot.lane.b32.xlu0 %v3350, 40
  %v3387 = vpop.permute.xlu0 %3386
  %3388 = vrot.lane.b32.xlu0 %v3351, 40
  %v3389 = vpop.permute.xlu0 %3388
  %3390 = vrot.lane.b32.xlu0 %v3352, 40
  %v3391 = vpop.permute.xlu0 %3390
  %3392 = vrot.lane.b32.xlu0 %v3353, 40
  %v3393 = vpop.permute.xlu0 %3392
  %3394 = vrot.lane.b32.xlu0 %v3354, 40
  %v3395 = vpop.permute.xlu0 %3394
  %3396 = vrot.lane.b32.xlu0 %v3355, 40
  %v3397 = vpop.permute.xlu0 %3396
  %3398 = vrot.lane.b32.xlu0 %v3356, 40
  %v3399 = vpop.permute.xlu0 %3398
  %3400 = vrot.lane.b32.xlu0 %v3357, 40
  %v3401 = vpop.permute.xlu0 %3400
  %3402 = vrot.lane.b32.xlu0 %v3358, 40
  %v3403 = vpop.permute.xlu0 %3402
  %3404 = vrot.lane.b32.xlu0 %v3359, 40
  %v3405 = vpop.permute.xlu0 %3404
  %3406 = vrot.lane.b32.xlu0 %v3360, 40
  %v3407 = vpop.permute.xlu0 %3406
  %3408 = vrot.lane.b32.xlu0 %v3361, 40
  %v3409 = vpop.permute.xlu0 %3408
  %vm3426 = vcmask 392512
  %3427 = vst.msk [vmem:[#allocation2] sm:$0xff] %vm3426, %v3379
  %3428 = vst.msk [vmem:[#allocation2 + $0x8] sm:$0xff] %vm3426, %v3381
  %3429 = vst.msk [vmem:[#allocation2 + $0x10] sm:$0xff] %vm3426, %v3383
  %3430 = vst.msk [vmem:[#allocation2 + $0x18] sm:$0xff] %vm3426, %v3385
  %3431 = vst.msk [vmem:[#allocation2 + $0x20] sm:$0xff] %vm3426, %v3387
  %3432 = vst.msk [vmem:[#allocation2 + $0x28] sm:$0xff] %vm3426, %v3389
  %3433 = vst.msk [vmem:[#allocation2 + $0x30] sm:$0xff] %vm3426, %v3391
  %3434 = vst.msk [vmem:[#allocation2 + $0x38] sm:$0xff] %vm3426, %v3393
  %3435 = vst.msk [vmem:[#allocation2 + $0x40] sm:$0xff] %vm3426, %v3395
  %3436 = vst.msk [vmem:[#allocation2 + $0x48] sm:$0xff] %vm3426, %v3397
  %3437 = vst.msk [vmem:[#allocation2 + $0x50] sm:$0xff] %vm3426, %v3399
  %3438 = vst.msk [vmem:[#allocation2 + $0x58] sm:$0xff] %vm3426, %v3401
  %3439 = vst.msk [vmem:[#allocation2 + $0x60] sm:$0xff] %vm3426, %v3403
  %3440 = vst.msk [vmem:[#allocation2 + $0x68] sm:$0xff] %vm3426, %v3405
  %3441 = vst.msk [vmem:[#allocation2 + $0x70] sm:$0xff] %vm3426, %v3407
  %3442 = vst.msk [vmem:[#allocation2 + $0x78] sm:$0xff] %vm3426, %v3409
  %3443 = vrot.lane.b32.xlu0 %v1089, 80
  %v3444 = vpop.permute.xlu0 %3443
  %3445 = vrot.lane.b32.xlu0 %v1090, 80
  %v3446 = vpop.permute.xlu0 %3445
  %3447 = vrot.lane.b32.xlu0 %v1091, 80
  %v3448 = vpop.permute.xlu0 %3447
  %3449 = vrot.lane.b32.xlu0 %v1092, 80
  %v3450 = vpop.permute.xlu0 %3449
  %3451 = vrot.lane.b32.xlu0 %v1093, 80
  %v3452 = vpop.permute.xlu0 %3451
  %3453 = vrot.lane.b32.xlu0 %v1094, 80
  %v3454 = vpop.permute.xlu0 %3453
  %3455 = vrot.lane.b32.xlu0 %v1095, 80
  %v3456 = vpop.permute.xlu0 %3455
  %3457 = vrot.lane.b32.xlu0 %v1096, 80
  %v3458 = vpop.permute.xlu0 %3457
  %3459 = vrot.lane.b32.xlu0 %v1089, 16
  %v3460 = vpop.permute.xlu0 %3459
  %3461 = vrot.lane.b32.xlu0 %v1090, 16
  %v3462 = vpop.permute.xlu0 %3461
  %3463 = vrot.lane.b32.xlu0 %v1091, 16
  %v3464 = vpop.permute.xlu0 %3463
  %3465 = vrot.lane.b32.xlu0 %v1092, 16
  %v3466 = vpop.permute.xlu0 %3465
  %3467 = vrot.lane.b32.xlu0 %v1093, 16
  %v3468 = vpop.permute.xlu0 %3467
  %3469 = vrot.lane.b32.xlu0 %v1094, 16
  %v3470 = vpop.permute.xlu0 %3469
  %3471 = vrot.lane.b32.xlu0 %v1095, 16
  %v3472 = vpop.permute.xlu0 %3471
  %3473 = vrot.lane.b32.xlu0 %v1096, 16
  %v3474 = vpop.permute.xlu0 %3473
  %v3476 = vsel %vm1113, %v3444, 0
  %v3479 = vsel %vm1113, %v3446, 0
  %v3482 = vsel %vm1113, %v3448, 0
  %v3485 = vsel %vm1113, %v3450, 0
  %v3488 = vsel %vm1113, %v3452, 0
  %v3491 = vsel %vm1113, %v3454, 0
  %v3494 = vsel %vm1113, %v3456, 0
  %v3497 = vsel %vm1113, %v3458, 0
  %v3500 = vsel %vm1113, %v3460, 0
  %v3503 = vsel %vm1113, %v3462, 0
  %v3506 = vsel %vm1113, %v3464, 0
  %v3509 = vsel %vm1113, %v3466, 0
  %v3512 = vsel %vm1113, %v3468, 0
  %v3515 = vsel %vm1113, %v3470, 0
  %v3518 = vsel %vm1113, %v3472, 0
  %v3521 = vsel %vm1113, %v3474, 0
  %3523 = vmatpush.bf16.xpose.msra.mxu0 %v3521
  %3524 = vmatpush.bf16.xpose.msra.mxu0 %v3518
  %3525 = vmatpush.bf16.xpose.msra.mxu0 %v3515
  %3526 = vmatpush.bf16.xpose.msra.mxu0 %v3512
  %3527 = vmatpush.bf16.xpose.msra.mxu0 %v3509
  %3528 = vmatpush.bf16.xpose.msra.mxu0 %v3506
  %3529 = vmatpush.bf16.xpose.msra.mxu0 %v3503
  %3530 = vmatpush.bf16.xpose.msra.mxu0 %v3500
  %3531 = vmatmul.bf16.gmra.mxu0 %v3476
  %v3532 = vpop.f32.mrf.mxu0
  %v3533 = vadd.f32 0.0, %v3532
  %v3534 = vpop.f32.mrf.mxu0
  %v3535 = vadd.f32 0.0, %v3534
  %3536 = vmatmul.bf16.gmra.mxu0 %v3479
  %v3537 = vpop.f32.mrf.mxu0
  %v3538 = vadd.f32 0.0, %v3537
  %v3539 = vpop.f32.mrf.mxu0
  %v3540 = vadd.f32 0.0, %v3539
  %3541 = vmatmul.bf16.gmra.mxu0 %v3482
  %v3542 = vpop.f32.mrf.mxu0
  %v3543 = vadd.f32 0.0, %v3542
  %v3544 = vpop.f32.mrf.mxu0
  %v3545 = vadd.f32 0.0, %v3544
  %3546 = vmatmul.bf16.gmra.mxu0 %v3485
  %v3547 = vpop.f32.mrf.mxu0
  %v3548 = vadd.f32 0.0, %v3547
  %v3549 = vpop.f32.mrf.mxu0
  %v3550 = vadd.f32 0.0, %v3549
  %3551 = vmatmul.bf16.gmra.mxu0 %v3488
  %v3552 = vpop.f32.mrf.mxu0
  %v3553 = vadd.f32 0.0, %v3552
  %v3554 = vpop.f32.mrf.mxu0
  %v3555 = vadd.f32 0.0, %v3554
  %3556 = vmatmul.bf16.gmra.mxu0 %v3491
  %v3557 = vpop.f32.mrf.mxu0
  %v3558 = vadd.f32 0.0, %v3557
  %v3559 = vpop.f32.mrf.mxu0
  %v3560 = vadd.f32 0.0, %v3559
  %3561 = vmatmul.bf16.gmra.mxu0 %v3494
  %v3562 = vpop.f32.mrf.mxu0
  %v3563 = vadd.f32 0.0, %v3562
  %v3564 = vpop.f32.mrf.mxu0
  %v3565 = vadd.f32 0.0, %v3564
  %3566 = vmatmul.bf16.gmra.mxu0 %v3497
  %v3567 = vpop.f32.mrf.mxu0
  %v3568 = vadd.f32 0.0, %v3567
  %v3569 = vpop.f32.mrf.mxu0
  %v3570 = vadd.f32 0.0, %v3569
  %3571 = vdwg.mxu0
  %v3572 = vmul.f32 %v3533, 1.442695
  %v3573 = vpow.pop %v3572
  %v3574 = vmul.f32 %v3535, 1.442695
  %v3575 = vpow.pop %v3574
  %v3576 = vmul.f32 %v3538, 1.442695
  %v3577 = vpow.pop %v3576
  %v3578 = vmul.f32 %v3540, 1.442695
  %v3579 = vpow.pop %v3578
  %v3580 = vmul.f32 %v3543, 1.442695
  %v3581 = vpow.pop %v3580
  %v3582 = vmul.f32 %v3545, 1.442695
  %v3583 = vpow.pop %v3582
  %v3584 = vmul.f32 %v3548, 1.442695
  %v3585 = vpow.pop %v3584
  %v3586 = vmul.f32 %v3550, 1.442695
  %v3587 = vpow.pop %v3586
  %v3588 = vmul.f32 %v3553, 1.442695
  %v3589 = vpow.pop %v3588
  %v3590 = vmul.f32 %v3555, 1.442695
  %v3591 = vpow.pop %v3590
  %v3592 = vmul.f32 %v3558, 1.442695
  %v3593 = vpow.pop %v3592
  %v3594 = vmul.f32 %v3560, 1.442695
  %v3595 = vpow.pop %v3594
  %v3596 = vmul.f32 %v3563, 1.442695
  %v3597 = vpow.pop %v3596
  %v3598 = vmul.f32 %v3565, 1.442695
  %v3599 = vpow.pop %v3598
  %v3600 = vmul.f32 %v3568, 1.442695
  %v3601 = vpow.pop %v3600
  %v3602 = vmul.f32 %v3570, 1.442695
  %v3603 = vpow.pop %v3602
  %v3604 = vmul.f32 %v3573, %v1041
  %v3605 = vmul.f32 %v3575, %v1042
  %v3606 = vmul.f32 %v3577, %v1043
  %v3607 = vmul.f32 %v3579, %v1044
  %v3608 = vmul.f32 %v3581, %v1045
  %v3609 = vmul.f32 %v3583, %v1046
  %v3610 = vmul.f32 %v3585, %v1047
  %v3611 = vmul.f32 %v3587, %v1048
  %v3612 = vmul.f32 %v3589, %v1049
  %v3613 = vmul.f32 %v3591, %v1050
  %v3614 = vmul.f32 %v3593, %v1051
  %v3615 = vmul.f32 %v3595, %v1052
  %v3616 = vmul.f32 %v3597, %v1053
  %v3617 = vmul.f32 %v3599, %v1054
  %v3618 = vmul.f32 %v3601, %v1055
  %v3619 = vmul.f32 %v3603, %v1056
  %3620 = vadd.xlane.f32.xlu0 %v3604
  %v3621 = vpop.xlane.xlu0 %3620
  %3622 = vadd.xlane.f32.xlu0 %v3605
  %v3623 = vpop.xlane.xlu0 %3622
  %3624 = vadd.xlane.f32.xlu0 %v3606
  %v3625 = vpop.xlane.xlu0 %3624
  %3626 = vadd.xlane.f32.xlu0 %v3607
  %v3627 = vpop.xlane.xlu0 %3626
  %3628 = vadd.xlane.f32.xlu0 %v3608
  %v3629 = vpop.xlane.xlu0 %3628
  %3630 = vadd.xlane.f32.xlu0 %v3609
  %v3631 = vpop.xlane.xlu0 %3630
  %3632 = vadd.xlane.f32.xlu0 %v3610
  %v3633 = vpop.xlane.xlu0 %3632
  %3634 = vadd.xlane.f32.xlu0 %v3611
  %v3635 = vpop.xlane.xlu0 %3634
  %3636 = vadd.xlane.f32.xlu0 %v3612
  %v3637 = vpop.xlane.xlu0 %3636
  %3638 = vadd.xlane.f32.xlu0 %v3613
  %v3639 = vpop.xlane.xlu0 %3638
  %3640 = vadd.xlane.f32.xlu0 %v3614
  %v3641 = vpop.xlane.xlu0 %3640
  %3642 = vadd.xlane.f32.xlu0 %v3615
  %v3643 = vpop.xlane.xlu0 %3642
  %3644 = vadd.xlane.f32.xlu0 %v3616
  %v3645 = vpop.xlane.xlu0 %3644
  %3646 = vadd.xlane.f32.xlu0 %v3617
  %v3647 = vpop.xlane.xlu0 %3646
  %3648 = vadd.xlane.f32.xlu0 %v3618
  %v3649 = vpop.xlane.xlu0 %3648
  %3650 = vadd.xlane.f32.xlu0 %v3619
  %v3651 = vpop.xlane.xlu0 %3650
  %v3652 = vpack.c.bf16 %v3605, %v3604
  %v3653 = vpack.c.bf16 %v3607, %v3606
  %v3654 = vpack.c.bf16 %v3609, %v3608
  %v3655 = vpack.c.bf16 %v3611, %v3610
  %v3656 = vpack.c.bf16 %v3613, %v3612
  %v3657 = vpack.c.bf16 %v3615, %v3614
  %v3658 = vpack.c.bf16 %v3617, %v3616
  %v3659 = vpack.c.bf16 %v3619, %v3618
  %3660 = vrot.lane.b32.xlu0 %v1315, 80
  %v3661 = vpop.permute.xlu0 %3660
  %3662 = vrot.lane.b32.xlu0 %v1316, 80
  %v3663 = vpop.permute.xlu0 %3662
  %3664 = vrot.lane.b32.xlu0 %v1317, 80
  %v3665 = vpop.permute.xlu0 %3664
  %3666 = vrot.lane.b32.xlu0 %v1318, 80
  %v3667 = vpop.permute.xlu0 %3666
  %3668 = vrot.lane.b32.xlu0 %v1319, 80
  %v3669 = vpop.permute.xlu0 %3668
  %3670 = vrot.lane.b32.xlu0 %v1320, 80
  %v3671 = vpop.permute.xlu0 %3670
  %3672 = vrot.lane.b32.xlu0 %v1321, 80
  %v3673 = vpop.permute.xlu0 %3672
  %3674 = vrot.lane.b32.xlu0 %v1322, 80
  %v3675 = vpop.permute.xlu0 %3674
  %3684 = vmatpush.bf16.msra.mxu0 %v3675
  %3685 = vmatpush.bf16.msra.mxu0 %v3673
  %3686 = vmatpush.bf16.msra.mxu0 %v3671
  %3687 = vmatpush.bf16.msra.mxu0 %v3669
  %3688 = vmatpush.bf16.msra.mxu0 %v3667
  %3689 = vmatpush.bf16.msra.mxu0 %v3665
  %3690 = vmatpush.bf16.msra.mxu0 %v3663
  %3691 = vmatpush.bf16.msra.mxu0 %v3661
  %3692 = vmatmul.bf16.gmra.mxu0 %v3652
  %v3693 = vpop.f32.mrf.mxu0
  %v3694 = vadd.f32 0.0, %v3693
  %v3695 = vpop.f32.mrf.mxu0
  %v3696 = vadd.f32 0.0, %v3695
  %3697 = vmatmul.bf16.gmra.mxu0 %v3653
  %v3698 = vpop.f32.mrf.mxu0
  %v3699 = vadd.f32 0.0, %v3698
  %v3700 = vpop.f32.mrf.mxu0
  %v3701 = vadd.f32 0.0, %v3700
  %3702 = vmatmul.bf16.gmra.mxu0 %v3654
  %v3703 = vpop.f32.mrf.mxu0
  %v3704 = vadd.f32 0.0, %v3703
  %v3705 = vpop.f32.mrf.mxu0
  %v3706 = vadd.f32 0.0, %v3705
  %3707 = vmatmul.bf16.gmra.mxu0 %v3655
  %v3708 = vpop.f32.mrf.mxu0
  %v3709 = vadd.f32 0.0, %v3708
  %v3710 = vpop.f32.mrf.mxu0
  %v3711 = vadd.f32 0.0, %v3710
  %3712 = vmatmul.bf16.gmra.mxu0 %v3656
  %v3713 = vpop.f32.mrf.mxu0
  %v3714 = vadd.f32 0.0, %v3713
  %v3715 = vpop.f32.mrf.mxu0
  %v3716 = vadd.f32 0.0, %v3715
  %3717 = vmatmul.bf16.gmra.mxu0 %v3657
  %v3718 = vpop.f32.mrf.mxu0
  %v3719 = vadd.f32 0.0, %v3718
  %v3720 = vpop.f32.mrf.mxu0
  %v3721 = vadd.f32 0.0, %v3720
  %3722 = vmatmul.bf16.gmra.mxu0 %v3658
  %v3723 = vpop.f32.mrf.mxu0
  %v3724 = vadd.f32 0.0, %v3723
  %v3725 = vpop.f32.mrf.mxu0
  %v3726 = vadd.f32 0.0, %v3725
  %3727 = vmatmul.bf16.gmra.mxu0 %v3659
  %v3728 = vpop.f32.mrf.mxu0
  %v3729 = vadd.f32 0.0, %v3728
  %v3730 = vpop.f32.mrf.mxu0
  %v3731 = vadd.f32 0.0, %v3730
  %3732 = vdwg.mxu0
  %v3733 = vrcp.pop %v3621
  %v3734 = vrcp.pop %v3623
  %v3735 = vrcp.pop %v3625
  %v3736 = vrcp.pop %v3627
  %v3737 = vrcp.pop %v3629
  %v3738 = vrcp.pop %v3631
  %v3739 = vrcp.pop %v3633
  %v3740 = vrcp.pop %v3635
  %v3741 = vrcp.pop %v3637
  %v3742 = vrcp.pop %v3639
  %v3743 = vrcp.pop %v3641
  %v3744 = vrcp.pop %v3643
  %v3745 = vrcp.pop %v3645
  %v3746 = vrcp.pop %v3647
  %v3747 = vrcp.pop %v3649
  %v3748 = vrcp.pop %v3651
  %v3749 = vmul.f32 %v3694, %v3733
  %v3750 = vmul.f32 %v3696, %v3734
  %v3751 = vmul.f32 %v3699, %v3735
  %v3752 = vmul.f32 %v3701, %v3736
  %v3753 = vmul.f32 %v3704, %v3737
  %v3754 = vmul.f32 %v3706, %v3738
  %v3755 = vmul.f32 %v3709, %v3739
  %v3756 = vmul.f32 %v3711, %v3740
  %v3757 = vmul.f32 %v3714, %v3741
  %v3758 = vmul.f32 %v3716, %v3742
  %v3759 = vmul.f32 %v3719, %v3743
  %v3760 = vmul.f32 %v3721, %v3744
  %v3761 = vmul.f32 %v3724, %v3745
  %v3762 = vmul.f32 %v3726, %v3746
  %v3763 = vmul.f32 %v3729, %v3747
  %v3764 = vmul.f32 %v3731, %v3748
  %3781 = vrot.lane.b32.xlu0 %v3749, 48
  %v3782 = vpop.permute.xlu0 %3781
  %3783 = vrot.lane.b32.xlu0 %v3750, 48
  %v3784 = vpop.permute.xlu0 %3783
  %3785 = vrot.lane.b32.xlu0 %v3751, 48
  %v3786 = vpop.permute.xlu0 %3785
  %3787 = vrot.lane.b32.xlu0 %v3752, 48
  %v3788 = vpop.permute.xlu0 %3787
  %3789 = vrot.lane.b32.xlu0 %v3753, 48
  %v3790 = vpop.permute.xlu0 %3789
  %3791 = vrot.lane.b32.xlu0 %v3754, 48
  %v3792 = vpop.permute.xlu0 %3791
  %3793 = vrot.lane.b32.xlu0 %v3755, 48
  %v3794 = vpop.permute.xlu0 %3793
  %3795 = vrot.lane.b32.xlu0 %v3756, 48
  %v3796 = vpop.permute.xlu0 %3795
  %3797 = vrot.lane.b32.xlu0 %v3757, 48
  %v3798 = vpop.permute.xlu0 %3797
  %3799 = vrot.lane.b32.xlu0 %v3758, 48
  %v3800 = vpop.permute.xlu0 %3799
  %3801 = vrot.lane.b32.xlu0 %v3759, 48
  %v3802 = vpop.permute.xlu0 %3801
  %3803 = vrot.lane.b32.xlu0 %v3760, 48
  %v3804 = vpop.permute.xlu0 %3803
  %3805 = vrot.lane.b32.xlu0 %v3761, 48
  %v3806 = vpop.permute.xlu0 %3805
  %3807 = vrot.lane.b32.xlu0 %v3762, 48
  %v3808 = vpop.permute.xlu0 %3807
  %3809 = vrot.lane.b32.xlu0 %v3763, 48
  %v3810 = vpop.permute.xlu0 %3809
  %3811 = vrot.lane.b32.xlu0 %v3764, 48
  %v3812 = vpop.permute.xlu0 %3811
  %vm3829 = vcmask 458112
  %3830 = vst.msk [vmem:[#allocation2] sm:$0xff] %vm3829, %v3782
  %3831 = vst.msk [vmem:[#allocation2 + $0x8] sm:$0xff] %vm3829, %v3784
  %3832 = vst.msk [vmem:[#allocation2 + $0x10] sm:$0xff] %vm3829, %v3786
  %3833 = vst.msk [vmem:[#allocation2 + $0x18] sm:$0xff] %vm3829, %v3788
  %3834 = vst.msk [vmem:[#allocation2 + $0x20] sm:$0xff] %vm3829, %v3790
  %3835 = vst.msk [vmem:[#allocation2 + $0x28] sm:$0xff] %vm3829, %v3792
  %3836 = vst.msk [vmem:[#allocation2 + $0x30] sm:$0xff] %vm3829, %v3794
  %3837 = vst.msk [vmem:[#allocation2 + $0x38] sm:$0xff] %vm3829, %v3796
  %3838 = vst.msk [vmem:[#allocation2 + $0x40] sm:$0xff] %vm3829, %v3798
  %3839 = vst.msk [vmem:[#allocation2 + $0x48] sm:$0xff] %vm3829, %v3800
  %3840 = vst.msk [vmem:[#allocation2 + $0x50] sm:$0xff] %vm3829, %v3802
  %3841 = vst.msk [vmem:[#allocation2 + $0x58] sm:$0xff] %vm3829, %v3804
  %3842 = vst.msk [vmem:[#allocation2 + $0x60] sm:$0xff] %vm3829, %v3806
  %3843 = vst.msk [vmem:[#allocation2 + $0x68] sm:$0xff] %vm3829, %v3808
  %3844 = vst.msk [vmem:[#allocation2 + $0x70] sm:$0xff] %vm3829, %v3810
  %3845 = vst.msk [vmem:[#allocation2 + $0x78] sm:$0xff] %vm3829, %v3812
  %3846 = vrot.lane.b32.xlu0 %v1089, 72
  %v3847 = vpop.permute.xlu0 %3846
  %3848 = vrot.lane.b32.xlu0 %v1090, 72
  %v3849 = vpop.permute.xlu0 %3848
  %3850 = vrot.lane.b32.xlu0 %v1091, 72
  %v3851 = vpop.permute.xlu0 %3850
  %3852 = vrot.lane.b32.xlu0 %v1092, 72
  %v3853 = vpop.permute.xlu0 %3852
  %3854 = vrot.lane.b32.xlu0 %v1093, 72
  %v3855 = vpop.permute.xlu0 %3854
  %3856 = vrot.lane.b32.xlu0 %v1094, 72
  %v3857 = vpop.permute.xlu0 %3856
  %3858 = vrot.lane.b32.xlu0 %v1095, 72
  %v3859 = vpop.permute.xlu0 %3858
  %3860 = vrot.lane.b32.xlu0 %v1096, 72
  %v3861 = vpop.permute.xlu0 %3860
  %3862 = vrot.lane.b32.xlu0 %v1089, 8
  %v3863 = vpop.permute.xlu0 %3862
  %3864 = vrot.lane.b32.xlu0 %v1090, 8
  %v3865 = vpop.permute.xlu0 %3864
  %3866 = vrot.lane.b32.xlu0 %v1091, 8
  %v3867 = vpop.permute.xlu0 %3866
  %3868 = vrot.lane.b32.xlu0 %v1092, 8
  %v3869 = vpop.permute.xlu0 %3868
  %3870 = vrot.lane.b32.xlu0 %v1093, 8
  %v3871 = vpop.permute.xlu0 %3870
  %3872 = vrot.lane.b32.xlu0 %v1094, 8
  %v3873 = vpop.permute.xlu0 %3872
  %3874 = vrot.lane.b32.xlu0 %v1095, 8
  %v3875 = vpop.permute.xlu0 %3874
  %3876 = vrot.lane.b32.xlu0 %v1096, 8
  %v3877 = vpop.permute.xlu0 %3876
  %v3879 = vsel %vm1113, %v3847, 0
  %v3882 = vsel %vm1113, %v3849, 0
  %v3885 = vsel %vm1113, %v3851, 0
  %v3888 = vsel %vm1113, %v3853, 0
  %v3891 = vsel %vm1113, %v3855, 0
  %v3894 = vsel %vm1113, %v3857, 0
  %v3897 = vsel %vm1113, %v3859, 0
  %v3900 = vsel %vm1113, %v3861, 0
  %v3903 = vsel %vm1113, %v3863, 0
  %v3906 = vsel %vm1113, %v3865, 0
  %v3909 = vsel %vm1113, %v3867, 0
  %v3912 = vsel %vm1113, %v3869, 0
  %v3915 = vsel %vm1113, %v3871, 0
  %v3918 = vsel %vm1113, %v3873, 0
  %v3921 = vsel %vm1113, %v3875, 0
  %v3924 = vsel %vm1113, %v3877, 0
  %3926 = vmatpush.bf16.xpose.msra.mxu0 %v3924
  %3927 = vmatpush.bf16.xpose.msra.mxu0 %v3921
  %3928 = vmatpush.bf16.xpose.msra.mxu0 %v3918
  %3929 = vmatpush.bf16.xpose.msra.mxu0 %v3915
  %3930 = vmatpush.bf16.xpose.msra.mxu0 %v3912
  %3931 = vmatpush.bf16.xpose.msra.mxu0 %v3909
  %3932 = vmatpush.bf16.xpose.msra.mxu0 %v3906
  %3933 = vmatpush.bf16.xpose.msra.mxu0 %v3903
  %3934 = vmatmul.bf16.gmra.mxu0 %v3879
  %v3935 = vpop.f32.mrf.mxu0
  %v3936 = vadd.f32 0.0, %v3935
  %v3937 = vpop.f32.mrf.mxu0
  %v3938 = vadd.f32 0.0, %v3937
  %3939 = vmatmul.bf16.gmra.mxu0 %v3882
  %v3940 = vpop.f32.mrf.mxu0
  %v3941 = vadd.f32 0.0, %v3940
  %v3942 = vpop.f32.mrf.mxu0
  %v3943 = vadd.f32 0.0, %v3942
  %3944 = vmatmul.bf16.gmra.mxu0 %v3885
  %v3945 = vpop.f32.mrf.mxu0
  %v3946 = vadd.f32 0.0, %v3945
  %v3947 = vpop.f32.mrf.mxu0
  %v3948 = vadd.f32 0.0, %v3947
  %3949 = vmatmul.bf16.gmra.mxu0 %v3888
  %v3950 = vpop.f32.mrf.mxu0
  %v3951 = vadd.f32 0.0, %v3950
  %v3952 = vpop.f32.mrf.mxu0
  %v3953 = vadd.f32 0.0, %v3952
  %3954 = vmatmul.bf16.gmra.mxu0 %v3891
  %v3955 = vpop.f32.mrf.mxu0
  %v3956 = vadd.f32 0.0, %v3955
  %v3957 = vpop.f32.mrf.mxu0
  %v3958 = vadd.f32 0.0, %v3957
  %3959 = vmatmul.bf16.gmra.mxu0 %v3894
  %v3960 = vpop.f32.mrf.mxu0
  %v3961 = vadd.f32 0.0, %v3960
  %v3962 = vpop.f32.mrf.mxu0
  %v3963 = vadd.f32 0.0, %v3962
  %3964 = vmatmul.bf16.gmra.mxu0 %v3897
  %v3965 = vpop.f32.mrf.mxu0
  %v3966 = vadd.f32 0.0, %v3965
  %v3967 = vpop.f32.mrf.mxu0
  %v3968 = vadd.f32 0.0, %v3967
  %3969 = vmatmul.bf16.gmra.mxu0 %v3900
  %v3970 = vpop.f32.mrf.mxu0
  %v3971 = vadd.f32 0.0, %v3970
  %v3972 = vpop.f32.mrf.mxu0
  %v3973 = vadd.f32 0.0, %v3972
  %3974 = vdwg.mxu0
  %v3975 = vmul.f32 %v3936, 1.442695
  %v3976 = vpow.pop %v3975
  %v3977 = vmul.f32 %v3938, 1.442695
  %v3978 = vpow.pop %v3977
  %v3979 = vmul.f32 %v3941, 1.442695
  %v3980 = vpow.pop %v3979
  %v3981 = vmul.f32 %v3943, 1.442695
  %v3982 = vpow.pop %v3981
  %v3983 = vmul.f32 %v3946, 1.442695
  %v3984 = vpow.pop %v3983
  %v3985 = vmul.f32 %v3948, 1.442695
  %v3986 = vpow.pop %v3985
  %v3987 = vmul.f32 %v3951, 1.442695
  %v3988 = vpow.pop %v3987
  %v3989 = vmul.f32 %v3953, 1.442695
  %v3990 = vpow.pop %v3989
  %v3991 = vmul.f32 %v3956, 1.442695
  %v3992 = vpow.pop %v3991
  %v3993 = vmul.f32 %v3958, 1.442695
  %v3994 = vpow.pop %v3993
  %v3995 = vmul.f32 %v3961, 1.442695
  %v3996 = vpow.pop %v3995
  %v3997 = vmul.f32 %v3963, 1.442695
  %v3998 = vpow.pop %v3997
  %v3999 = vmul.f32 %v3966, 1.442695
  %v4000 = vpow.pop %v3999
  %v4001 = vmul.f32 %v3968, 1.442695
  %v4002 = vpow.pop %v4001
  %v4003 = vmul.f32 %v3971, 1.442695
  %v4004 = vpow.pop %v4003
  %v4005 = vmul.f32 %v3973, 1.442695
  %v4006 = vpow.pop %v4005
  %v4007 = vmul.f32 %v3976, %v1041
  %v4008 = vmul.f32 %v3978, %v1042
  %v4009 = vmul.f32 %v3980, %v1043
  %v4010 = vmul.f32 %v3982, %v1044
  %v4011 = vmul.f32 %v3984, %v1045
  %v4012 = vmul.f32 %v3986, %v1046
  %v4013 = vmul.f32 %v3988, %v1047
  %v4014 = vmul.f32 %v3990, %v1048
  %v4015 = vmul.f32 %v3992, %v1049
  %v4016 = vmul.f32 %v3994, %v1050
  %v4017 = vmul.f32 %v3996, %v1051
  %v4018 = vmul.f32 %v3998, %v1052
  %v4019 = vmul.f32 %v4000, %v1053
  %v4020 = vmul.f32 %v4002, %v1054
  %v4021 = vmul.f32 %v4004, %v1055
  %v4022 = vmul.f32 %v4006, %v1056
  %4023 = vadd.xlane.f32.xlu0 %v4007
  %v4024 = vpop.xlane.xlu0 %4023
  %4025 = vadd.xlane.f32.xlu0 %v4008
  %v4026 = vpop.xlane.xlu0 %4025
  %4027 = vadd.xlane.f32.xlu0 %v4009
  %v4028 = vpop.xlane.xlu0 %4027
  %4029 = vadd.xlane.f32.xlu0 %v4010
  %v4030 = vpop.xlane.xlu0 %4029
  %4031 = vadd.xlane.f32.xlu0 %v4011
  %v4032 = vpop.xlane.xlu0 %4031
  %4033 = vadd.xlane.f32.xlu0 %v4012
  %v4034 = vpop.xlane.xlu0 %4033
  %4035 = vadd.xlane.f32.xlu0 %v4013
  %v4036 = vpop.xlane.xlu0 %4035
  %4037 = vadd.xlane.f32.xlu0 %v4014
  %v4038 = vpop.xlane.xlu0 %4037
  %4039 = vadd.xlane.f32.xlu0 %v4015
  %v4040 = vpop.xlane.xlu0 %4039
  %4041 = vadd.xlane.f32.xlu0 %v4016
  %v4042 = vpop.xlane.xlu0 %4041
  %4043 = vadd.xlane.f32.xlu0 %v4017
  %v4044 = vpop.xlane.xlu0 %4043
  %4045 = vadd.xlane.f32.xlu0 %v4018
  %v4046 = vpop.xlane.xlu0 %4045
  %4047 = vadd.xlane.f32.xlu0 %v4019
  %v4048 = vpop.xlane.xlu0 %4047
  %4049 = vadd.xlane.f32.xlu0 %v4020
  %v4050 = vpop.xlane.xlu0 %4049
  %4051 = vadd.xlane.f32.xlu0 %v4021
  %v4052 = vpop.xlane.xlu0 %4051
  %4053 = vadd.xlane.f32.xlu0 %v4022
  %v4054 = vpop.xlane.xlu0 %4053
  %v4055 = vpack.c.bf16 %v4008, %v4007
  %v4056 = vpack.c.bf16 %v4010, %v4009
  %v4057 = vpack.c.bf16 %v4012, %v4011
  %v4058 = vpack.c.bf16 %v4014, %v4013
  %v4059 = vpack.c.bf16 %v4016, %v4015
  %v4060 = vpack.c.bf16 %v4018, %v4017
  %v4061 = vpack.c.bf16 %v4020, %v4019
  %v4062 = vpack.c.bf16 %v4022, %v4021
  %4063 = vrot.lane.b32.xlu0 %v1315, 72
  %v4064 = vpop.permute.xlu0 %4063
  %4065 = vrot.lane.b32.xlu0 %v1316, 72
  %v4066 = vpop.permute.xlu0 %4065
  %4067 = vrot.lane.b32.xlu0 %v1317, 72
  %v4068 = vpop.permute.xlu0 %4067
  %4069 = vrot.lane.b32.xlu0 %v1318, 72
  %v4070 = vpop.permute.xlu0 %4069
  %4071 = vrot.lane.b32.xlu0 %v1319, 72
  %v4072 = vpop.permute.xlu0 %4071
  %4073 = vrot.lane.b32.xlu0 %v1320, 72
  %v4074 = vpop.permute.xlu0 %4073
  %4075 = vrot.lane.b32.xlu0 %v1321, 72
  %v4076 = vpop.permute.xlu0 %4075
  %4077 = vrot.lane.b32.xlu0 %v1322, 72
  %v4078 = vpop.permute.xlu0 %4077
  %4087 = vmatpush.bf16.msra.mxu0 %v4078
  %4088 = vmatpush.bf16.msra.mxu0 %v4076
  %4089 = vmatpush.bf16.msra.mxu0 %v4074
  %4090 = vmatpush.bf16.msra.mxu0 %v4072
  %4091 = vmatpush.bf16.msra.mxu0 %v4070
  %4092 = vmatpush.bf16.msra.mxu0 %v4068
  %4093 = vmatpush.bf16.msra.mxu0 %v4066
  %4094 = vmatpush.bf16.msra.mxu0 %v4064
  %4095 = vmatmul.bf16.gmra.mxu0 %v4055
  %v4096 = vpop.f32.mrf.mxu0
  %v4097 = vadd.f32 0.0, %v4096
  %v4098 = vpop.f32.mrf.mxu0
  %v4099 = vadd.f32 0.0, %v4098
  %4100 = vmatmul.bf16.gmra.mxu0 %v4056
  %v4101 = vpop.f32.mrf.mxu0
  %v4102 = vadd.f32 0.0, %v4101
  %v4103 = vpop.f32.mrf.mxu0
  %v4104 = vadd.f32 0.0, %v4103
  %4105 = vmatmul.bf16.gmra.mxu0 %v4057
  %v4106 = vpop.f32.mrf.mxu0
  %v4107 = vadd.f32 0.0, %v4106
  %v4108 = vpop.f32.mrf.mxu0
  %v4109 = vadd.f32 0.0, %v4108
  %4110 = vmatmul.bf16.gmra.mxu0 %v4058
  %v4111 = vpop.f32.mrf.mxu0
  %v4112 = vadd.f32 0.0, %v4111
  %v4113 = vpop.f32.mrf.mxu0
  %v4114 = vadd.f32 0.0, %v4113
  %4115 = vmatmul.bf16.gmra.mxu0 %v4059
  %v4116 = vpop.f32.mrf.mxu0
  %v4117 = vadd.f32 0.0, %v4116
  %v4118 = vpop.f32.mrf.mxu0
  %v4119 = vadd.f32 0.0, %v4118
  %4120 = vmatmul.bf16.gmra.mxu0 %v4060
  %v4121 = vpop.f32.mrf.mxu0
  %v4122 = vadd.f32 0.0, %v4121
  %v4123 = vpop.f32.mrf.mxu0
  %v4124 = vadd.f32 0.0, %v4123
  %4125 = vmatmul.bf16.gmra.mxu0 %v4061
  %v4126 = vpop.f32.mrf.mxu0
  %v4127 = vadd.f32 0.0, %v4126
  %v4128 = vpop.f32.mrf.mxu0
  %v4129 = vadd.f32 0.0, %v4128
  %4130 = vmatmul.bf16.gmra.mxu0 %v4062
  %v4131 = vpop.f32.mrf.mxu0
  %v4132 = vadd.f32 0.0, %v4131
  %v4133 = vpop.f32.mrf.mxu0
  %v4134 = vadd.f32 0.0, %v4133
  %4135 = vdwg.mxu0
  %v4136 = vrcp.pop %v4024
  %v4137 = vrcp.pop %v4026
  %v4138 = vrcp.pop %v4028
  %v4139 = vrcp.pop %v4030
  %v4140 = vrcp.pop %v4032
  %v4141 = vrcp.pop %v4034
  %v4142 = vrcp.pop %v4036
  %v4143 = vrcp.pop %v4038
  %v4144 = vrcp.pop %v4040
  %v4145 = vrcp.pop %v4042
  %v4146 = vrcp.pop %v4044
  %v4147 = vrcp.pop %v4046
  %v4148 = vrcp.pop %v4048
  %v4149 = vrcp.pop %v4050
  %v4150 = vrcp.pop %v4052
  %v4151 = vrcp.pop %v4054
  %v4152 = vmul.f32 %v4097, %v4136
  %v4153 = vmul.f32 %v4099, %v4137
  %v4154 = vmul.f32 %v4102, %v4138
  %v4155 = vmul.f32 %v4104, %v4139
  %v4156 = vmul.f32 %v4107, %v4140
  %v4157 = vmul.f32 %v4109, %v4141
  %v4158 = vmul.f32 %v4112, %v4142
  %v4159 = vmul.f32 %v4114, %v4143
  %v4160 = vmul.f32 %v4117, %v4144
  %v4161 = vmul.f32 %v4119, %v4145
  %v4162 = vmul.f32 %v4122, %v4146
  %v4163 = vmul.f32 %v4124, %v4147
  %v4164 = vmul.f32 %v4127, %v4148
  %v4165 = vmul.f32 %v4129, %v4149
  %v4166 = vmul.f32 %v4132, %v4150
  %v4167 = vmul.f32 %v4134, %v4151
  %4184 = vrot.lane.b32.xlu0 %v4152, 56
  %v4185 = vpop.permute.xlu0 %4184
  %4186 = vrot.lane.b32.xlu0 %v4153, 56
  %v4187 = vpop.permute.xlu0 %4186
  %4188 = vrot.lane.b32.xlu0 %v4154, 56
  %v4189 = vpop.permute.xlu0 %4188
  %4190 = vrot.lane.b32.xlu0 %v4155, 56
  %v4191 = vpop.permute.xlu0 %4190
  %4192 = vrot.lane.b32.xlu0 %v4156, 56
  %v4193 = vpop.permute.xlu0 %4192
  %4194 = vrot.lane.b32.xlu0 %v4157, 56
  %v4195 = vpop.permute.xlu0 %4194
  %4196 = vrot.lane.b32.xlu0 %v4158, 56
  %v4197 = vpop.permute.xlu0 %4196
  %4198 = vrot.lane.b32.xlu0 %v4159, 56
  %v4199 = vpop.permute.xlu0 %4198
  %4200 = vrot.lane.b32.xlu0 %v4160, 56
  %v4201 = vpop.permute.xlu0 %4200
  %4202 = vrot.lane.b32.xlu0 %v4161, 56
  %v4203 = vpop.permute.xlu0 %4202
  %4204 = vrot.lane.b32.xlu0 %v4162, 56
  %v4205 = vpop.permute.xlu0 %4204
  %4206 = vrot.lane.b32.xlu0 %v4163, 56
  %v4207 = vpop.permute.xlu0 %4206
  %4208 = vrot.lane.b32.xlu0 %v4164, 56
  %v4209 = vpop.permute.xlu0 %4208
  %4210 = vrot.lane.b32.xlu0 %v4165, 56
  %v4211 = vpop.permute.xlu0 %4210
  %4212 = vrot.lane.b32.xlu0 %v4166, 56
  %v4213 = vpop.permute.xlu0 %4212
  %4214 = vrot.lane.b32.xlu0 %v4167, 56
  %v4215 = vpop.permute.xlu0 %4214
  %vm4232 = vcmask 523712
  %4233 = vst.msk [vmem:[#allocation2] sm:$0xff] %vm4232, %v4185
  %4234 = vst.msk [vmem:[#allocation2 + $0x8] sm:$0xff] %vm4232, %v4187
  %4235 = vst.msk [vmem:[#allocation2 + $0x10] sm:$0xff] %vm4232, %v4189
  %4236 = vst.msk [vmem:[#allocation2 + $0x18] sm:$0xff] %vm4232, %v4191
  %4237 = vst.msk [vmem:[#allocation2 + $0x20] sm:$0xff] %vm4232, %v4193
  %4238 = vst.msk [vmem:[#allocation2 + $0x28] sm:$0xff] %vm4232, %v4195
  %4239 = vst.msk [vmem:[#allocation2 + $0x30] sm:$0xff] %vm4232, %v4197
  %4240 = vst.msk [vmem:[#allocation2 + $0x38] sm:$0xff] %vm4232, %v4199
  %4241 = vst.msk [vmem:[#allocation2 + $0x40] sm:$0xff] %vm4232, %v4201
  %4242 = vst.msk [vmem:[#allocation2 + $0x48] sm:$0xff] %vm4232, %v4203
  %4243 = vst.msk [vmem:[#allocation2 + $0x50] sm:$0xff] %vm4232, %v4205
  %4244 = vst.msk [vmem:[#allocation2 + $0x58] sm:$0xff] %vm4232, %v4207
  %4245 = vst.msk [vmem:[#allocation2 + $0x60] sm:$0xff] %vm4232, %v4209
  %4246 = vst.msk [vmem:[#allocation2 + $0x68] sm:$0xff] %vm4232, %v4211
  %4247 = vst.msk [vmem:[#allocation2 + $0x70] sm:$0xff] %vm4232, %v4213
  %4248 = vst.msk [vmem:[#allocation2 + $0x78] sm:$0xff] %vm4232, %v4215
  %v4249 = vld [vmem:[#allocation2] sm:$0xff]
  %v4250 = vld [vmem:[#allocation2 + $0x8] sm:$0xff]
  %v4251 = vld [vmem:[#allocation2 + $0x10] sm:$0xff]
  %v4252 = vld [vmem:[#allocation2 + $0x18] sm:$0xff]
  %v4253 = vld [vmem:[#allocation2 + $0x20] sm:$0xff]
  %v4254 = vld [vmem:[#allocation2 + $0x28] sm:$0xff]
  %v4255 = vld [vmem:[#allocation2 + $0x30] sm:$0xff]
  %v4256 = vld [vmem:[#allocation2 + $0x38] sm:$0xff]
  %v4257 = vld [vmem:[#allocation2 + $0x40] sm:$0xff]
  %v4258 = vld [vmem:[#allocation2 + $0x48] sm:$0xff]
  %v4259 = vld [vmem:[#allocation2 + $0x50] sm:$0xff]
  %v4260 = vld [vmem:[#allocation2 + $0x58] sm:$0xff]
  %v4261 = vld [vmem:[#allocation2 + $0x60] sm:$0xff]
  %v4262 = vld [vmem:[#allocation2 + $0x68] sm:$0xff]
  %v4263 = vld [vmem:[#allocation2 + $0x70] sm:$0xff]
  %v4264 = vld [vmem:[#allocation2 + $0x78] sm:$0xff]
  %v4265 = vpack.c.bf16 %v4250, %v4249
  %v4266 = vpack.c.bf16 %v4252, %v4251
  %v4267 = vpack.c.bf16 %v4254, %v4253
  %v4268 = vpack.c.bf16 %v4256, %v4255
  %v4269 = vpack.c.bf16 %v4258, %v4257
  %v4270 = vpack.c.bf16 %v4260, %v4259
  %v4271 = vpack.c.bf16 %v4262, %v4261
  %v4272 = vpack.c.bf16 %v4264, %v4263
  %v4273 = vld [vmem:[%s3] sm:$0xf]
  %v4274 = vld [vmem:[%s3 + $0x4] sm:$0xf]
  %v4275 = vld [vmem:[%s3 + $0x8] sm:$0xf]
  %v4276 = vld [vmem:[%s3 + $0xc] sm:$0xf]
  %v4277 = vld [vmem:[%s3 + $0x10] sm:$0xf]
  %v4278 = vld [vmem:[%s3 + $0x14] sm:$0xf]
  %v4279 = vld [vmem:[%s3 + $0x18] sm:$0xf]
  %v4280 = vld [vmem:[%s3 + $0x1c] sm:$0xf]
  %v4281 = vld [vmem:[%s4] sm:$0x1]
  %v4283 = vperm.slane %v4281, 0
  %v4293 = vunpack.c.l.b16 %v4273
  %v4294 = vunpack.c.l.b16 %v4274
  %v4295 = vunpack.c.l.b16 %v4275
  %v4296 = vunpack.c.l.b16 %v4276
  %v4297 = vunpack.c.l.b16 %v4277
  %v4298 = vunpack.c.l.b16 %v4278
  %v4299 = vunpack.c.l.b16 %v4279
  %v4300 = vunpack.c.l.b16 %v4280
  %v4301 = vpack.c.b16 %v4294, %v4293
  %v4302 = vpack.c.b16 %v4296, %v4295
  %v4303 = vpack.c.b16 %v4298, %v4297
  %v4304 = vpack.c.b16 %v4300, %v4299
  %v4310 = vsel %vm143, %v4265, 0
  %v4313 = vsel %vm143, %v4266, 0
  %v4316 = vsel %vm143, %v4267, 0
  %v4319 = vsel %vm143, %v4268, 0
  %v4322 = vsel %vm143, %v4269, 0
  %v4325 = vsel %vm143, %v4270, 0
  %v4328 = vsel %vm143, %v4271, 0
  %v4331 = vsel %vm143, %v4272, 0
  %4333 = vmatpush.bf16.msra.mxu0 0
  %4334 = vmatpush.bf16.msra.mxu0 0
  %4335 = vmatpush.bf16.msra.mxu0 0
  %4336 = vmatpush.bf16.msra.mxu0 0
  %4337 = vmatpush.bf16.msra.mxu0 %v4304
  %4338 = vmatpush.bf16.msra.mxu0 %v4303
  %4339 = vmatpush.bf16.msra.mxu0 %v4302
  %4340 = vmatpush.bf16.msra.mxu0 %v4301
  %4341 = vmatmul.bf16.gmra.mxu0 %v4310
  %v4342 = vpop.f32.mrf.mxu0
  %v4343 = vadd.f32 %v4283, %v4342
  %v4344 = vpop.f32.mrf.mxu0
  %v4345 = vadd.f32 %v4283, %v4344
  %4346 = vmatmul.bf16.gmra.mxu0 %v4313
  %v4347 = vpop.f32.mrf.mxu0
  %v4348 = vadd.f32 %v4283, %v4347
  %v4349 = vpop.f32.mrf.mxu0
  %v4350 = vadd.f32 %v4283, %v4349
  %4351 = vmatmul.bf16.gmra.mxu0 %v4316
  %v4352 = vpop.f32.mrf.mxu0
  %v4353 = vadd.f32 %v4283, %v4352
  %v4354 = vpop.f32.mrf.mxu0
  %v4355 = vadd.f32 %v4283, %v4354
  %4356 = vmatmul.bf16.gmra.mxu0 %v4319
  %v4357 = vpop.f32.mrf.mxu0
  %v4358 = vadd.f32 %v4283, %v4357
  %v4359 = vpop.f32.mrf.mxu0
  %v4360 = vadd.f32 %v4283, %v4359
  %4361 = vmatmul.bf16.gmra.mxu0 %v4322
  %v4362 = vpop.f32.mrf.mxu0
  %v4363 = vadd.f32 %v4283, %v4362
  %v4364 = vpop.f32.mrf.mxu0
  %v4365 = vadd.f32 %v4283, %v4364
  %4366 = vmatmul.bf16.gmra.mxu0 %v4325
  %v4367 = vpop.f32.mrf.mxu0
  %v4368 = vadd.f32 %v4283, %v4367
  %v4369 = vpop.f32.mrf.mxu0
  %v4370 = vadd.f32 %v4283, %v4369
  %4371 = vmatmul.bf16.gmra.mxu0 %v4328
  %v4372 = vpop.f32.mrf.mxu0
  %v4373 = vadd.f32 %v4283, %v4372
  %v4374 = vpop.f32.mrf.mxu0
  %v4375 = vadd.f32 %v4283, %v4374
  %4376 = vmatmul.bf16.gmra.mxu0 %v4331
  %v4377 = vpop.f32.mrf.mxu0
  %v4378 = vadd.f32 %v4283, %v4377
  %v4379 = vpop.f32.mrf.mxu0
  %v4380 = vadd.f32 %v4283, %v4379
  %4381 = vdwg.mxu0
  %4382 = vst.msk [vmem:[%s9] sm:$0xff] %vm143, %v4343
  %4383 = vst.msk [vmem:[%s9 + $0x8] sm:$0xff] %vm143, %v4345
  %4384 = vst.msk [vmem:[%s9 + $0x10] sm:$0xff] %vm143, %v4348
  %4385 = vst.msk [vmem:[%s9 + $0x18] sm:$0xff] %vm143, %v4350
  %4386 = vst.msk [vmem:[%s9 + $0x20] sm:$0xff] %vm143, %v4353
  %4387 = vst.msk [vmem:[%s9 + $0x28] sm:$0xff] %vm143, %v4355
  %4388 = vst.msk [vmem:[%s9 + $0x30] sm:$0xff] %vm143, %v4358
  %4389 = vst.msk [vmem:[%s9 + $0x38] sm:$0xff] %vm143, %v4360
  %4390 = vst.msk [vmem:[%s9 + $0x40] sm:$0xff] %vm143, %v4363
  %4391 = vst.msk [vmem:[%s9 + $0x48] sm:$0xff] %vm143, %v4365
  %4392 = vst.msk [vmem:[%s9 + $0x50] sm:$0xff] %vm143, %v4368
  %4393 = vst.msk [vmem:[%s9 + $0x58] sm:$0xff] %vm143, %v4370
  %4394 = vst.msk [vmem:[%s9 + $0x60] sm:$0xff] %vm143, %v4373
  %4395 = vst.msk [vmem:[%s9 + $0x68] sm:$0xff] %vm143, %v4375
  %4396 = vst.msk [vmem:[%s9 + $0x70] sm:$0xff] %vm143, %v4378
  %4397 = vst.msk [vmem:[%s9 + $0x78] sm:$0xff] %vm143, %v4380
  // Predicated region
  $region38: #{tpu_custom_call.1} parent=0 // pred_check
    _
  $region39: #{tpu_custom_call.1} parent=0 // pred_check_branch
    %4399 = sbr.rel (0) target = $region41
  $region40: #{tpu_custom_call.1} parent=0 // pred_region
    _
  $region41: #{tpu_custom_call.1} parent=0 // pred_fallthru
    _
  // Predicated region
  $region42: #{tpu_custom_call.1} parent=0 // pred_check
    _
  $region43: #{tpu_custom_call.1} parent=0 // pred_check_branch
    %4401 = sbr.rel (0) target = $region45
  $region44: #{tpu_custom_call.1} parent=0 // pred_region
    _
  $region45: #{tpu_custom_call.1} parent=0 // pred_fallthru
    _

</llo_original>
